<compile_context>
chip_gen: v7x
topology: tpu7x:2x2x1
jax: 0.10.0
libtpu: 0.0.40
codegen_flags: <defaults>
</compile_context>

<pallas_src>
import functools

import jax
import jax.numpy as jnp
import numpy as np
from jax.experimental import pallas as pl
from jax.experimental.pallas import tpu as pltpu


def _bottleneck_kernel(x_ref, w1_ref, b1_ref, w2_ref, b2_ref, w3_ref, b3_ref,
                       o_ref, pad_ref, *, H, W, Cin, P):
    Cout = 4 * P
    HW = H * W

    # ---- conv1 (1x1) + bias + relu : channel matmul on the MXU -------------
    x_bf = x_ref[0].reshape(HW, Cin)                       # bf16 (HW, Cin)
    out1 = jnp.dot(x_bf, w1_ref[...], preferred_element_type=jnp.float32)
    out1 = jnp.maximum(out1 + b1_ref[...], 0.0)            # (HW, P) f32

    # ---- conv2 (3x3, stride 1, pad 1) + bias + relu ------------------------
    # Write only the halo border (zeros) + the interior into the padded
    # scratch, then form the im2col matrix and run a single K = 9*P matmul.
    zrow = jnp.zeros((1, W + 2, P), jnp.float32)
    zcol = jnp.zeros((H, 1, P), jnp.float32)
    pad_ref[0:1, :, :] = zrow
    pad_ref[H + 1:H + 2, :, :] = zrow
    pad_ref[1:H + 1, 0:1, :] = zcol
    pad_ref[1:H + 1, W + 1:W + 2, :] = zcol
    pad_ref[1:H + 1, 1:W + 1, :] = out1.reshape(H, W, P)

    taps = [pad_ref[kh:kh + H, kw:kw + W, :].reshape(HW, P)
            for kh in range(3) for kw in range(3)]
    im2col = jnp.concatenate(taps, axis=-1).astype(jnp.bfloat16)   # (HW, 9P)
    out2 = jnp.dot(im2col, w2_ref[...], preferred_element_type=jnp.float32)
    out2 = jnp.maximum(out2 + b2_ref[...], 0.0)            # (HW, P) f32

    # ---- conv3 (1x1) + bias + residual add + relu --------------------------
    out3 = jnp.dot(out2.astype(jnp.bfloat16), w3_ref[...],
                   preferred_element_type=jnp.float32)
    out3 = out3 + b3_ref[...]
    resid = x_ref[0].reshape(HW, Cout).astype(jnp.float32)  # re-read late
    out = jnp.maximum(out3 + resid, 0.0)                    # (HW, Cout) f32

    o_ref[0] = out.reshape(H, W, Cout).astype(o_ref.dtype)


def bottleneck_pallas(x_nchw, kparams):
    """x_nchw: (N, Cin, H, W) with Cin == 4 * planes. Returns NCHW float32.

    (A NHWC-native caller could skip the two transposes below.)
    """
    w1, b1, w2, b2, w3, b3 = kparams
    N, Cin, H, W = x_nchw.shape
    P = w1.shape[1]
    Cout = 4 * P
    assert Cin == Cout, "stride=1, downsample=None requires inplanes == 4*planes"

    x_nhwc = jnp.transpose(x_nchw, (0, 2, 3, 1)).astype(jnp.bfloat16)

    kernel = functools.partial(_bottleneck_kernel, H=H, W=W, Cin=Cin, P=P)

    out_nhwc = pl.pallas_call(
        kernel,
        out_shape=jax.ShapeDtypeStruct((N, H, W, Cout), jnp.float32),
        grid_spec=pltpu.PrefetchScalarGridSpec(
            num_scalar_prefetch=0,
            grid=(N,),
            in_specs=[
                pl.BlockSpec((1, H, W, Cin), lambda b: (b, 0, 0, 0)),   # x (bf16)
                pl.BlockSpec((Cin, P), lambda b: (0, 0)),               # w1 (bf16)
                pl.BlockSpec((1, P), lambda b: (0, 0)),                 # b1 (f32)
                pl.BlockSpec((9 * P, P), lambda b: (0, 0)),             # w2 im2col (bf16)
                pl.BlockSpec((1, P), lambda b: (0, 0)),                 # b2
                pl.BlockSpec((P, Cout), lambda b: (0, 0)),              # w3 (bf16)
                pl.BlockSpec((1, Cout), lambda b: (0, 0)),              # b3
            ],
            out_specs=pl.BlockSpec((1, H, W, Cout), lambda b: (b, 0, 0, 0)),
            scratch_shapes=[pltpu.VMEM((H + 2, W + 2, P), jnp.float32)],
        ),
        compiler_params=pltpu.CompilerParams(
            dimension_semantics=("parallel",),
            vmem_limit_bytes=32 * 1024 * 1024),
    )(x_nhwc, w1, b1, w2, b2, w3, b3)

    return jnp.transpose(out_nhwc, (0, 3, 1, 2))   # back to NCHW


# ---------------------------------------------------------------------------
# Parameter construction (synthetic, deterministic) + host-side BN folding.
# ---------------------------------------------------------------------------

def make_params(key, inplanes, planes):
    """Raw conv weights + eval-mode BN statistics (PyTorch-equivalent)."""
    Cout = 4 * planes
    ks = jax.random.split(key, 6)

    # conv weights stored as (Cin, Cout) / (kh, kw, Cin, Cout)
    w1 = jax.random.normal(ks[0], (inplanes, planes), jnp.float32) * 0.1
    w2 = jax.random.normal(ks[1], (3, 3, planes, planes), jnp.float32) * 0.1
    w3 = jax.random.normal(ks[2], (planes, Cout), jnp.float32) * 0.1

    def bn_params(k, c):
        k1, k2, k3, k4 = jax.random.split(k, 4)
        gamma = 1.0 + 0.1 * jax.random.normal(k1, (c,), jnp.float32)
        beta = 0.1 * jax.random.normal(k2, (c,), jnp.float32)
        mean = 0.1 * jax.random.normal(k3, (c,), jnp.float32)
        var = jnp.abs(jax.random.normal(k4, (c,), jnp.float32)) + 0.5
        return gamma, beta, mean, var

    return (w1, bn_params(ks[3], planes),
            w2, bn_params(ks[4], planes),
            w3, bn_params(ks[5], Cout))


def prepare_kernel_params(raw, eps=1e-5):
    """Fold BN scale into the conv weights (bf16) and keep an f32 bias."""
    w1, bn1, w2, bn2, w3, bn3 = raw

    def fold(w, bn):
        gamma, beta, mean, var = bn
        scale = gamma / jnp.sqrt(var + eps)          # per output channel
        bias = beta - mean * scale
        return (w * scale).astype(jnp.bfloat16), bias.astype(jnp.float32)

    w1k, b1 = fold(w1, bn1)
    w2k, b2 = fold(w2, bn2)
    w3k, b3 = fold(w3, bn3)
    P = w1k.shape[1]
    w2k = w2k.reshape(9 * P, P)                      # im2col layout (kh,kw,cin)->rows
    return (w1k, b1.reshape(1, -1), w2k, b2.reshape(1, -1),
            w3k, b3.reshape(1, -1))


# ---------------------------------------------------------------------------
# Reference (plain JAX/XLA conv) mirroring the kernel's bf16-operand /
# f32-accumulate numerics, for a tight correctness check.
# ---------------------------------------------------------------------------

def bottleneck_reference(x_nchw, kparams):
    w1, b1, w2, b2, w3, b3 = kparams
    Cin, P = w1.shape
    Cout = 4 * P
    x = jnp.transpose(x_nchw, (0, 2, 3, 1)).astype(jnp.bfloat16)   # NHWC, bf16
    dn = ("NHWC", "HWIO", "NHWC")

    def conv(inp, w_hwio, pad):
        return jax.lax.conv_general_dilated(
            inp.astype(jnp.bfloat16), w_hwio, (1, 1), pad,
            dimension_numbers=dn, preferred_element_type=jnp.float32)

    o = conv(x, w1.reshape(1, 1, Cin, P), "VALID") + b1.reshape(1, 1, 1, -1)
    o = jnp.maximum(o, 0.0)
    o = conv(o, w2.reshape(3, 3, P, P), "SAME") + b2.reshape(1, 1, 1, -1)
    o = jnp.maximum(o, 0.0)
    o = conv(o, w3.reshape(1, 1, P, Cout), "VALID") + b3.reshape(1, 1, 1, -1)
    o = jnp.maximum(o + x.astype(jnp.float32), 0.0)
    return jnp.transpose(o, (0, 3, 1, 2))


if __name__ == "__main__":
    key = jax.random.PRNGKey(0)
    k_x, k_p = jax.random.split(key)

    # Small but TPU-friendly shapes: planes=64 -> inplanes = Cout = 256
    # (lane-dense residual/output), 16x16 spatial, batch 2.
    N, planes, H, W = 2, 64, 16, 16
    inplanes = planes * 4                      # required when downsample=None
    x = jax.random.normal(k_x, (N, inplanes, H, W), jnp.float32)

    raw_params = make_params(k_p, inplanes, planes)
    kparams = prepare_kernel_params(raw_params)

    out = jax.block_until_ready(bottleneck_pallas(x, kparams))
    ref = jax.block_until_ready(bottleneck_reference(x, kparams))

    np.testing.assert_allclose(np.asarray(out), np.asarray(ref),
                               rtol=5e-3, atol=5e-3)

    print("KERNEL_OK")
</pallas_src>

<mosaic_0001>
module attributes {stable_mosaic.version = 11 : i64} {
  func.func @_bottleneck_kernel(%arg0: i32, %arg1: memref<1x16x16x256xbf16, #tpu.memory_space<vmem>>, %arg2: memref<256x64xbf16, #tpu.memory_space<vmem>>, %arg3: memref<1x64xf32, #tpu.memory_space<vmem>>, %arg4: memref<576x64xbf16, #tpu.memory_space<vmem>>, %arg5: memref<1x64xf32, #tpu.memory_space<vmem>>, %arg6: memref<64x256xbf16, #tpu.memory_space<vmem>>, %arg7: memref<1x256xf32, #tpu.memory_space<vmem>>, %arg8: memref<1x16x16x256xf32, #tpu.memory_space<vmem>>, %arg9: memref<18x18x64xf32, #tpu.memory_space<vmem>>) attributes {dimension_semantics = [#tpu.dimension_semantics<parallel>], iteration_bounds = array<i64: 2>, scalar_prefetch = 0 : i64, scratch_operands = 1 : i64, tpu.core_type = #tpu.core_type<tc>, window_params = [{transform_indices = @transform_0, window_bounds = array<i64: 1, 16, 16, 256>}, {pipeline_mode = #tpu.pipeline_mode<synchronous>, transform_indices = @transform_1, window_bounds = array<i64: 256, 64>}, {pipeline_mode = #tpu.pipeline_mode<synchronous>, transform_indices = @transform_2, window_bounds = array<i64: 1, 64>}, {pipeline_mode = #tpu.pipeline_mode<synchronous>, transform_indices = @transform_3, window_bounds = array<i64: 576, 64>}, {pipeline_mode = #tpu.pipeline_mode<synchronous>, transform_indices = @transform_4, window_bounds = array<i64: 1, 64>}, {pipeline_mode = #tpu.pipeline_mode<synchronous>, transform_indices = @transform_5, window_bounds = array<i64: 64, 256>}, {pipeline_mode = #tpu.pipeline_mode<synchronous>, transform_indices = @transform_6, window_bounds = array<i64: 1, 256>}, {transform_indices = @transform_7, window_bounds = array<i64: 1, 16, 16, 256>}]} {
    %c0 = arith.constant 0 : index
    %c0_0 = arith.constant 0 : index
    %c0_1 = arith.constant 0 : index
    %c0_2 = arith.constant 0 : index
    %0 = vector.load %arg1[%c0, %c0_0, %c0_1, %c0_2] : memref<1x16x16x256xbf16, #tpu.memory_space<vmem>>, vector<1x16x16x256xbf16>
    %1 = vector.shape_cast %0 : vector<1x16x16x256xbf16> to vector<16x16x256xbf16>
    %2 = vector.shape_cast %1 : vector<16x16x256xbf16> to vector<256x256xbf16>
    %c0_3 = arith.constant 0 : index
    %c0_4 = arith.constant 0 : index
    %3 = vector.load %arg2[%c0_3, %c0_4] : memref<256x64xbf16, #tpu.memory_space<vmem>>, vector<256x64xbf16>
    %cst = arith.constant dense<0.000000e+00> : vector<256x64xf32>
    %4 = tpu.matmul %2, %3, %cst {dimension_numbers = #tpu.dot_dimension_numbers<[1], [0], [0], [1], [0, 0, 1, 1], [], []>} : vector<256x256xbf16>, vector<256x64xbf16>, vector<256x64xf32> -> vector<256x64xf32>
    %c0_5 = arith.constant 0 : index
    %c0_6 = arith.constant 0 : index
    %5 = vector.load %arg3[%c0_5, %c0_6] : memref<1x64xf32, #tpu.memory_space<vmem>>, vector<1x64xf32>
    %6 = vector.broadcast %5 : vector<1x64xf32> to vector<256x64xf32>
    %7 = arith.addf %4, %6 : vector<256x64xf32>
    %cst_7 = arith.constant 0.000000e+00 : f32
    %8 = vector.broadcast %cst_7 : f32 to vector<256x64xf32>
    %9 = arith.maximumf %7, %8 : vector<256x64xf32>
    %cst_8 = arith.constant 0.000000e+00 : f32
    %10 = vector.broadcast %cst_8 : f32 to vector<1x18x64xf32>
    %cst_9 = arith.constant 0.000000e+00 : f32
    %11 = vector.broadcast %cst_9 : f32 to vector<16x1x64xf32>
    %c0_10 = arith.constant 0 : index
    %c0_11 = arith.constant 0 : index
    %c0_12 = arith.constant 0 : index
    %12 = vector.load %arg9[%c0_10, %c0_11, %c0_12] : memref<18x18x64xf32, #tpu.memory_space<vmem>>, vector<1x18x64xf32>
    tpu.vector_store %arg9[%c0_10, %c0_11, %c0_12], %10 {strides = array<i32>} : memref<18x18x64xf32, #tpu.memory_space<vmem>>, vector<1x18x64xf32>,
    %c17 = arith.constant 17 : index
    %c0_13 = arith.constant 0 : index
    %c0_14 = arith.constant 0 : index
    %13 = vector.load %arg9[%c17, %c0_13, %c0_14] : memref<18x18x64xf32, #tpu.memory_space<vmem>>, vector<1x18x64xf32>
    tpu.vector_store %arg9[%c17, %c0_13, %c0_14], %10 {strides = array<i32>} : memref<18x18x64xf32, #tpu.memory_space<vmem>>, vector<1x18x64xf32>,
    %c1 = arith.constant 1 : index
    %c0_15 = arith.constant 0 : index
    %c0_16 = arith.constant 0 : index
    %14 = vector.load %arg9[%c1, %c0_15, %c0_16] : memref<18x18x64xf32, #tpu.memory_space<vmem>>, vector<16x1x64xf32>
    tpu.vector_store %arg9[%c1, %c0_15, %c0_16], %11 {strides = array<i32>} : memref<18x18x64xf32, #tpu.memory_space<vmem>>, vector<16x1x64xf32>,
    %c1_17 = arith.constant 1 : index
    %c17_18 = arith.constant 17 : index
    %c0_19 = arith.constant 0 : index
    %15 = vector.load %arg9[%c1_17, %c17_18, %c0_19] : memref<18x18x64xf32, #tpu.memory_space<vmem>>, vector<16x1x64xf32>
    tpu.vector_store %arg9[%c1_17, %c17_18, %c0_19], %11 {strides = array<i32>} : memref<18x18x64xf32, #tpu.memory_space<vmem>>, vector<16x1x64xf32>,
    %16 = vector.shape_cast %9 : vector<256x64xf32> to vector<16x16x64xf32>
    %c1_20 = arith.constant 1 : index
    %c1_21 = arith.constant 1 : index
    %c0_22 = arith.constant 0 : index
    %17 = vector.load %arg9[%c1_20, %c1_21, %c0_22] : memref<18x18x64xf32, #tpu.memory_space<vmem>>, vector<16x16x64xf32>
    tpu.vector_store %arg9[%c1_20, %c1_21, %c0_22], %16 {strides = array<i32>} : memref<18x18x64xf32, #tpu.memory_space<vmem>>, vector<16x16x64xf32>,
    %c0_23 = arith.constant 0 : index
    %c0_24 = arith.constant 0 : index
    %c0_25 = arith.constant 0 : index
    %18 = vector.load %arg9[%c0_23, %c0_24, %c0_25] : memref<18x18x64xf32, #tpu.memory_space<vmem>>, vector<16x16x64xf32>
    %19 = vector.shape_cast %18 : vector<16x16x64xf32> to vector<256x64xf32>
    %c0_26 = arith.constant 0 : index
    %c1_27 = arith.constant 1 : index
    %c0_28 = arith.constant 0 : index
    %20 = vector.load %arg9[%c0_26, %c1_27, %c0_28] : memref<18x18x64xf32, #tpu.memory_space<vmem>>, vector<16x16x64xf32>
    %21 = vector.shape_cast %20 : vector<16x16x64xf32> to vector<256x64xf32>
    %c0_29 = arith.constant 0 : index
    %c2 = arith.constant 2 : index
    %c0_30 = arith.constant 0 : index
    %22 = vector.load %arg9[%c0_29, %c2, %c0_30] : memref<18x18x64xf32, #tpu.memory_space<vmem>>, vector<16x16x64xf32>
    %23 = vector.shape_cast %22 : vector<16x16x64xf32> to vector<256x64xf32>
    %c1_31 = arith.constant 1 : index
    %c0_32 = arith.constant 0 : index
    %c0_33 = arith.constant 0 : index
    %24 = vector.load %arg9[%c1_31, %c0_32, %c0_33] : memref<18x18x64xf32, #tpu.memory_space<vmem>>, vector<16x16x64xf32>
    %25 = vector.shape_cast %24 : vector<16x16x64xf32> to vector<256x64xf32>
    %c1_34 = arith.constant 1 : index
    %c1_35 = arith.constant 1 : index
    %c0_36 = arith.constant 0 : index
    %26 = vector.load %arg9[%c1_34, %c1_35, %c0_36] : memref<18x18x64xf32, #tpu.memory_space<vmem>>, vector<16x16x64xf32>
    %27 = vector.shape_cast %26 : vector<16x16x64xf32> to vector<256x64xf32>
    %c1_37 = arith.constant 1 : index
    %c2_38 = arith.constant 2 : index
    %c0_39 = arith.constant 0 : index
    %28 = vector.load %arg9[%c1_37, %c2_38, %c0_39] : memref<18x18x64xf32, #tpu.memory_space<vmem>>, vector<16x16x64xf32>
    %29 = vector.shape_cast %28 : vector<16x16x64xf32> to vector<256x64xf32>
    %c2_40 = arith.constant 2 : index
    %c0_41 = arith.constant 0 : index
    %c0_42 = arith.constant 0 : index
    %30 = vector.load %arg9[%c2_40, %c0_41, %c0_42] : memref<18x18x64xf32, #tpu.memory_space<vmem>>, vector<16x16x64xf32>
    %31 = vector.shape_cast %30 : vector<16x16x64xf32> to vector<256x64xf32>
    %c2_43 = arith.constant 2 : index
    %c1_44 = arith.constant 1 : index
    %c0_45 = arith.constant 0 : index
    %32 = vector.load %arg9[%c2_43, %c1_44, %c0_45] : memref<18x18x64xf32, #tpu.memory_space<vmem>>, vector<16x16x64xf32>
    %33 = vector.shape_cast %32 : vector<16x16x64xf32> to vector<256x64xf32>
    %c2_46 = arith.constant 2 : index
    %c2_47 = arith.constant 2 : index
    %c0_48 = arith.constant 0 : index
    %34 = vector.load %arg9[%c2_46, %c2_47, %c0_48] : memref<18x18x64xf32, #tpu.memory_space<vmem>>, vector<16x16x64xf32>
    %35 = vector.shape_cast %34 : vector<16x16x64xf32> to vector<256x64xf32>
    %36 = tpu.concatenate %19, %21, %23, %25, %27, %29, %31, %33, %35 in 1 : vector<256x64xf32>, vector<256x64xf32>, vector<256x64xf32>, vector<256x64xf32>, vector<256x64xf32>, vector<256x64xf32>, vector<256x64xf32>, vector<256x64xf32>, vector<256x64xf32> -> vector<256x576xf32>
    %37 = arith.truncf %36 : vector<256x576xf32> to vector<256x576xbf16>
    %c0_49 = arith.constant 0 : index
    %c0_50 = arith.constant 0 : index
    %38 = vector.load %arg4[%c0_49, %c0_50] : memref<576x64xbf16, #tpu.memory_space<vmem>>, vector<576x64xbf16>
    %cst_51 = arith.constant dense<0.000000e+00> : vector<256x64xf32>
    %39 = tpu.matmul %37, %38, %cst_51 {dimension_numbers = #tpu.dot_dimension_numbers<[1], [0], [0], [1], [0, 0, 1, 1], [], []>} : vector<256x576xbf16>, vector<576x64xbf16>, vector<256x64xf32> -> vector<256x64xf32>
    %c0_52 = arith.constant 0 : index
    %c0_53 = arith.constant 0 : index
    %40 = vector.load %arg5[%c0_52, %c0_53] : memref<1x64xf32, #tpu.memory_space<vmem>>, vector<1x64xf32>
    %41 = vector.broadcast %40 : vector<1x64xf32> to vector<256x64xf32>
    %42 = arith.addf %39, %41 : vector<256x64xf32>
    %cst_54 = arith.constant 0.000000e+00 : f32
    %43 = vector.broadcast %cst_54 : f32 to vector<256x64xf32>
    %44 = arith.maximumf %42, %43 : vector<256x64xf32>
    %45 = arith.truncf %44 : vector<256x64xf32> to vector<256x64xbf16>
    %c0_55 = arith.constant 0 : index
    %c0_56 = arith.constant 0 : index
    %46 = vector.load %arg6[%c0_55, %c0_56] : memref<64x256xbf16, #tpu.memory_space<vmem>>, vector<64x256xbf16>
    %cst_57 = arith.constant dense<0.000000e+00> : vector<256x256xf32>
    %47 = tpu.matmul %45, %46, %cst_57 {dimension_numbers = #tpu.dot_dimension_numbers<[1], [0], [0], [1], [0, 0, 1, 1], [], []>} : vector<256x64xbf16>, vector<64x256xbf16>, vector<256x256xf32> -> vector<256x256xf32>
    %c0_58 = arith.constant 0 : index
    %c0_59 = arith.constant 0 : index
    %48 = vector.load %arg7[%c0_58, %c0_59] : memref<1x256xf32, #tpu.memory_space<vmem>>, vector<1x256xf32>
    %49 = vector.broadcast %48 : vector<1x256xf32> to vector<256x256xf32>
    %50 = arith.addf %47, %49 : vector<256x256xf32>
    %c0_60 = arith.constant 0 : index
    %c0_61 = arith.constant 0 : index
    %c0_62 = arith.constant 0 : index
    %c0_63 = arith.constant 0 : index
    %51 = vector.load %arg1[%c0_60, %c0_61, %c0_62, %c0_63] : memref<1x16x16x256xbf16, #tpu.memory_space<vmem>>, vector<1x16x16x256xbf16>
    %52 = vector.shape_cast %51 : vector<1x16x16x256xbf16> to vector<16x16x256xbf16>
    %53 = vector.shape_cast %52 : vector<16x16x256xbf16> to vector<256x256xbf16>
    %54 = arith.extf %53 : vector<256x256xbf16> to vector<256x256xf32>
    %55 = arith.addf %50, %54 : vector<256x256xf32>
    %cst_64 = arith.constant 0.000000e+00 : f32
    %56 = vector.broadcast %cst_64 : f32 to vector<256x256xf32>
    %57 = arith.maximumf %55, %56 : vector<256x256xf32>
    %58 = vector.shape_cast %57 : vector<256x256xf32> to vector<16x16x256xf32>
    %c0_65 = arith.constant 0 : index
    %c0_66 = arith.constant 0 : index
    %c0_67 = arith.constant 0 : index
    %c0_68 = arith.constant 0 : index
    %59 = vector.load %arg8[%c0_65, %c0_66, %c0_67, %c0_68] : memref<1x16x16x256xf32, #tpu.memory_space<vmem>>, vector<1x16x16x256xf32>
    %60 = vector.shape_cast %59 : vector<1x16x16x256xf32> to vector<16x16x256xf32>
    %61 = vector.shape_cast %58 : vector<16x16x256xf32> to vector<1x16x16x256xf32>
    tpu.vector_store %arg8[%c0_65, %c0_66, %c0_67, %c0_68], %61 {strides = array<i32>} : memref<1x16x16x256xf32, #tpu.memory_space<vmem>>, vector<1x16x16x256xf32>,
    return
  }
  func.func @transform_0(%arg0: i32) -> (i32, i32, i32, i32) {
    %c0_i32 = arith.constant 0 : i32
    %c0_i32_0 = arith.constant 0 : i32
    %c0_i32_1 = arith.constant 0 : i32
    %c0_i32_2 = arith.constant 0 : i32
    return %arg0, %c0_i32, %c0_i32_0, %c0_i32_1 : i32, i32, i32, i32
  }
  func.func @transform_1(%arg0: i32) -> (i32, i32) {
    %c0_i32 = arith.constant 0 : i32
    %c0_i32_0 = arith.constant 0 : i32
    %c0_i32_1 = arith.constant 0 : i32
    return %c0_i32, %c0_i32_0 : i32, i32
  }
  func.func @transform_2(%arg0: i32) -> (i32, i32) {
    %c0_i32 = arith.constant 0 : i32
    %c0_i32_0 = arith.constant 0 : i32
    %c0_i32_1 = arith.constant 0 : i32
    return %c0_i32, %c0_i32_0 : i32, i32
  }
  func.func @transform_3(%arg0: i32) -> (i32, i32) {
    %c0_i32 = arith.constant 0 : i32
    %c0_i32_0 = arith.constant 0 : i32
    %c0_i32_1 = arith.constant 0 : i32
    return %c0_i32, %c0_i32_0 : i32, i32
  }
  func.func @transform_4(%arg0: i32) -> (i32, i32) {
    %c0_i32 = arith.constant 0 : i32
    %c0_i32_0 = arith.constant 0 : i32
    %c0_i32_1 = arith.constant 0 : i32
    return %c0_i32, %c0_i32_0 : i32, i32
  }
  func.func @transform_5(%arg0: i32) -> (i32, i32) {
    %c0_i32 = arith.constant 0 : i32
    %c0_i32_0 = arith.constant 0 : i32
    %c0_i32_1 = arith.constant 0 : i32
    return %c0_i32, %c0_i32_0 : i32, i32
  }
  func.func @transform_6(%arg0: i32) -> (i32, i32) {
    %c0_i32 = arith.constant 0 : i32
    %c0_i32_0 = arith.constant 0 : i32
    %c0_i32_1 = arith.constant 0 : i32
    return %c0_i32, %c0_i32_0 : i32, i32
  }
  func.func @transform_7(%arg0: i32) -> (i32, i32, i32, i32) {
    %c0_i32 = arith.constant 0 : i32
    %c0_i32_0 = arith.constant 0 : i32
    %c0_i32_1 = arith.constant 0 : i32
    %c0_i32_2 = arith.constant 0 : i32
    return %arg0, %c0_i32, %c0_i32_0, %c0_i32_1 : i32, i32, i32, i32
  }
}

</mosaic_0001>

<llo_original>
// kernel: tpu_custom_call.1
$region0: #{tpu_custom_call.1}
  #allocation0 [shape = 'u32[]', space=smem, size = 0x4, offset = 0x4, fixed_abs, tag = 'smem constant byte address 0x4 - core index']
  #allocation1 [shape = 'u32[144,128]{1,0:T(1,128)}', space=vmem, size = 0x12000, scoped, tag = 'internal scratch']
  #allocation2 [shape = 'f32[18,18,64]{2,1,0:T(8,128)}', space=vmem, size = 0x36000, scoped, tag = 'scratch operand']
  %s0 = inlined_call_operand.vmem [shape: bf16[2,16,16,256], index: 0, kind: input, shape index: {}]
  %s1 = inlined_call_operand.vmem [shape: bf16[256,64], index: 1, kind: input, shape index: {}]
  %s2 = inlined_call_operand.vmem [shape: f32[1,64], index: 2, kind: input, shape index: {}]
  %s3 = inlined_call_operand.vmem [shape: bf16[576,64], index: 3, kind: input, shape index: {}]
  %s4 = inlined_call_operand.vmem [shape: f32[1,64], index: 4, kind: input, shape index: {}]
  %s5 = inlined_call_operand.vmem [shape: bf16[64,256], index: 5, kind: input, shape index: {}]
  %s6 = inlined_call_operand.vmem [shape: f32[1,256], index: 6, kind: input, shape index: {}]
  %s7 = inlined_call_operand.hbm [shape: f32[2,16,16,256], index: 7, kind: output, shape index: {}]
  %s8 = sld [smem:[#allocation0]]
  $region61: #{tpu_custom_call.1} parent=0
    _
  %s10 = ssub.s32 1, %s8
  %s11 = scalar_select 0, %s10, %s8
  $region1: #{tpu_custom_call.1} parent=0
    #allocation3 [shape = 'u8[524288]{0}', space=vmem, size = 0x80000, scoped, tag = 'output window, operand 0']
    #allocation4 [shape = 's32[2]{0}', space=sflag, size = 0x8, scoped, tag = 'scoped memory for tpu_custom_call.1']
    %12 = vsyncpa [#allocation4], 0
    %s13 = scalar_lea.sflag [#allocation4], 1
    %14 = vsyncpa %s13, 0
    loop: start=0, step=1, limit=4
    $region2: #{tpu_custom_call.1} parent=1 // loop_pre_header
      _
    $region3: #{tpu_custom_call.1} parent=1 // loop_header
      %s16 = sphi 0, %s20
      %p17 = scmp.ge.s32.totalorder %s16, 4
      %s26 = sphi 0, %s28
      %s29 = sphi 0, %s26
      %s30 = sphi 0, %s29
      %s46 = sphi 0, %s30
      %s50 = sphi 0, %s50
      %s52 = sphi 0, %s50
      %s53 = sphi 0, %s52
      %s67 = sphi 0, %s53
      %s71 = sphi 0, %s71
      %s73 = sphi 0, %s71
      %s74 = sphi 0, %s73
      %s88 = sphi 0, %s74
      %s92 = sphi 0, %s92
      %s94 = sphi 0, %s92
      %s95 = sphi 0, %s94
      %s109 = sphi 0, %s95
      %s113 = sphi 0, %s113
      %s115 = sphi 0, %s113
      %s116 = sphi 0, %s115
      %s130 = sphi 0, %s116
      %s134 = sphi 0, %s134
      %s136 = sphi 0, %s134
      %s137 = sphi 0, %s136
      %s151 = sphi 0, %s137
      %s155 = sphi 0, %s155
      %s157 = sphi 0, %s155
      %s158 = sphi 0, %s157
      %s172 = sphi 0, %s158
      %s178 = sphi 0, %s180
      %s181 = sphi 0, %s178
      %s182 = sphi 0, %s181
      %s198 = sphi 0, %s182
    $region4: #{tpu_custom_call.1} parent=1 // loop_header_branch
      %19 = sbr.rel (%p17) target = $region8
    $region5: #{tpu_custom_call.1} parent=1 // loop_body
      %s21 = ssub.s32 %s16, 1
      %s22 = ssub.s32 %s16, 2
      %s23 = sadd.s32 %s16, 1
      %s24 = ssub.s32 %s16, %s23
      %p25 = scmp.eq.s32.totalorder %s24, 0
      %s27 = sadd.s32 %s26, 1
      %s28 = scalar_select %p25, %s26, %s27
      %p31 = pneg %p25
      %p32 = scmp.eq.s32.totalorder %s16, 1
      %p33 = por %p31, %p32
      %p34 = scmp.ne.s32.totalorder %s26, %s29
      %p35 = scmp.eq.s32.totalorder %s16, 0
      %p36 = por %p34, %p35
      %p37 = scmp.ne.s32.totalorder %s26, %s29
      %p38 = scmp.eq.s32.totalorder %s21, 1
      %p39 = por %p37, %p38
      %p40 = scmp.ne.s32.totalorder %s29, %s30
      %p41 = scmp.eq.s32.totalorder %s21, 0
      %p42 = por %p40, %p41
      %p43 = scmp.ne.s32.totalorder %s29, %s30
      %p44 = scmp.eq.s32.totalorder %s22, 1
      %p45 = por %p43, %p44
      %p47 = scmp.ne.s32.totalorder %s30, %s46
      %p48 = scmp.eq.s32.totalorder %s22, 0
      %p49 = por %p47, %p48
      %s51 = sadd.s32 %s50, 1
      %p54 = scmp.eq.s32.totalorder %s16, 1
      %p55 = scmp.ne.s32.totalorder %s50, %s52
      %p56 = scmp.eq.s32.totalorder %s16, 0
      %p57 = por %p55, %p56
      %p58 = scmp.ne.s32.totalorder %s50, %s52
      %p59 = scmp.eq.s32.totalorder %s21, 1
      %p60 = por %p58, %p59
      %p61 = scmp.ne.s32.totalorder %s52, %s53
      %p62 = scmp.eq.s32.totalorder %s21, 0
      %p63 = por %p61, %p62
      %p64 = scmp.ne.s32.totalorder %s52, %s53
      %p65 = scmp.eq.s32.totalorder %s22, 1
      %p66 = por %p64, %p65
      %p68 = scmp.ne.s32.totalorder %s53, %s67
      %p69 = scmp.eq.s32.totalorder %s22, 0
      %p70 = por %p68, %p69
      %s72 = sadd.s32 %s71, 1
      %p75 = scmp.eq.s32.totalorder %s16, 1
      %p76 = scmp.ne.s32.totalorder %s71, %s73
      %p77 = scmp.eq.s32.totalorder %s16, 0
      %p78 = por %p76, %p77
      %p79 = scmp.ne.s32.totalorder %s71, %s73
      %p80 = scmp.eq.s32.totalorder %s21, 1
      %p81 = por %p79, %p80
      %p82 = scmp.ne.s32.totalorder %s73, %s74
      %p83 = scmp.eq.s32.totalorder %s21, 0
      %p84 = por %p82, %p83
      %p85 = scmp.ne.s32.totalorder %s73, %s74
      %p86 = scmp.eq.s32.totalorder %s22, 1
      %p87 = por %p85, %p86
      %p89 = scmp.ne.s32.totalorder %s74, %s88
      %p90 = scmp.eq.s32.totalorder %s22, 0
      %p91 = por %p89, %p90
      %s93 = sadd.s32 %s92, 1
      %p96 = scmp.eq.s32.totalorder %s16, 1
      %p97 = scmp.ne.s32.totalorder %s92, %s94
      %p98 = scmp.eq.s32.totalorder %s16, 0
      %p99 = por %p97, %p98
      %p100 = scmp.ne.s32.totalorder %s92, %s94
      %p101 = scmp.eq.s32.totalorder %s21, 1
      %p102 = por %p100, %p101
      %p103 = scmp.ne.s32.totalorder %s94, %s95
      %p104 = scmp.eq.s32.totalorder %s21, 0
      %p105 = por %p103, %p104
      %p106 = scmp.ne.s32.totalorder %s94, %s95
      %p107 = scmp.eq.s32.totalorder %s22, 1
      %p108 = por %p106, %p107
      %p110 = scmp.ne.s32.totalorder %s95, %s109
      %p111 = scmp.eq.s32.totalorder %s22, 0
      %p112 = por %p110, %p111
      %s114 = sadd.s32 %s113, 1
      %p117 = scmp.eq.s32.totalorder %s16, 1
      %p118 = scmp.ne.s32.totalorder %s113, %s115
      %p119 = scmp.eq.s32.totalorder %s16, 0
      %p120 = por %p118, %p119
      %p121 = scmp.ne.s32.totalorder %s113, %s115
      %p122 = scmp.eq.s32.totalorder %s21, 1
      %p123 = por %p121, %p122
      %p124 = scmp.ne.s32.totalorder %s115, %s116
      %p125 = scmp.eq.s32.totalorder %s21, 0
      %p126 = por %p124, %p125
      %p127 = scmp.ne.s32.totalorder %s115, %s116
      %p128 = scmp.eq.s32.totalorder %s22, 1
      %p129 = por %p127, %p128
      %p131 = scmp.ne.s32.totalorder %s116, %s130
      %p132 = scmp.eq.s32.totalorder %s22, 0
      %p133 = por %p131, %p132
      %s135 = sadd.s32 %s134, 1
      %p138 = scmp.eq.s32.totalorder %s16, 1
      %p139 = scmp.ne.s32.totalorder %s134, %s136
      %p140 = scmp.eq.s32.totalorder %s16, 0
      %p141 = por %p139, %p140
      %p142 = scmp.ne.s32.totalorder %s134, %s136
      %p143 = scmp.eq.s32.totalorder %s21, 1
      %p144 = por %p142, %p143
      %p145 = scmp.ne.s32.totalorder %s136, %s137
      %p146 = scmp.eq.s32.totalorder %s21, 0
      %p147 = por %p145, %p146
      %p148 = scmp.ne.s32.totalorder %s136, %s137
      %p149 = scmp.eq.s32.totalorder %s22, 1
      %p150 = por %p148, %p149
      %p152 = scmp.ne.s32.totalorder %s137, %s151
      %p153 = scmp.eq.s32.totalorder %s22, 0
      %p154 = por %p152, %p153
      %s156 = sadd.s32 %s155, 1
      %p159 = scmp.eq.s32.totalorder %s16, 1
      %p160 = scmp.ne.s32.totalorder %s155, %s157
      %p161 = scmp.eq.s32.totalorder %s16, 0
      %p162 = por %p160, %p161
      %p163 = scmp.ne.s32.totalorder %s155, %s157
      %p164 = scmp.eq.s32.totalorder %s21, 1
      %p165 = por %p163, %p164
      %p166 = scmp.ne.s32.totalorder %s157, %s158
      %p167 = scmp.eq.s32.totalorder %s21, 0
      %p168 = por %p166, %p167
      %p169 = scmp.ne.s32.totalorder %s157, %s158
      %p170 = scmp.eq.s32.totalorder %s22, 1
      %p171 = por %p169, %p170
      %p173 = scmp.ne.s32.totalorder %s158, %s172
      %p174 = scmp.eq.s32.totalorder %s22, 0
      %p175 = por %p173, %p174
      %s176 = ssub.s32 %s16, %s23
      %p177 = scmp.eq.s32.totalorder %s176, 0
      %s179 = sadd.s32 %s178, 1
      %s180 = scalar_select %p177, %s178, %s179
      %p183 = pneg %p177
      %p184 = scmp.eq.s32.totalorder %s16, 1
      %p185 = por %p183, %p184
      %p186 = scmp.ne.s32.totalorder %s178, %s181
      %p187 = scmp.eq.s32.totalorder %s16, 0
      %p188 = por %p186, %p187
      %p189 = scmp.ne.s32.totalorder %s178, %s181
      %p190 = scmp.eq.s32.totalorder %s21, 1
      %p191 = por %p189, %p190
      %p192 = scmp.ne.s32.totalorder %s181, %s182
      %p193 = scmp.eq.s32.totalorder %s21, 0
      %p194 = por %p192, %p193
      %p195 = scmp.ne.s32.totalorder %s181, %s182
      %p196 = scmp.eq.s32.totalorder %s22, 1
      %p197 = por %p195, %p196
      %p199 = scmp.ne.s32.totalorder %s182, %s198
      %p200 = scmp.eq.s32.totalorder %s22, 0
      %p201 = por %p199, %p200
      %p202 = scmp.le.s32.totalorder 1, %s16
      %p203 = scmp.lt.s32.totalorder %s16, 3
      %p204 = pnand %p202, %p203
      %p205 = pneg %p204
      // Predicated region
      $region9: #{tpu_custom_call.1} parent=5 // pred_check
        _
      $region10: #{tpu_custom_call.1} parent=5 // pred_check_branch
        %207 = sbr.rel (%p204) target = $region12
      $region11: #{tpu_custom_call.1} parent=5 // pred_region
        %s208 = ssub.s32 %s16, 1
        // Predicated region
        $region13: #{tpu_custom_call.1} parent=11 // pred_check
          %p209 = pneg %p63
        $region14: #{tpu_custom_call.1} parent=11 // pred_check_branch
          %211 = sbr.rel (%p209) target = $region16
        $region15: #{tpu_custom_call.1} parent=11 // pred_region
          _
        $region16: #{tpu_custom_call.1} parent=11 // pred_fallthru
          _
        // Predicated region
        $region17: #{tpu_custom_call.1} parent=11 // pred_check
          %p212 = pneg %p84
        $region18: #{tpu_custom_call.1} parent=11 // pred_check_branch
          %214 = sbr.rel (%p212) target = $region20
        $region19: #{tpu_custom_call.1} parent=11 // pred_region
          _
        $region20: #{tpu_custom_call.1} parent=11 // pred_fallthru
          _
        // Predicated region
        $region21: #{tpu_custom_call.1} parent=11 // pred_check
          %p215 = pneg %p105
        $region22: #{tpu_custom_call.1} parent=11 // pred_check_branch
          %217 = sbr.rel (%p215) target = $region24
        $region23: #{tpu_custom_call.1} parent=11 // pred_region
          _
        $region24: #{tpu_custom_call.1} parent=11 // pred_fallthru
          _
        // Predicated region
        $region25: #{tpu_custom_call.1} parent=11 // pred_check
          %p218 = pneg %p126
        $region26: #{tpu_custom_call.1} parent=11 // pred_check_branch
          %220 = sbr.rel (%p218) target = $region28
        $region27: #{tpu_custom_call.1} parent=11 // pred_region
          _
        $region28: #{tpu_custom_call.1} parent=11 // pred_fallthru
          _
        // Predicated region
        $region29: #{tpu_custom_call.1} parent=11 // pred_check
          %p221 = pneg %p147
        $region30: #{tpu_custom_call.1} parent=11 // pred_check_branch
          %223 = sbr.rel (%p221) target = $region32
        $region31: #{tpu_custom_call.1} parent=11 // pred_region
          _
        $region32: #{tpu_custom_call.1} parent=11 // pred_fallthru
          _
        // Predicated region
        $region33: #{tpu_custom_call.1} parent=11 // pred_check
          %p224 = pneg %p168
        $region34: #{tpu_custom_call.1} parent=11 // pred_check_branch
          %226 = sbr.rel (%p224) target = $region36
        $region35: #{tpu_custom_call.1} parent=11 // pred_region
          _
        $region36: #{tpu_custom_call.1} parent=11 // pred_fallthru
          _
      $region12: #{tpu_custom_call.1} parent=5 // pred_fallthru
        _
      %p227 = scmp.lt.s32.totalorder %s16, 2
      // Predicated region
      $region37: #{tpu_custom_call.1} parent=5 // pred_check
        %p228 = pneg %p227
      $region38: #{tpu_custom_call.1} parent=5 // pred_check_branch
        %230 = sbr.rel (%p228) target = $region40
      $region39: #{tpu_custom_call.1} parent=5 // pred_region
        // Predicated region
        $region41: #{tpu_custom_call.1} parent=39 // pred_check
          %p231 = pneg %p36
        $region42: #{tpu_custom_call.1} parent=39 // pred_check_branch
          %233 = sbr.rel (%p231) target = $region44
        $region43: #{tpu_custom_call.1} parent=39 // pred_region
          %p234 = scmp.lt.s32.totalorder %s16, 1
          %s235 = scalar_select %p234, %s16, 1
          %s236 = smul.addr %s235, 64
          %s237 = smul.addr %s236, 4
          %s238 = scalar_lea.vmem %s0, %s237
        $region44: #{tpu_custom_call.1} parent=39 // pred_fallthru
          _
      $region40: #{tpu_custom_call.1} parent=5 // pred_fallthru
        _
      %p239 = scmp.le.s32.totalorder 1, %s16
      %p240 = scmp.lt.s32.totalorder %s16, 3
      %p241 = pnand %p239, %p240
      %p242 = pneg %p241
      // Predicated region
      $region45: #{tpu_custom_call.1} parent=5 // pred_check
        _
      $region46: #{tpu_custom_call.1} parent=5 // pred_check_branch
        %244 = sbr.rel (%p241) target = $region48
      $region47: #{tpu_custom_call.1} parent=5 // pred_region
        %s245 = ssub.s32 %s16, 1
        %p246 = scmp.lt.s32.totalorder %s21, 1
        %s247 = scalar_select %p246, %s21, 1
        %s248 = smul.addr %s247, 64
        %s249 = smul.addr %s248, 4
        %s250 = scalar_lea.vmem %s0, %s249
        %p251 = pneg %p42
        %p252 = pneg %p39
        %p253 = pneg %p63
        %p254 = pneg %p60
        %p255 = pneg %p84
        %p256 = pneg %p81
        %p257 = pneg %p105
        %p258 = pneg %p102
        %p259 = pneg %p126
        %p260 = pneg %p123
        %p261 = pneg %p147
        %p262 = pneg %p144
        %p263 = pneg %p168
        %p264 = pneg %p165
        %p265 = pneg %p194
        %p266 = pneg %p191
        %s267 = sand.u32 %s181, 1
        %s268 = scalar_lea.sflag [#allocation4], %s267
        %s269 = sand.u32 %s181, 1
        %s270 = smul.addr %s269, 512
        %s271 = scalar_lea.vmem [#allocation3], %s270
        %p272 = scmp.lt.s32.totalorder %s21, 1
        %s273 = scalar_select %p272, %s21, 1
        %s274 = smul.addr %s273, 64
        %s275 = smul.addr %s274, 4
        %s276 = scalar_lea.vmem %s0, %s275
        %v278 = vld [vmem:[%s276] sm:$0xff]
        %v279 = vld [vmem:[%s276 + $0x8] sm:$0xff]
        %v280 = vld [vmem:[%s276 + $0x10] sm:$0xff]
        %v281 = vld [vmem:[%s276 + $0x18] sm:$0xff]
        %v282 = vld [vmem:[%s276 + $0x20] sm:$0xff]
        %v283 = vld [vmem:[%s276 + $0x28] sm:$0xff]
        %v284 = vld [vmem:[%s276 + $0x30] sm:$0xff]
        %v285 = vld [vmem:[%s276 + $0x38] sm:$0xff]
        %v286 = vld [vmem:[%s276 + $0x40] sm:$0xff]
        %v287 = vld [vmem:[%s276 + $0x48] sm:$0xff]
        %v288 = vld [vmem:[%s276 + $0x50] sm:$0xff]
        %v289 = vld [vmem:[%s276 + $0x58] sm:$0xff]
        %v290 = vld [vmem:[%s276 + $0x60] sm:$0xff]
        %v291 = vld [vmem:[%s276 + $0x68] sm:$0xff]
        %v292 = vld [vmem:[%s276 + $0x70] sm:$0xff]
        %v293 = vld [vmem:[%s276 + $0x78] sm:$0xff]
        %v294 = vld [vmem:[%s276 + $0x80] sm:$0xff]
        %v295 = vld [vmem:[%s276 + $0x88] sm:$0xff]
        %v296 = vld [vmem:[%s276 + $0x90] sm:$0xff]
        %v297 = vld [vmem:[%s276 + $0x98] sm:$0xff]
        %v298 = vld [vmem:[%s276 + $0xa0] sm:$0xff]
        %v299 = vld [vmem:[%s276 + $0xa8] sm:$0xff]
        %v300 = vld [vmem:[%s276 + $0xb0] sm:$0xff]
        %v301 = vld [vmem:[%s276 + $0xb8] sm:$0xff]
        %v302 = vld [vmem:[%s276 + $0xc0] sm:$0xff]
        %v303 = vld [vmem:[%s276 + $0xc8] sm:$0xff]
        %v304 = vld [vmem:[%s276 + $0xd0] sm:$0xff]
        %v305 = vld [vmem:[%s276 + $0xd8] sm:$0xff]
        %v306 = vld [vmem:[%s276 + $0xe0] sm:$0xff]
        %v307 = vld [vmem:[%s276 + $0xe8] sm:$0xff]
        %v308 = vld [vmem:[%s276 + $0xf0] sm:$0xff]
        %v309 = vld [vmem:[%s276 + $0xf8] sm:$0xff]
        %v310 = vld [vmem:[%s1] sm:$0xf]
        %v311 = vld [vmem:[%s1 + $0x4] sm:$0xf]
        %v312 = vld [vmem:[%s1 + $0x8] sm:$0xf]
        %v313 = vld [vmem:[%s1 + $0xc] sm:$0xf]
        %v314 = vld [vmem:[%s1 + $0x10] sm:$0xf]
        %v315 = vld [vmem:[%s1 + $0x14] sm:$0xf]
        %v316 = vld [vmem:[%s1 + $0x18] sm:$0xf]
        %v317 = vld [vmem:[%s1 + $0x1c] sm:$0xf]
        %v318 = vld [vmem:[%s1 + $0x20] sm:$0xf]
        %v319 = vld [vmem:[%s1 + $0x24] sm:$0xf]
        %v320 = vld [vmem:[%s1 + $0x28] sm:$0xf]
        %v321 = vld [vmem:[%s1 + $0x2c] sm:$0xf]
        %v322 = vld [vmem:[%s1 + $0x30] sm:$0xf]
        %v323 = vld [vmem:[%s1 + $0x34] sm:$0xf]
        %v324 = vld [vmem:[%s1 + $0x38] sm:$0xf]
        %v325 = vld [vmem:[%s1 + $0x3c] sm:$0xf]
        %v326 = vld [vmem:[%s1 + $0x40] sm:$0xf]
        %v327 = vld [vmem:[%s1 + $0x44] sm:$0xf]
        %v328 = vld [vmem:[%s1 + $0x48] sm:$0xf]
        %v329 = vld [vmem:[%s1 + $0x4c] sm:$0xf]
        %v330 = vld [vmem:[%s1 + $0x50] sm:$0xf]
        %v331 = vld [vmem:[%s1 + $0x54] sm:$0xf]
        %v332 = vld [vmem:[%s1 + $0x58] sm:$0xf]
        %v333 = vld [vmem:[%s1 + $0x5c] sm:$0xf]
        %v334 = vld [vmem:[%s1 + $0x60] sm:$0xf]
        %v335 = vld [vmem:[%s1 + $0x64] sm:$0xf]
        %v336 = vld [vmem:[%s1 + $0x68] sm:$0xf]
        %v337 = vld [vmem:[%s1 + $0x6c] sm:$0xf]
        %v338 = vld [vmem:[%s1 + $0x70] sm:$0xf]
        %v339 = vld [vmem:[%s1 + $0x74] sm:$0xf]
        %v340 = vld [vmem:[%s1 + $0x78] sm:$0xf]
        %v341 = vld [vmem:[%s1 + $0x7c] sm:$0xf]
        %v342 = vld [vmem:[%s2] sm:$0x1]
        %v344 = vlaneseq
        %v345 = vshrl.u32 %v344, 7
        %v346 = vsub.s32 0, %v345
        %v347 = vrot.slane %v342, %v346
        %v381 = vunpack.c.l.b16 %v278
        %v382 = vunpack.c.h.b16 %v278
        %v383 = vunpack.c.l.b16 %v279
        %v384 = vunpack.c.h.b16 %v279
        %v385 = vunpack.c.l.b16 %v280
        %v386 = vunpack.c.h.b16 %v280
        %v387 = vunpack.c.l.b16 %v281
        %v388 = vunpack.c.h.b16 %v281
        %v389 = vunpack.c.l.b16 %v282
        %v390 = vunpack.c.h.b16 %v282
        %v391 = vunpack.c.l.b16 %v283
        %v392 = vunpack.c.h.b16 %v283
        %v393 = vunpack.c.l.b16 %v284
        %v394 = vunpack.c.h.b16 %v284
        %v395 = vunpack.c.l.b16 %v285
        %v396 = vunpack.c.h.b16 %v285
        %v397 = vunpack.c.l.b16 %v286
        %v398 = vunpack.c.h.b16 %v286
        %v399 = vunpack.c.l.b16 %v287
        %v400 = vunpack.c.h.b16 %v287
        %v401 = vunpack.c.l.b16 %v288
        %v402 = vunpack.c.h.b16 %v288
        %v403 = vunpack.c.l.b16 %v289
        %v404 = vunpack.c.h.b16 %v289
        %v405 = vunpack.c.l.b16 %v290
        %v406 = vunpack.c.h.b16 %v290
        %v407 = vunpack.c.l.b16 %v291
        %v408 = vunpack.c.h.b16 %v291
        %v409 = vunpack.c.l.b16 %v292
        %v410 = vunpack.c.h.b16 %v292
        %v411 = vunpack.c.l.b16 %v293
        %v412 = vunpack.c.h.b16 %v293
        %v413 = vunpack.c.l.b16 %v294
        %v414 = vunpack.c.h.b16 %v294
        %v415 = vunpack.c.l.b16 %v295
        %v416 = vunpack.c.h.b16 %v295
        %v417 = vunpack.c.l.b16 %v296
        %v418 = vunpack.c.h.b16 %v296
        %v419 = vunpack.c.l.b16 %v297
        %v420 = vunpack.c.h.b16 %v297
        %v421 = vunpack.c.l.b16 %v298
        %v422 = vunpack.c.h.b16 %v298
        %v423 = vunpack.c.l.b16 %v299
        %v424 = vunpack.c.h.b16 %v299
        %v425 = vunpack.c.l.b16 %v300
        %v426 = vunpack.c.h.b16 %v300
        %v427 = vunpack.c.l.b16 %v301
        %v428 = vunpack.c.h.b16 %v301
        %v429 = vunpack.c.l.b16 %v302
        %v430 = vunpack.c.h.b16 %v302
        %v431 = vunpack.c.l.b16 %v303
        %v432 = vunpack.c.h.b16 %v303
        %v433 = vunpack.c.l.b16 %v304
        %v434 = vunpack.c.h.b16 %v304
        %v435 = vunpack.c.l.b16 %v305
        %v436 = vunpack.c.h.b16 %v305
        %v437 = vunpack.c.l.b16 %v306
        %v438 = vunpack.c.h.b16 %v306
        %v439 = vunpack.c.l.b16 %v307
        %v440 = vunpack.c.h.b16 %v307
        %v441 = vunpack.c.l.b16 %v308
        %v442 = vunpack.c.h.b16 %v308
        %v443 = vunpack.c.l.b16 %v309
        %v444 = vunpack.c.h.b16 %v309
        %v445 = vpack.c.b16 %v383, %v381
        %v446 = vpack.c.b16 %v384, %v382
        %v447 = vpack.c.b16 %v387, %v385
        %v448 = vpack.c.b16 %v388, %v386
        %v449 = vpack.c.b16 %v391, %v389
        %v450 = vpack.c.b16 %v392, %v390
        %v451 = vpack.c.b16 %v395, %v393
        %v452 = vpack.c.b16 %v396, %v394
        %v453 = vpack.c.b16 %v399, %v397
        %v454 = vpack.c.b16 %v400, %v398
        %v455 = vpack.c.b16 %v403, %v401
        %v456 = vpack.c.b16 %v404, %v402
        %v457 = vpack.c.b16 %v407, %v405
        %v458 = vpack.c.b16 %v408, %v406
        %v459 = vpack.c.b16 %v411, %v409
        %v460 = vpack.c.b16 %v412, %v410
        %v461 = vpack.c.b16 %v415, %v413
        %v462 = vpack.c.b16 %v416, %v414
        %v463 = vpack.c.b16 %v419, %v417
        %v464 = vpack.c.b16 %v420, %v418
        %v465 = vpack.c.b16 %v423, %v421
        %v466 = vpack.c.b16 %v424, %v422
        %v467 = vpack.c.b16 %v427, %v425
        %v468 = vpack.c.b16 %v428, %v426
        %v469 = vpack.c.b16 %v431, %v429
        %v470 = vpack.c.b16 %v432, %v430
        %v471 = vpack.c.b16 %v435, %v433
        %v472 = vpack.c.b16 %v436, %v434
        %v473 = vpack.c.b16 %v439, %v437
        %v474 = vpack.c.b16 %v440, %v438
        %v475 = vpack.c.b16 %v443, %v441
        %v476 = vpack.c.b16 %v444, %v442
        %v541 = vunpack.c.l.b16 %v310
        %v542 = vunpack.c.l.b16 %v311
        %v543 = vunpack.c.l.b16 %v312
        %v544 = vunpack.c.l.b16 %v313
        %v545 = vunpack.c.l.b16 %v314
        %v546 = vunpack.c.l.b16 %v315
        %v547 = vunpack.c.l.b16 %v316
        %v548 = vunpack.c.l.b16 %v317
        %v549 = vunpack.c.l.b16 %v318
        %v550 = vunpack.c.l.b16 %v319
        %v551 = vunpack.c.l.b16 %v320
        %v552 = vunpack.c.l.b16 %v321
        %v553 = vunpack.c.l.b16 %v322
        %v554 = vunpack.c.l.b16 %v323
        %v555 = vunpack.c.l.b16 %v324
        %v556 = vunpack.c.l.b16 %v325
        %v557 = vunpack.c.l.b16 %v326
        %v558 = vunpack.c.l.b16 %v327
        %v559 = vunpack.c.l.b16 %v328
        %v560 = vunpack.c.l.b16 %v329
        %v561 = vunpack.c.l.b16 %v330
        %v562 = vunpack.c.l.b16 %v331
        %v563 = vunpack.c.l.b16 %v332
        %v564 = vunpack.c.l.b16 %v333
        %v565 = vunpack.c.l.b16 %v334
        %v566 = vunpack.c.l.b16 %v335
        %v567 = vunpack.c.l.b16 %v336
        %v568 = vunpack.c.l.b16 %v337
        %v569 = vunpack.c.l.b16 %v338
        %v570 = vunpack.c.l.b16 %v339
        %v571 = vunpack.c.l.b16 %v340
        %v572 = vunpack.c.l.b16 %v341
        %v573 = vpack.c.b16 %v542, %v541
        %v574 = vpack.c.b16 %v544, %v543
        %v575 = vpack.c.b16 %v546, %v545
        %v576 = vpack.c.b16 %v548, %v547
        %v577 = vpack.c.b16 %v550, %v549
        %v578 = vpack.c.b16 %v552, %v551
        %v579 = vpack.c.b16 %v554, %v553
        %v580 = vpack.c.b16 %v556, %v555
        %v581 = vpack.c.b16 %v558, %v557
        %v582 = vpack.c.b16 %v560, %v559
        %v583 = vpack.c.b16 %v562, %v561
        %v584 = vpack.c.b16 %v564, %v563
        %v585 = vpack.c.b16 %v566, %v565
        %v586 = vpack.c.b16 %v568, %v567
        %v587 = vpack.c.b16 %v570, %v569
        %v588 = vpack.c.b16 %v572, %v571
        %605 = vmatprep.subr.bf16.mxu0 0
        %606 = vmatpush1.bf16.msra.mxu0 %v573
        %607 = vmatprep.subr.bf16.mxu0 0
        %608 = vmatpush1.bf16.msra.mxu0 %v574
        %609 = vmatprep.subr.bf16.mxu0 0
        %610 = vmatpush1.bf16.msra.mxu0 %v575
        %611 = vmatprep.subr.bf16.mxu0 0
        %612 = vmatpush1.bf16.msra.mxu0 %v576
        %613 = vmatprep.subr.bf16.mxu0 0
        %614 = vmatpush1.bf16.msra.mxu0 %v577
        %615 = vmatprep.subr.bf16.mxu0 0
        %616 = vmatpush1.bf16.msra.mxu0 %v578
        %617 = vmatprep.subr.bf16.mxu0 0
        %618 = vmatpush1.bf16.msra.mxu0 %v579
        %619 = vmatprep.subr.bf16.mxu0 0
        %620 = vmatpush1.bf16.msra.mxu0 %v580
        %621 = vmatprep.subr.bf16.mxu0 0
        %622 = vmatpush1.bf16.msra.mxu0 %v581
        %623 = vmatprep.subr.bf16.mxu0 0
        %624 = vmatpush1.bf16.msra.mxu0 %v582
        %625 = vmatprep.subr.bf16.mxu0 0
        %626 = vmatpush1.bf16.msra.mxu0 %v583
        %627 = vmatprep.subr.bf16.mxu0 0
        %628 = vmatpush1.bf16.msra.mxu0 %v584
        %629 = vmatprep.subr.bf16.mxu0 0
        %630 = vmatpush1.bf16.msra.mxu0 %v585
        %631 = vmatprep.subr.bf16.mxu0 0
        %632 = vmatpush1.bf16.msra.mxu0 %v586
        %633 = vmatprep.subr.bf16.mxu0 0
        %634 = vmatpush1.bf16.msra.mxu0 %v587
        %635 = vmatprep.subr.bf16.mxu0 0
        %636 = vmatpush1.bf16.msra.mxu0 %v588
        %637 = vmatprep.mubr.bf16.mxu0 %v446
        %638 = vmatmul.mubr.bf16.gmra.mrb[0].mxu0 %v445
        %v639 = vpop.f32.mrb[0].mxu0
        %v640 = vadd.f32 %v347, %v639
        %v641 = vpop.f32.mrb[0].mxu0
        %v642 = vpop.f32.mrb[0].mxu0
        %v643 = vadd.f32 %v347, %v642
        %v644 = vpop.f32.mrb[0].mxu0
        %645 = vmatprep.mubr.bf16.mxu0 %v448
        %646 = vmatmul.mubr.bf16.gmra.mrb[0].mxu0 %v447
        %v647 = vpop.f32.mrb[0].mxu0
        %v648 = vadd.f32 %v347, %v647
        %v649 = vpop.f32.mrb[0].mxu0
        %v650 = vpop.f32.mrb[0].mxu0
        %v651 = vadd.f32 %v347, %v650
        %v652 = vpop.f32.mrb[0].mxu0
        %653 = vmatprep.mubr.bf16.mxu0 %v450
        %654 = vmatmul.mubr.bf16.gmra.mrb[0].mxu0 %v449
        %v655 = vpop.f32.mrb[0].mxu0
        %v656 = vadd.f32 %v347, %v655
        %v657 = vpop.f32.mrb[0].mxu0
        %v658 = vpop.f32.mrb[0].mxu0
        %v659 = vadd.f32 %v347, %v658
        %v660 = vpop.f32.mrb[0].mxu0
        %661 = vmatprep.mubr.bf16.mxu0 %v452
        %662 = vmatmul.mubr.bf16.gmra.mrb[0].mxu0 %v451
        %v663 = vpop.f32.mrb[0].mxu0
        %v664 = vadd.f32 %v347, %v663
        %v665 = vpop.f32.mrb[0].mxu0
        %v666 = vpop.f32.mrb[0].mxu0
        %v667 = vadd.f32 %v347, %v666
        %v668 = vpop.f32.mrb[0].mxu0
        %669 = vmatprep.mubr.bf16.mxu0 %v454
        %670 = vmatmul.mubr.bf16.gmra.mrb[0].mxu0 %v453
        %v671 = vpop.f32.mrb[0].mxu0
        %v672 = vadd.f32 %v347, %v671
        %v673 = vpop.f32.mrb[0].mxu0
        %v674 = vpop.f32.mrb[0].mxu0
        %v675 = vadd.f32 %v347, %v674
        %v676 = vpop.f32.mrb[0].mxu0
        %677 = vmatprep.mubr.bf16.mxu0 %v456
        %678 = vmatmul.mubr.bf16.gmra.mrb[0].mxu0 %v455
        %v679 = vpop.f32.mrb[0].mxu0
        %v680 = vadd.f32 %v347, %v679
        %v681 = vpop.f32.mrb[0].mxu0
        %v682 = vpop.f32.mrb[0].mxu0
        %v683 = vadd.f32 %v347, %v682
        %v684 = vpop.f32.mrb[0].mxu0
        %685 = vmatprep.mubr.bf16.mxu0 %v458
        %686 = vmatmul.mubr.bf16.gmra.mrb[0].mxu0 %v457
        %v687 = vpop.f32.mrb[0].mxu0
        %v688 = vadd.f32 %v347, %v687
        %v689 = vpop.f32.mrb[0].mxu0
        %v690 = vpop.f32.mrb[0].mxu0
        %v691 = vadd.f32 %v347, %v690
        %v692 = vpop.f32.mrb[0].mxu0
        %693 = vmatprep.mubr.bf16.mxu0 %v460
        %694 = vmatmul.mubr.bf16.gmra.mrb[0].mxu0 %v459
        %v695 = vpop.f32.mrb[0].mxu0
        %v696 = vadd.f32 %v347, %v695
        %v697 = vpop.f32.mrb[0].mxu0
        %v698 = vpop.f32.mrb[0].mxu0
        %v699 = vadd.f32 %v347, %v698
        %v700 = vpop.f32.mrb[0].mxu0
        %701 = vmatprep.mubr.bf16.mxu0 %v462
        %702 = vmatmul.mubr.bf16.gmra.mrb[0].mxu0 %v461
        %v703 = vpop.f32.mrb[0].mxu0
        %v704 = vadd.f32 %v347, %v703
        %v705 = vpop.f32.mrb[0].mxu0
        %v706 = vpop.f32.mrb[0].mxu0
        %v707 = vadd.f32 %v347, %v706
        %v708 = vpop.f32.mrb[0].mxu0
        %709 = vmatprep.mubr.bf16.mxu0 %v464
        %710 = vmatmul.mubr.bf16.gmra.mrb[0].mxu0 %v463
        %v711 = vpop.f32.mrb[0].mxu0
        %v712 = vadd.f32 %v347, %v711
        %v713 = vpop.f32.mrb[0].mxu0
        %v714 = vpop.f32.mrb[0].mxu0
        %v715 = vadd.f32 %v347, %v714
        %v716 = vpop.f32.mrb[0].mxu0
        %717 = vmatprep.mubr.bf16.mxu0 %v466
        %718 = vmatmul.mubr.bf16.gmra.mrb[0].mxu0 %v465
        %v719 = vpop.f32.mrb[0].mxu0
        %v720 = vadd.f32 %v347, %v719
        %v721 = vpop.f32.mrb[0].mxu0
        %v722 = vpop.f32.mrb[0].mxu0
        %v723 = vadd.f32 %v347, %v722
        %v724 = vpop.f32.mrb[0].mxu0
        %725 = vmatprep.mubr.bf16.mxu0 %v468
        %726 = vmatmul.mubr.bf16.gmra.mrb[0].mxu0 %v467
        %v727 = vpop.f32.mrb[0].mxu0
        %v728 = vadd.f32 %v347, %v727
        %v729 = vpop.f32.mrb[0].mxu0
        %v730 = vpop.f32.mrb[0].mxu0
        %v731 = vadd.f32 %v347, %v730
        %v732 = vpop.f32.mrb[0].mxu0
        %733 = vmatprep.mubr.bf16.mxu0 %v470
        %734 = vmatmul.mubr.bf16.gmra.mrb[0].mxu0 %v469
        %v735 = vpop.f32.mrb[0].mxu0
        %v736 = vadd.f32 %v347, %v735
        %v737 = vpop.f32.mrb[0].mxu0
        %v738 = vpop.f32.mrb[0].mxu0
        %v739 = vadd.f32 %v347, %v738
        %v740 = vpop.f32.mrb[0].mxu0
        %741 = vmatprep.mubr.bf16.mxu0 %v472
        %742 = vmatmul.mubr.bf16.gmra.mrb[0].mxu0 %v471
        %v743 = vpop.f32.mrb[0].mxu0
        %v744 = vadd.f32 %v347, %v743
        %v745 = vpop.f32.mrb[0].mxu0
        %v746 = vpop.f32.mrb[0].mxu0
        %v747 = vadd.f32 %v347, %v746
        %v748 = vpop.f32.mrb[0].mxu0
        %749 = vmatprep.mubr.bf16.mxu0 %v474
        %750 = vmatmul.mubr.bf16.gmra.mrb[0].mxu0 %v473
        %v751 = vpop.f32.mrb[0].mxu0
        %v752 = vadd.f32 %v347, %v751
        %v753 = vpop.f32.mrb[0].mxu0
        %v754 = vpop.f32.mrb[0].mxu0
        %v755 = vadd.f32 %v347, %v754
        %v756 = vpop.f32.mrb[0].mxu0
        %757 = vmatprep.mubr.bf16.mxu0 %v476
        %758 = vmatmul.mubr.bf16.gmra.mrb[0].mxu0 %v475
        %v759 = vpop.f32.mrb[0].mxu0
        %v760 = vadd.f32 %v347, %v759
        %v761 = vpop.f32.mrb[0].mxu0
        %v762 = vpop.f32.mrb[0].mxu0
        %v763 = vadd.f32 %v347, %v762
        %v764 = vpop.f32.mrb[0].mxu0
        %765 = vdwg.mxu0
        %v766 = vmax.f32 %v640, 0.0
        %v767 = vmax.f32 %v643, 0.0
        %v768 = vmax.f32 %v648, 0.0
        %v769 = vmax.f32 %v651, 0.0
        %v770 = vmax.f32 %v656, 0.0
        %v771 = vmax.f32 %v659, 0.0
        %v772 = vmax.f32 %v664, 0.0
        %v773 = vmax.f32 %v667, 0.0
        %v774 = vmax.f32 %v672, 0.0
        %v775 = vmax.f32 %v675, 0.0
        %v776 = vmax.f32 %v680, 0.0
        %v777 = vmax.f32 %v683, 0.0
        %v778 = vmax.f32 %v688, 0.0
        %v779 = vmax.f32 %v691, 0.0
        %v780 = vmax.f32 %v696, 0.0
        %v781 = vmax.f32 %v699, 0.0
        %v782 = vmax.f32 %v704, 0.0
        %v783 = vmax.f32 %v707, 0.0
        %v784 = vmax.f32 %v712, 0.0
        %v785 = vmax.f32 %v715, 0.0
        %v786 = vmax.f32 %v720, 0.0
        %v787 = vmax.f32 %v723, 0.0
        %v788 = vmax.f32 %v728, 0.0
        %v789 = vmax.f32 %v731, 0.0
        %v790 = vmax.f32 %v736, 0.0
        %v791 = vmax.f32 %v739, 0.0
        %v792 = vmax.f32 %v744, 0.0
        %v793 = vmax.f32 %v747, 0.0
        %v794 = vmax.f32 %v752, 0.0
        %v795 = vmax.f32 %v755, 0.0
        %v796 = vmax.f32 %v760, 0.0
        %v797 = vmax.f32 %v763, 0.0
        %vm798 = vcmask 523264
        %799 = vst.msk [vmem:[#allocation2] sm:$0xff] %vm798, 0.0
        %800 = vst.msk [vmem:[#allocation2 + $0x8] sm:$0xff] %vm798, 0.0
        %vm801 = vcmask 517120
        %802 = vst.msk [vmem:[#allocation2 + $0x10] sm:$0x3] %vm801, 0.0
        %s803 = scalar_lea.vmem [#allocation2], 408
        %804 = vst.msk [vmem:[%s803] sm:$0xff] %vm798, 0.0
        %805 = vst.msk [vmem:[%s803 + $0x8] sm:$0xff] %vm798, 0.0
        %806 = vst.msk [vmem:[%s803 + $0x10] sm:$0x3] %vm801, 0.0
        %s807 = scalar_lea.vmem [#allocation2], 24
        %vm808 = vcmask 516096
        %809 = vst.msk [vmem:[%s807] sm:$0x1] %vm808, 0.0
        %810 = vst.msk [vmem:[%s807 + $0x18] sm:$0x1] %vm808, 0.0
        %811 = vst.msk [vmem:[%s807 + $0x30] sm:$0x1] %vm808, 0.0
        %812 = vst.msk [vmem:[%s807 + $0x48] sm:$0x1] %vm808, 0.0
        %813 = vst.msk [vmem:[%s807 + $0x60] sm:$0x1] %vm808, 0.0
        %814 = vst.msk [vmem:[%s807 + $0x78] sm:$0x1] %vm808, 0.0
        %815 = vst.msk [vmem:[%s807 + $0x90] sm:$0x1] %vm808, 0.0
        %816 = vst.msk [vmem:[%s807 + $0xa8] sm:$0x1] %vm808, 0.0
        %817 = vst.msk [vmem:[%s807 + $0xc0] sm:$0x1] %vm808, 0.0
        %818 = vst.msk [vmem:[%s807 + $0xd8] sm:$0x1] %vm808, 0.0
        %819 = vst.msk [vmem:[%s807 + $0xf0] sm:$0x1] %vm808, 0.0
        %820 = vst.msk [vmem:[%s807 + $0x108] sm:$0x1] %vm808, 0.0
        %821 = vst.msk [vmem:[%s807 + $0x120] sm:$0x1] %vm808, 0.0
        %822 = vst.msk [vmem:[%s807 + $0x138] sm:$0x1] %vm808, 0.0
        %823 = vst.msk [vmem:[%s807 + $0x150] sm:$0x1] %vm808, 0.0
        %824 = vst.msk [vmem:[%s807 + $0x168] sm:$0x1] %vm808, 0.0
        %825 = vst.msk [vmem:[%s807 + $0x11] sm:$0x1] %vm808, 0.0
        %826 = vst.msk [vmem:[%s807 + $0x29] sm:$0x1] %vm808, 0.0
        %827 = vst.msk [vmem:[%s807 + $0x41] sm:$0x1] %vm808, 0.0
        %828 = vst.msk [vmem:[%s807 + $0x59] sm:$0x1] %vm808, 0.0
        %829 = vst.msk [vmem:[%s807 + $0x71] sm:$0x1] %vm808, 0.0
        %830 = vst.msk [vmem:[%s807 + $0x89] sm:$0x1] %vm808, 0.0
        %831 = vst.msk [vmem:[%s807 + $0xa1] sm:$0x1] %vm808, 0.0
        %832 = vst.msk [vmem:[%s807 + $0xb9] sm:$0x1] %vm808, 0.0
        %833 = vst.msk [vmem:[%s807 + $0xd1] sm:$0x1] %vm808, 0.0
        %834 = vst.msk [vmem:[%s807 + $0xe9] sm:$0x1] %vm808, 0.0
        %835 = vst.msk [vmem:[%s807 + $0x101] sm:$0x1] %vm808, 0.0
        %836 = vst.msk [vmem:[%s807 + $0x119] sm:$0x1] %vm808, 0.0
        %837 = vst.msk [vmem:[%s807 + $0x131] sm:$0x1] %vm808, 0.0
        %838 = vst.msk [vmem:[%s807 + $0x149] sm:$0x1] %vm808, 0.0
        %839 = vst.msk [vmem:[%s807 + $0x161] sm:$0x1] %vm808, 0.0
        %840 = vst.msk [vmem:[%s807 + $0x179] sm:$0x1] %vm808, 0.0
        %841 = vst.msk [vmem:[%s807 + $0x1] sm:$0xff] %vm798, %v766
        %842 = vst.msk [vmem:[%s807 + $0x9] sm:$0xff] %vm798, %v767
        %843 = vst.msk [vmem:[%s807 + $0x19] sm:$0xff] %vm798, %v768
        %844 = vst.msk [vmem:[%s807 + $0x21] sm:$0xff] %vm798, %v769
        %845 = vst.msk [vmem:[%s807 + $0x31] sm:$0xff] %vm798, %v770
        %846 = vst.msk [vmem:[%s807 + $0x39] sm:$0xff] %vm798, %v771
        %847 = vst.msk [vmem:[%s807 + $0x49] sm:$0xff] %vm798, %v772
        %848 = vst.msk [vmem:[%s807 + $0x51] sm:$0xff] %vm798, %v773
        %849 = vst.msk [vmem:[%s807 + $0x61] sm:$0xff] %vm798, %v774
        %850 = vst.msk [vmem:[%s807 + $0x69] sm:$0xff] %vm798, %v775
        %851 = vst.msk [vmem:[%s807 + $0x79] sm:$0xff] %vm798, %v776
        %852 = vst.msk [vmem:[%s807 + $0x81] sm:$0xff] %vm798, %v777
        %853 = vst.msk [vmem:[%s807 + $0x91] sm:$0xff] %vm798, %v778
        %854 = vst.msk [vmem:[%s807 + $0x99] sm:$0xff] %vm798, %v779
        %855 = vst.msk [vmem:[%s807 + $0xa9] sm:$0xff] %vm798, %v780
        %856 = vst.msk [vmem:[%s807 + $0xb1] sm:$0xff] %vm798, %v781
        %857 = vst.msk [vmem:[%s807 + $0xc1] sm:$0xff] %vm798, %v782
        %858 = vst.msk [vmem:[%s807 + $0xc9] sm:$0xff] %vm798, %v783
        %859 = vst.msk [vmem:[%s807 + $0xd9] sm:$0xff] %vm798, %v784
        %860 = vst.msk [vmem:[%s807 + $0xe1] sm:$0xff] %vm798, %v785
        %861 = vst.msk [vmem:[%s807 + $0xf1] sm:$0xff] %vm798, %v786
        %862 = vst.msk [vmem:[%s807 + $0xf9] sm:$0xff] %vm798, %v787
        %863 = vst.msk [vmem:[%s807 + $0x109] sm:$0xff] %vm798, %v788
        %864 = vst.msk [vmem:[%s807 + $0x111] sm:$0xff] %vm798, %v789
        %865 = vst.msk [vmem:[%s807 + $0x121] sm:$0xff] %vm798, %v790
        %866 = vst.msk [vmem:[%s807 + $0x129] sm:$0xff] %vm798, %v791
        %867 = vst.msk [vmem:[%s807 + $0x139] sm:$0xff] %vm798, %v792
        %868 = vst.msk [vmem:[%s807 + $0x141] sm:$0xff] %vm798, %v793
        %869 = vst.msk [vmem:[%s807 + $0x151] sm:$0xff] %vm798, %v794
        %870 = vst.msk [vmem:[%s807 + $0x159] sm:$0xff] %vm798, %v795
        %871 = vst.msk [vmem:[%s807 + $0x169] sm:$0xff] %vm798, %v796
        %872 = vst.msk [vmem:[%s807 + $0x171] sm:$0xff] %vm798, %v797
        %v873 = vld [vmem:[#allocation2] sm:$0xff]
        %v874 = vld [vmem:[#allocation2 + $0x8] sm:$0xff]
        %v875 = vld [vmem:[#allocation2 + $0x18] sm:$0xff]
        %v876 = vld [vmem:[#allocation2 + $0x20] sm:$0xff]
        %v877 = vld [vmem:[#allocation2 + $0x30] sm:$0xff]
        %v878 = vld [vmem:[#allocation2 + $0x38] sm:$0xff]
        %v879 = vld [vmem:[#allocation2 + $0x48] sm:$0xff]
        %v880 = vld [vmem:[#allocation2 + $0x50] sm:$0xff]
        %v881 = vld [vmem:[#allocation2 + $0x60] sm:$0xff]
        %v882 = vld [vmem:[#allocation2 + $0x68] sm:$0xff]
        %v883 = vld [vmem:[#allocation2 + $0x78] sm:$0xff]
        %v884 = vld [vmem:[#allocation2 + $0x80] sm:$0xff]
        %v885 = vld [vmem:[#allocation2 + $0x90] sm:$0xff]
        %v886 = vld [vmem:[#allocation2 + $0x98] sm:$0xff]
        %v887 = vld [vmem:[#allocation2 + $0xa8] sm:$0xff]
        %v888 = vld [vmem:[#allocation2 + $0xb0] sm:$0xff]
        %v889 = vld [vmem:[#allocation2 + $0xc0] sm:$0xff]
        %v890 = vld [vmem:[#allocation2 + $0xc8] sm:$0xff]
        %v891 = vld [vmem:[#allocation2 + $0xd8] sm:$0xff]
        %v892 = vld [vmem:[#allocation2 + $0xe0] sm:$0xff]
        %v893 = vld [vmem:[#allocation2 + $0xf0] sm:$0xff]
        %v894 = vld [vmem:[#allocation2 + $0xf8] sm:$0xff]
        %v895 = vld [vmem:[#allocation2 + $0x108] sm:$0xff]
        %v896 = vld [vmem:[#allocation2 + $0x110] sm:$0xff]
        %v897 = vld [vmem:[#allocation2 + $0x120] sm:$0xff]
        %v898 = vld [vmem:[#allocation2 + $0x128] sm:$0xff]
        %v899 = vld [vmem:[#allocation2 + $0x138] sm:$0xff]
        %v900 = vld [vmem:[#allocation2 + $0x140] sm:$0xff]
        %v901 = vld [vmem:[#allocation2 + $0x150] sm:$0xff]
        %v902 = vld [vmem:[#allocation2 + $0x158] sm:$0xff]
        %v903 = vld [vmem:[#allocation2 + $0x168] sm:$0xff]
        %v904 = vld [vmem:[#allocation2 + $0x170] sm:$0xff]
        %v905 = vld [vmem:[#allocation2 + $0x1] sm:$0xff]
        %v906 = vld [vmem:[#allocation2 + $0x9] sm:$0xff]
        %v907 = vld [vmem:[#allocation2 + $0x19] sm:$0xff]
        %v908 = vld [vmem:[#allocation2 + $0x21] sm:$0xff]
        %v909 = vld [vmem:[#allocation2 + $0x31] sm:$0xff]
        %v910 = vld [vmem:[#allocation2 + $0x39] sm:$0xff]
        %v911 = vld [vmem:[#allocation2 + $0x49] sm:$0xff]
        %v912 = vld [vmem:[#allocation2 + $0x51] sm:$0xff]
        %v913 = vld [vmem:[#allocation2 + $0x61] sm:$0xff]
        %v914 = vld [vmem:[#allocation2 + $0x69] sm:$0xff]
        %v915 = vld [vmem:[#allocation2 + $0x79] sm:$0xff]
        %v916 = vld [vmem:[#allocation2 + $0x81] sm:$0xff]
        %v917 = vld [vmem:[#allocation2 + $0x91] sm:$0xff]
        %v918 = vld [vmem:[#allocation2 + $0x99] sm:$0xff]
        %v919 = vld [vmem:[#allocation2 + $0xa9] sm:$0xff]
        %v920 = vld [vmem:[#allocation2 + $0xb1] sm:$0xff]
        %v921 = vld [vmem:[#allocation2 + $0xc1] sm:$0xff]
        %v922 = vld [vmem:[#allocation2 + $0xc9] sm:$0xff]
        %v923 = vld [vmem:[#allocation2 + $0xd9] sm:$0xff]
        %v924 = vld [vmem:[#allocation2 + $0xe1] sm:$0xff]
        %v925 = vld [vmem:[#allocation2 + $0xf1] sm:$0xff]
        %v926 = vld [vmem:[#allocation2 + $0xf9] sm:$0xff]
        %v927 = vld [vmem:[#allocation2 + $0x109] sm:$0xff]
        %v928 = vld [vmem:[#allocation2 + $0x111] sm:$0xff]
        %v929 = vld [vmem:[#allocation2 + $0x121] sm:$0xff]
        %v930 = vld [vmem:[#allocation2 + $0x129] sm:$0xff]
        %v931 = vld [vmem:[#allocation2 + $0x139] sm:$0xff]
        %v932 = vld [vmem:[#allocation2 + $0x141] sm:$0xff]
        %v933 = vld [vmem:[#allocation2 + $0x151] sm:$0xff]
        %v934 = vld [vmem:[#allocation2 + $0x159] sm:$0xff]
        %v935 = vld [vmem:[#allocation2 + $0x169] sm:$0xff]
        %v936 = vld [vmem:[#allocation2 + $0x171] sm:$0xff]
        %v937 = vld [vmem:[#allocation2 + $0x2] sm:$0xff]
        %v938 = vld [vmem:[#allocation2 + $0xa] sm:$0xff]
        %v939 = vld [vmem:[#allocation2 + $0x1a] sm:$0xff]
        %v940 = vld [vmem:[#allocation2 + $0x22] sm:$0xff]
        %v941 = vld [vmem:[#allocation2 + $0x32] sm:$0xff]
        %v942 = vld [vmem:[#allocation2 + $0x3a] sm:$0xff]
        %v943 = vld [vmem:[#allocation2 + $0x4a] sm:$0xff]
        %v944 = vld [vmem:[#allocation2 + $0x52] sm:$0xff]
        %v945 = vld [vmem:[#allocation2 + $0x62] sm:$0xff]
        %v946 = vld [vmem:[#allocation2 + $0x6a] sm:$0xff]
        %v947 = vld [vmem:[#allocation2 + $0x7a] sm:$0xff]
        %v948 = vld [vmem:[#allocation2 + $0x82] sm:$0xff]
        %v949 = vld [vmem:[#allocation2 + $0x92] sm:$0xff]
        %v950 = vld [vmem:[#allocation2 + $0x9a] sm:$0xff]
        %v951 = vld [vmem:[#allocation2 + $0xaa] sm:$0xff]
        %v952 = vld [vmem:[#allocation2 + $0xb2] sm:$0xff]
        %v953 = vld [vmem:[#allocation2 + $0xc2] sm:$0xff]
        %v954 = vld [vmem:[#allocation2 + $0xca] sm:$0xff]
        %v955 = vld [vmem:[#allocation2 + $0xda] sm:$0xff]
        %v956 = vld [vmem:[#allocation2 + $0xe2] sm:$0xff]
        %v957 = vld [vmem:[#allocation2 + $0xf2] sm:$0xff]
        %v958 = vld [vmem:[#allocation2 + $0xfa] sm:$0xff]
        %v959 = vld [vmem:[#allocation2 + $0x10a] sm:$0xff]
        %v960 = vld [vmem:[#allocation2 + $0x112] sm:$0xff]
        %v961 = vld [vmem:[#allocation2 + $0x122] sm:$0xff]
        %v962 = vld [vmem:[#allocation2 + $0x12a] sm:$0xff]
        %v963 = vld [vmem:[#allocation2 + $0x13a] sm:$0xff]
        %v964 = vld [vmem:[#allocation2 + $0x142] sm:$0xff]
        %v965 = vld [vmem:[#allocation2 + $0x152] sm:$0xff]
        %v966 = vld [vmem:[#allocation2 + $0x15a] sm:$0xff]
        %v967 = vld [vmem:[#allocation2 + $0x16a] sm:$0xff]
        %v968 = vld [vmem:[#allocation2 + $0x172] sm:$0xff]
        %v969 = vld [vmem:[%s807] sm:$0xff]
        %v970 = vld [vmem:[%s807 + $0x8] sm:$0xff]
        %v971 = vld [vmem:[%s807 + $0x18] sm:$0xff]
        %v972 = vld [vmem:[%s807 + $0x20] sm:$0xff]
        %v973 = vld [vmem:[%s807 + $0x30] sm:$0xff]
        %v974 = vld [vmem:[%s807 + $0x38] sm:$0xff]
        %v975 = vld [vmem:[%s807 + $0x48] sm:$0xff]
        %v976 = vld [vmem:[%s807 + $0x50] sm:$0xff]
        %v977 = vld [vmem:[%s807 + $0x60] sm:$0xff]
        %v978 = vld [vmem:[%s807 + $0x68] sm:$0xff]
        %v979 = vld [vmem:[%s807 + $0x78] sm:$0xff]
        %v980 = vld [vmem:[%s807 + $0x80] sm:$0xff]
        %v981 = vld [vmem:[%s807 + $0x90] sm:$0xff]
        %v982 = vld [vmem:[%s807 + $0x98] sm:$0xff]
        %v983 = vld [vmem:[%s807 + $0xa8] sm:$0xff]
        %v984 = vld [vmem:[%s807 + $0xb0] sm:$0xff]
        %v985 = vld [vmem:[%s807 + $0xc0] sm:$0xff]
        %v986 = vld [vmem:[%s807 + $0xc8] sm:$0xff]
        %v987 = vld [vmem:[%s807 + $0xd8] sm:$0xff]
        %v988 = vld [vmem:[%s807 + $0xe0] sm:$0xff]
        %v989 = vld [vmem:[%s807 + $0xf0] sm:$0xff]
        %v990 = vld [vmem:[%s807 + $0xf8] sm:$0xff]
        %v991 = vld [vmem:[%s807 + $0x108] sm:$0xff]
        %v992 = vld [vmem:[%s807 + $0x110] sm:$0xff]
        %v993 = vld [vmem:[%s807 + $0x120] sm:$0xff]
        %v994 = vld [vmem:[%s807 + $0x128] sm:$0xff]
        %v995 = vld [vmem:[%s807 + $0x138] sm:$0xff]
        %v996 = vld [vmem:[%s807 + $0x140] sm:$0xff]
        %v997 = vld [vmem:[%s807 + $0x150] sm:$0xff]
        %v998 = vld [vmem:[%s807 + $0x158] sm:$0xff]
        %v999 = vld [vmem:[%s807 + $0x168] sm:$0xff]
        %v1000 = vld [vmem:[%s807 + $0x170] sm:$0xff]
        %v1001 = vld [vmem:[%s807 + $0x1] sm:$0xff]
        %v1002 = vld [vmem:[%s807 + $0x9] sm:$0xff]
        %v1003 = vld [vmem:[%s807 + $0x19] sm:$0xff]
        %v1004 = vld [vmem:[%s807 + $0x21] sm:$0xff]
        %v1005 = vld [vmem:[%s807 + $0x31] sm:$0xff]
        %v1006 = vld [vmem:[%s807 + $0x39] sm:$0xff]
        %v1007 = vld [vmem:[%s807 + $0x49] sm:$0xff]
        %v1008 = vld [vmem:[%s807 + $0x51] sm:$0xff]
        %v1009 = vld [vmem:[%s807 + $0x61] sm:$0xff]
        %v1010 = vld [vmem:[%s807 + $0x69] sm:$0xff]
        %v1011 = vld [vmem:[%s807 + $0x79] sm:$0xff]
        %v1012 = vld [vmem:[%s807 + $0x81] sm:$0xff]
        %v1013 = vld [vmem:[%s807 + $0x91] sm:$0xff]
        %v1014 = vld [vmem:[%s807 + $0x99] sm:$0xff]
        %v1015 = vld [vmem:[%s807 + $0xa9] sm:$0xff]
        %v1016 = vld [vmem:[%s807 + $0xb1] sm:$0xff]
        %v1017 = vld [vmem:[%s807 + $0xc1] sm:$0xff]
        %v1018 = vld [vmem:[%s807 + $0xc9] sm:$0xff]
        %v1019 = vld [vmem:[%s807 + $0xd9] sm:$0xff]
        %v1020 = vld [vmem:[%s807 + $0xe1] sm:$0xff]
        %v1021 = vld [vmem:[%s807 + $0xf1] sm:$0xff]
        %v1022 = vld [vmem:[%s807 + $0xf9] sm:$0xff]
        %v1023 = vld [vmem:[%s807 + $0x109] sm:$0xff]
        %v1024 = vld [vmem:[%s807 + $0x111] sm:$0xff]
        %v1025 = vld [vmem:[%s807 + $0x121] sm:$0xff]
        %v1026 = vld [vmem:[%s807 + $0x129] sm:$0xff]
        %v1027 = vld [vmem:[%s807 + $0x139] sm:$0xff]
        %v1028 = vld [vmem:[%s807 + $0x141] sm:$0xff]
        %v1029 = vld [vmem:[%s807 + $0x151] sm:$0xff]
        %v1030 = vld [vmem:[%s807 + $0x159] sm:$0xff]
        %v1031 = vld [vmem:[%s807 + $0x169] sm:$0xff]
        %v1032 = vld [vmem:[%s807 + $0x171] sm:$0xff]
        %v1033 = vld [vmem:[%s807 + $0x2] sm:$0xff]
        %v1034 = vld [vmem:[%s807 + $0xa] sm:$0xff]
        %v1035 = vld [vmem:[%s807 + $0x1a] sm:$0xff]
        %v1036 = vld [vmem:[%s807 + $0x22] sm:$0xff]
        %v1037 = vld [vmem:[%s807 + $0x32] sm:$0xff]
        %v1038 = vld [vmem:[%s807 + $0x3a] sm:$0xff]
        %v1039 = vld [vmem:[%s807 + $0x4a] sm:$0xff]
        %v1040 = vld [vmem:[%s807 + $0x52] sm:$0xff]
        %v1041 = vld [vmem:[%s807 + $0x62] sm:$0xff]
        %v1042 = vld [vmem:[%s807 + $0x6a] sm:$0xff]
        %v1043 = vld [vmem:[%s807 + $0x7a] sm:$0xff]
        %v1044 = vld [vmem:[%s807 + $0x82] sm:$0xff]
        %v1045 = vld [vmem:[%s807 + $0x92] sm:$0xff]
        %v1046 = vld [vmem:[%s807 + $0x9a] sm:$0xff]
        %v1047 = vld [vmem:[%s807 + $0xaa] sm:$0xff]
        %v1048 = vld [vmem:[%s807 + $0xb2] sm:$0xff]
        %v1049 = vld [vmem:[%s807 + $0xc2] sm:$0xff]
        %v1050 = vld [vmem:[%s807 + $0xca] sm:$0xff]
        %v1051 = vld [vmem:[%s807 + $0xda] sm:$0xff]
        %v1052 = vld [vmem:[%s807 + $0xe2] sm:$0xff]
        %v1053 = vld [vmem:[%s807 + $0xf2] sm:$0xff]
        %v1054 = vld [vmem:[%s807 + $0xfa] sm:$0xff]
        %v1055 = vld [vmem:[%s807 + $0x10a] sm:$0xff]
        %v1056 = vld [vmem:[%s807 + $0x112] sm:$0xff]
        %v1057 = vld [vmem:[%s807 + $0x122] sm:$0xff]
        %v1058 = vld [vmem:[%s807 + $0x12a] sm:$0xff]
        %v1059 = vld [vmem:[%s807 + $0x13a] sm:$0xff]
        %v1060 = vld [vmem:[%s807 + $0x142] sm:$0xff]
        %v1061 = vld [vmem:[%s807 + $0x152] sm:$0xff]
        %v1062 = vld [vmem:[%s807 + $0x15a] sm:$0xff]
        %v1063 = vld [vmem:[%s807 + $0x16a] sm:$0xff]
        %v1064 = vld [vmem:[%s807 + $0x172] sm:$0xff]
        %s1065 = scalar_lea.vmem [#allocation2], 48
        %v1066 = vld [vmem:[%s1065] sm:$0xff]
        %v1067 = vld [vmem:[%s1065 + $0x8] sm:$0xff]
        %v1068 = vld [vmem:[%s1065 + $0x18] sm:$0xff]
        %v1069 = vld [vmem:[%s1065 + $0x20] sm:$0xff]
        %v1070 = vld [vmem:[%s1065 + $0x30] sm:$0xff]
        %v1071 = vld [vmem:[%s1065 + $0x38] sm:$0xff]
        %v1072 = vld [vmem:[%s1065 + $0x48] sm:$0xff]
        %v1073 = vld [vmem:[%s1065 + $0x50] sm:$0xff]
        %v1074 = vld [vmem:[%s1065 + $0x60] sm:$0xff]
        %v1075 = vld [vmem:[%s1065 + $0x68] sm:$0xff]
        %v1076 = vld [vmem:[%s1065 + $0x78] sm:$0xff]
        %v1077 = vld [vmem:[%s1065 + $0x80] sm:$0xff]
        %v1078 = vld [vmem:[%s1065 + $0x90] sm:$0xff]
        %v1079 = vld [vmem:[%s1065 + $0x98] sm:$0xff]
        %v1080 = vld [vmem:[%s1065 + $0xa8] sm:$0xff]
        %v1081 = vld [vmem:[%s1065 + $0xb0] sm:$0xff]
        %v1082 = vld [vmem:[%s1065 + $0xc0] sm:$0xff]
        %v1083 = vld [vmem:[%s1065 + $0xc8] sm:$0xff]
        %v1084 = vld [vmem:[%s1065 + $0xd8] sm:$0xff]
        %v1085 = vld [vmem:[%s1065 + $0xe0] sm:$0xff]
        %v1086 = vld [vmem:[%s1065 + $0xf0] sm:$0xff]
        %v1087 = vld [vmem:[%s1065 + $0xf8] sm:$0xff]
        %v1088 = vld [vmem:[%s1065 + $0x108] sm:$0xff]
        %v1089 = vld [vmem:[%s1065 + $0x110] sm:$0xff]
        %v1090 = vld [vmem:[%s1065 + $0x120] sm:$0xff]
        %v1091 = vld [vmem:[%s1065 + $0x128] sm:$0xff]
        %v1092 = vld [vmem:[%s1065 + $0x138] sm:$0xff]
        %v1093 = vld [vmem:[%s1065 + $0x140] sm:$0xff]
        %v1094 = vld [vmem:[%s1065 + $0x150] sm:$0xff]
        %v1095 = vld [vmem:[%s1065 + $0x158] sm:$0xff]
        %v1096 = vld [vmem:[%s1065 + $0x168] sm:$0xff]
        %v1097 = vld [vmem:[%s1065 + $0x170] sm:$0xff]
        %v1098 = vld [vmem:[%s1065 + $0x1] sm:$0xff]
        %v1099 = vld [vmem:[%s1065 + $0x9] sm:$0xff]
        %v1100 = vld [vmem:[%s1065 + $0x19] sm:$0xff]
        %v1101 = vld [vmem:[%s1065 + $0x21] sm:$0xff]
        %v1102 = vld [vmem:[%s1065 + $0x31] sm:$0xff]
        %v1103 = vld [vmem:[%s1065 + $0x39] sm:$0xff]
        %v1104 = vld [vmem:[%s1065 + $0x49] sm:$0xff]
        %v1105 = vld [vmem:[%s1065 + $0x51] sm:$0xff]
        %v1106 = vld [vmem:[%s1065 + $0x61] sm:$0xff]
        %v1107 = vld [vmem:[%s1065 + $0x69] sm:$0xff]
        %v1108 = vld [vmem:[%s1065 + $0x79] sm:$0xff]
        %v1109 = vld [vmem:[%s1065 + $0x81] sm:$0xff]
        %v1110 = vld [vmem:[%s1065 + $0x91] sm:$0xff]
        %v1111 = vld [vmem:[%s1065 + $0x99] sm:$0xff]
        %v1112 = vld [vmem:[%s1065 + $0xa9] sm:$0xff]
        %v1113 = vld [vmem:[%s1065 + $0xb1] sm:$0xff]
        %v1114 = vld [vmem:[%s1065 + $0xc1] sm:$0xff]
        %v1115 = vld [vmem:[%s1065 + $0xc9] sm:$0xff]
        %v1116 = vld [vmem:[%s1065 + $0xd9] sm:$0xff]
        %v1117 = vld [vmem:[%s1065 + $0xe1] sm:$0xff]
        %v1118 = vld [vmem:[%s1065 + $0xf1] sm:$0xff]
        %v1119 = vld [vmem:[%s1065 + $0xf9] sm:$0xff]
        %v1120 = vld [vmem:[%s1065 + $0x109] sm:$0xff]
        %v1121 = vld [vmem:[%s1065 + $0x111] sm:$0xff]
        %v1122 = vld [vmem:[%s1065 + $0x121] sm:$0xff]
        %v1123 = vld [vmem:[%s1065 + $0x129] sm:$0xff]
        %v1124 = vld [vmem:[%s1065 + $0x139] sm:$0xff]
        %v1125 = vld [vmem:[%s1065 + $0x141] sm:$0xff]
        %v1126 = vld [vmem:[%s1065 + $0x151] sm:$0xff]
        %v1127 = vld [vmem:[%s1065 + $0x159] sm:$0xff]
        %v1128 = vld [vmem:[%s1065 + $0x169] sm:$0xff]
        %v1129 = vld [vmem:[%s1065 + $0x171] sm:$0xff]
        %v1130 = vld [vmem:[%s1065 + $0x2] sm:$0xff]
        %v1131 = vld [vmem:[%s1065 + $0xa] sm:$0xff]
        %v1132 = vld [vmem:[%s1065 + $0x1a] sm:$0xff]
        %v1133 = vld [vmem:[%s1065 + $0x22] sm:$0xff]
        %v1134 = vld [vmem:[%s1065 + $0x32] sm:$0xff]
        %v1135 = vld [vmem:[%s1065 + $0x3a] sm:$0xff]
        %v1136 = vld [vmem:[%s1065 + $0x4a] sm:$0xff]
        %v1137 = vld [vmem:[%s1065 + $0x52] sm:$0xff]
        %v1138 = vld [vmem:[%s1065 + $0x62] sm:$0xff]
        %v1139 = vld [vmem:[%s1065 + $0x6a] sm:$0xff]
        %v1140 = vld [vmem:[%s1065 + $0x7a] sm:$0xff]
        %v1141 = vld [vmem:[%s1065 + $0x82] sm:$0xff]
        %v1142 = vld [vmem:[%s1065 + $0x92] sm:$0xff]
        %v1143 = vld [vmem:[%s1065 + $0x9a] sm:$0xff]
        %v1144 = vld [vmem:[%s1065 + $0xaa] sm:$0xff]
        %v1145 = vld [vmem:[%s1065 + $0xb2] sm:$0xff]
        %v1146 = vld [vmem:[%s1065 + $0xc2] sm:$0xff]
        %v1147 = vld [vmem:[%s1065 + $0xca] sm:$0xff]
        %v1148 = vld [vmem:[%s1065 + $0xda] sm:$0xff]
        %v1149 = vld [vmem:[%s1065 + $0xe2] sm:$0xff]
        %v1150 = vld [vmem:[%s1065 + $0xf2] sm:$0xff]
        %v1151 = vld [vmem:[%s1065 + $0xfa] sm:$0xff]
        %v1152 = vld [vmem:[%s1065 + $0x10a] sm:$0xff]
        %v1153 = vld [vmem:[%s1065 + $0x112] sm:$0xff]
        %v1154 = vld [vmem:[%s1065 + $0x122] sm:$0xff]
        %v1155 = vld [vmem:[%s1065 + $0x12a] sm:$0xff]
        %v1156 = vld [vmem:[%s1065 + $0x13a] sm:$0xff]
        %v1157 = vld [vmem:[%s1065 + $0x142] sm:$0xff]
        %v1158 = vld [vmem:[%s1065 + $0x152] sm:$0xff]
        %v1159 = vld [vmem:[%s1065 + $0x15a] sm:$0xff]
        %v1160 = vld [vmem:[%s1065 + $0x16a] sm:$0xff]
        %v1161 = vld [vmem:[%s1065 + $0x172] sm:$0xff]
        %1194 = vrot.lane.b32.xlu0 %v905, 64
        %v1195 = vpop.permute.xlu0 %1194
        %1196 = vrot.lane.b32.xlu0 %v906, 64
        %v1197 = vpop.permute.xlu0 %1196
        %1198 = vrot.lane.b32.xlu0 %v907, 64
        %v1199 = vpop.permute.xlu0 %1198
        %1200 = vrot.lane.b32.xlu0 %v908, 64
        %v1201 = vpop.permute.xlu0 %1200
        %1202 = vrot.lane.b32.xlu0 %v909, 64
        %v1203 = vpop.permute.xlu0 %1202
        %1204 = vrot.lane.b32.xlu0 %v910, 64
        %v1205 = vpop.permute.xlu0 %1204
        %1206 = vrot.lane.b32.xlu0 %v911, 64
        %v1207 = vpop.permute.xlu0 %1206
        %1208 = vrot.lane.b32.xlu0 %v912, 64
        %v1209 = vpop.permute.xlu0 %1208
        %1210 = vrot.lane.b32.xlu0 %v913, 64
        %v1211 = vpop.permute.xlu0 %1210
        %1212 = vrot.lane.b32.xlu0 %v914, 64
        %v1213 = vpop.permute.xlu0 %1212
        %1214 = vrot.lane.b32.xlu0 %v915, 64
        %v1215 = vpop.permute.xlu0 %1214
        %1216 = vrot.lane.b32.xlu0 %v916, 64
        %v1217 = vpop.permute.xlu0 %1216
        %1218 = vrot.lane.b32.xlu0 %v917, 64
        %v1219 = vpop.permute.xlu0 %1218
        %1220 = vrot.lane.b32.xlu0 %v918, 64
        %v1221 = vpop.permute.xlu0 %1220
        %1222 = vrot.lane.b32.xlu0 %v919, 64
        %v1223 = vpop.permute.xlu0 %1222
        %1224 = vrot.lane.b32.xlu0 %v920, 64
        %v1225 = vpop.permute.xlu0 %1224
        %1226 = vrot.lane.b32.xlu0 %v921, 64
        %v1227 = vpop.permute.xlu0 %1226
        %1228 = vrot.lane.b32.xlu0 %v922, 64
        %v1229 = vpop.permute.xlu0 %1228
        %1230 = vrot.lane.b32.xlu0 %v923, 64
        %v1231 = vpop.permute.xlu0 %1230
        %1232 = vrot.lane.b32.xlu0 %v924, 64
        %v1233 = vpop.permute.xlu0 %1232
        %1234 = vrot.lane.b32.xlu0 %v925, 64
        %v1235 = vpop.permute.xlu0 %1234
        %1236 = vrot.lane.b32.xlu0 %v926, 64
        %v1237 = vpop.permute.xlu0 %1236
        %1238 = vrot.lane.b32.xlu0 %v927, 64
        %v1239 = vpop.permute.xlu0 %1238
        %1240 = vrot.lane.b32.xlu0 %v928, 64
        %v1241 = vpop.permute.xlu0 %1240
        %1242 = vrot.lane.b32.xlu0 %v929, 64
        %v1243 = vpop.permute.xlu0 %1242
        %1244 = vrot.lane.b32.xlu0 %v930, 64
        %v1245 = vpop.permute.xlu0 %1244
        %1246 = vrot.lane.b32.xlu0 %v931, 64
        %v1247 = vpop.permute.xlu0 %1246
        %1248 = vrot.lane.b32.xlu0 %v932, 64
        %v1249 = vpop.permute.xlu0 %1248
        %1250 = vrot.lane.b32.xlu0 %v933, 64
        %v1251 = vpop.permute.xlu0 %1250
        %1252 = vrot.lane.b32.xlu0 %v934, 64
        %v1253 = vpop.permute.xlu0 %1252
        %1254 = vrot.lane.b32.xlu0 %v935, 64
        %v1255 = vpop.permute.xlu0 %1254
        %1256 = vrot.lane.b32.xlu0 %v936, 64
        %v1257 = vpop.permute.xlu0 %1256
        %1322 = vrot.lane.b32.xlu0 %v969, 64
        %v1323 = vpop.permute.xlu0 %1322
        %1324 = vrot.lane.b32.xlu0 %v970, 64
        %v1325 = vpop.permute.xlu0 %1324
        %1326 = vrot.lane.b32.xlu0 %v971, 64
        %v1327 = vpop.permute.xlu0 %1326
        %1328 = vrot.lane.b32.xlu0 %v972, 64
        %v1329 = vpop.permute.xlu0 %1328
        %1330 = vrot.lane.b32.xlu0 %v973, 64
        %v1331 = vpop.permute.xlu0 %1330
        %1332 = vrot.lane.b32.xlu0 %v974, 64
        %v1333 = vpop.permute.xlu0 %1332
        %1334 = vrot.lane.b32.xlu0 %v975, 64
        %v1335 = vpop.permute.xlu0 %1334
        %1336 = vrot.lane.b32.xlu0 %v976, 64
        %v1337 = vpop.permute.xlu0 %1336
        %1338 = vrot.lane.b32.xlu0 %v977, 64
        %v1339 = vpop.permute.xlu0 %1338
        %1340 = vrot.lane.b32.xlu0 %v978, 64
        %v1341 = vpop.permute.xlu0 %1340
        %1342 = vrot.lane.b32.xlu0 %v979, 64
        %v1343 = vpop.permute.xlu0 %1342
        %1344 = vrot.lane.b32.xlu0 %v980, 64
        %v1345 = vpop.permute.xlu0 %1344
        %1346 = vrot.lane.b32.xlu0 %v981, 64
        %v1347 = vpop.permute.xlu0 %1346
        %1348 = vrot.lane.b32.xlu0 %v982, 64
        %v1349 = vpop.permute.xlu0 %1348
        %1350 = vrot.lane.b32.xlu0 %v983, 64
        %v1351 = vpop.permute.xlu0 %1350
        %1352 = vrot.lane.b32.xlu0 %v984, 64
        %v1353 = vpop.permute.xlu0 %1352
        %1354 = vrot.lane.b32.xlu0 %v985, 64
        %v1355 = vpop.permute.xlu0 %1354
        %1356 = vrot.lane.b32.xlu0 %v986, 64
        %v1357 = vpop.permute.xlu0 %1356
        %1358 = vrot.lane.b32.xlu0 %v987, 64
        %v1359 = vpop.permute.xlu0 %1358
        %1360 = vrot.lane.b32.xlu0 %v988, 64
        %v1361 = vpop.permute.xlu0 %1360
        %1362 = vrot.lane.b32.xlu0 %v989, 64
        %v1363 = vpop.permute.xlu0 %1362
        %1364 = vrot.lane.b32.xlu0 %v990, 64
        %v1365 = vpop.permute.xlu0 %1364
        %1366 = vrot.lane.b32.xlu0 %v991, 64
        %v1367 = vpop.permute.xlu0 %1366
        %1368 = vrot.lane.b32.xlu0 %v992, 64
        %v1369 = vpop.permute.xlu0 %1368
        %1370 = vrot.lane.b32.xlu0 %v993, 64
        %v1371 = vpop.permute.xlu0 %1370
        %1372 = vrot.lane.b32.xlu0 %v994, 64
        %v1373 = vpop.permute.xlu0 %1372
        %1374 = vrot.lane.b32.xlu0 %v995, 64
        %v1375 = vpop.permute.xlu0 %1374
        %1376 = vrot.lane.b32.xlu0 %v996, 64
        %v1377 = vpop.permute.xlu0 %1376
        %1378 = vrot.lane.b32.xlu0 %v997, 64
        %v1379 = vpop.permute.xlu0 %1378
        %1380 = vrot.lane.b32.xlu0 %v998, 64
        %v1381 = vpop.permute.xlu0 %1380
        %1382 = vrot.lane.b32.xlu0 %v999, 64
        %v1383 = vpop.permute.xlu0 %1382
        %1384 = vrot.lane.b32.xlu0 %v1000, 64
        %v1385 = vpop.permute.xlu0 %1384
        %1450 = vrot.lane.b32.xlu0 %v1033, 64
        %v1451 = vpop.permute.xlu0 %1450
        %1452 = vrot.lane.b32.xlu0 %v1034, 64
        %v1453 = vpop.permute.xlu0 %1452
        %1454 = vrot.lane.b32.xlu0 %v1035, 64
        %v1455 = vpop.permute.xlu0 %1454
        %1456 = vrot.lane.b32.xlu0 %v1036, 64
        %v1457 = vpop.permute.xlu0 %1456
        %1458 = vrot.lane.b32.xlu0 %v1037, 64
        %v1459 = vpop.permute.xlu0 %1458
        %1460 = vrot.lane.b32.xlu0 %v1038, 64
        %v1461 = vpop.permute.xlu0 %1460
        %1462 = vrot.lane.b32.xlu0 %v1039, 64
        %v1463 = vpop.permute.xlu0 %1462
        %1464 = vrot.lane.b32.xlu0 %v1040, 64
        %v1465 = vpop.permute.xlu0 %1464
        %1466 = vrot.lane.b32.xlu0 %v1041, 64
        %v1467 = vpop.permute.xlu0 %1466
        %1468 = vrot.lane.b32.xlu0 %v1042, 64
        %v1469 = vpop.permute.xlu0 %1468
        %1470 = vrot.lane.b32.xlu0 %v1043, 64
        %v1471 = vpop.permute.xlu0 %1470
        %1472 = vrot.lane.b32.xlu0 %v1044, 64
        %v1473 = vpop.permute.xlu0 %1472
        %1474 = vrot.lane.b32.xlu0 %v1045, 64
        %v1475 = vpop.permute.xlu0 %1474
        %1476 = vrot.lane.b32.xlu0 %v1046, 64
        %v1477 = vpop.permute.xlu0 %1476
        %1478 = vrot.lane.b32.xlu0 %v1047, 64
        %v1479 = vpop.permute.xlu0 %1478
        %1480 = vrot.lane.b32.xlu0 %v1048, 64
        %v1481 = vpop.permute.xlu0 %1480
        %1482 = vrot.lane.b32.xlu0 %v1049, 64
        %v1483 = vpop.permute.xlu0 %1482
        %1484 = vrot.lane.b32.xlu0 %v1050, 64
        %v1485 = vpop.permute.xlu0 %1484
        %1486 = vrot.lane.b32.xlu0 %v1051, 64
        %v1487 = vpop.permute.xlu0 %1486
        %1488 = vrot.lane.b32.xlu0 %v1052, 64
        %v1489 = vpop.permute.xlu0 %1488
        %1490 = vrot.lane.b32.xlu0 %v1053, 64
        %v1491 = vpop.permute.xlu0 %1490
        %1492 = vrot.lane.b32.xlu0 %v1054, 64
        %v1493 = vpop.permute.xlu0 %1492
        %1494 = vrot.lane.b32.xlu0 %v1055, 64
        %v1495 = vpop.permute.xlu0 %1494
        %1496 = vrot.lane.b32.xlu0 %v1056, 64
        %v1497 = vpop.permute.xlu0 %1496
        %1498 = vrot.lane.b32.xlu0 %v1057, 64
        %v1499 = vpop.permute.xlu0 %1498
        %1500 = vrot.lane.b32.xlu0 %v1058, 64
        %v1501 = vpop.permute.xlu0 %1500
        %1502 = vrot.lane.b32.xlu0 %v1059, 64
        %v1503 = vpop.permute.xlu0 %1502
        %1504 = vrot.lane.b32.xlu0 %v1060, 64
        %v1505 = vpop.permute.xlu0 %1504
        %1506 = vrot.lane.b32.xlu0 %v1061, 64
        %v1507 = vpop.permute.xlu0 %1506
        %1508 = vrot.lane.b32.xlu0 %v1062, 64
        %v1509 = vpop.permute.xlu0 %1508
        %1510 = vrot.lane.b32.xlu0 %v1063, 64
        %v1511 = vpop.permute.xlu0 %1510
        %1512 = vrot.lane.b32.xlu0 %v1064, 64
        %v1513 = vpop.permute.xlu0 %1512
        %1578 = vrot.lane.b32.xlu0 %v1098, 64
        %v1579 = vpop.permute.xlu0 %1578
        %1580 = vrot.lane.b32.xlu0 %v1099, 64
        %v1581 = vpop.permute.xlu0 %1580
        %1582 = vrot.lane.b32.xlu0 %v1100, 64
        %v1583 = vpop.permute.xlu0 %1582
        %1584 = vrot.lane.b32.xlu0 %v1101, 64
        %v1585 = vpop.permute.xlu0 %1584
        %1586 = vrot.lane.b32.xlu0 %v1102, 64
        %v1587 = vpop.permute.xlu0 %1586
        %1588 = vrot.lane.b32.xlu0 %v1103, 64
        %v1589 = vpop.permute.xlu0 %1588
        %1590 = vrot.lane.b32.xlu0 %v1104, 64
        %v1591 = vpop.permute.xlu0 %1590
        %1592 = vrot.lane.b32.xlu0 %v1105, 64
        %v1593 = vpop.permute.xlu0 %1592
        %1594 = vrot.lane.b32.xlu0 %v1106, 64
        %v1595 = vpop.permute.xlu0 %1594
        %1596 = vrot.lane.b32.xlu0 %v1107, 64
        %v1597 = vpop.permute.xlu0 %1596
        %1598 = vrot.lane.b32.xlu0 %v1108, 64
        %v1599 = vpop.permute.xlu0 %1598
        %1600 = vrot.lane.b32.xlu0 %v1109, 64
        %v1601 = vpop.permute.xlu0 %1600
        %1602 = vrot.lane.b32.xlu0 %v1110, 64
        %v1603 = vpop.permute.xlu0 %1602
        %1604 = vrot.lane.b32.xlu0 %v1111, 64
        %v1605 = vpop.permute.xlu0 %1604
        %1606 = vrot.lane.b32.xlu0 %v1112, 64
        %v1607 = vpop.permute.xlu0 %1606
        %1608 = vrot.lane.b32.xlu0 %v1113, 64
        %v1609 = vpop.permute.xlu0 %1608
        %1610 = vrot.lane.b32.xlu0 %v1114, 64
        %v1611 = vpop.permute.xlu0 %1610
        %1612 = vrot.lane.b32.xlu0 %v1115, 64
        %v1613 = vpop.permute.xlu0 %1612
        %1614 = vrot.lane.b32.xlu0 %v1116, 64
        %v1615 = vpop.permute.xlu0 %1614
        %1616 = vrot.lane.b32.xlu0 %v1117, 64
        %v1617 = vpop.permute.xlu0 %1616
        %1618 = vrot.lane.b32.xlu0 %v1118, 64
        %v1619 = vpop.permute.xlu0 %1618
        %1620 = vrot.lane.b32.xlu0 %v1119, 64
        %v1621 = vpop.permute.xlu0 %1620
        %1622 = vrot.lane.b32.xlu0 %v1120, 64
        %v1623 = vpop.permute.xlu0 %1622
        %1624 = vrot.lane.b32.xlu0 %v1121, 64
        %v1625 = vpop.permute.xlu0 %1624
        %1626 = vrot.lane.b32.xlu0 %v1122, 64
        %v1627 = vpop.permute.xlu0 %1626
        %1628 = vrot.lane.b32.xlu0 %v1123, 64
        %v1629 = vpop.permute.xlu0 %1628
        %1630 = vrot.lane.b32.xlu0 %v1124, 64
        %v1631 = vpop.permute.xlu0 %1630
        %1632 = vrot.lane.b32.xlu0 %v1125, 64
        %v1633 = vpop.permute.xlu0 %1632
        %1634 = vrot.lane.b32.xlu0 %v1126, 64
        %v1635 = vpop.permute.xlu0 %1634
        %1636 = vrot.lane.b32.xlu0 %v1127, 64
        %v1637 = vpop.permute.xlu0 %1636
        %1638 = vrot.lane.b32.xlu0 %v1128, 64
        %v1639 = vpop.permute.xlu0 %1638
        %1640 = vrot.lane.b32.xlu0 %v1129, 64
        %v1641 = vpop.permute.xlu0 %1640
        %v1674 = vsel %vm798, %v873, %v1195
        %v1675 = vsel %vm798, %v874, %v1197
        %v1676 = vsel %vm798, %v875, %v1199
        %v1677 = vsel %vm798, %v876, %v1201
        %v1678 = vsel %vm798, %v877, %v1203
        %v1679 = vsel %vm798, %v878, %v1205
        %v1680 = vsel %vm798, %v879, %v1207
        %v1681 = vsel %vm798, %v880, %v1209
        %v1682 = vsel %vm798, %v881, %v1211
        %v1683 = vsel %vm798, %v882, %v1213
        %v1684 = vsel %vm798, %v883, %v1215
        %v1685 = vsel %vm798, %v884, %v1217
        %v1686 = vsel %vm798, %v885, %v1219
        %v1687 = vsel %vm798, %v886, %v1221
        %v1688 = vsel %vm798, %v887, %v1223
        %v1689 = vsel %vm798, %v888, %v1225
        %v1690 = vsel %vm798, %v889, %v1227
        %v1691 = vsel %vm798, %v890, %v1229
        %v1692 = vsel %vm798, %v891, %v1231
        %v1693 = vsel %vm798, %v892, %v1233
        %v1694 = vsel %vm798, %v893, %v1235
        %v1695 = vsel %vm798, %v894, %v1237
        %v1696 = vsel %vm798, %v895, %v1239
        %v1697 = vsel %vm798, %v896, %v1241
        %v1698 = vsel %vm798, %v897, %v1243
        %v1699 = vsel %vm798, %v898, %v1245
        %v1700 = vsel %vm798, %v899, %v1247
        %v1701 = vsel %vm798, %v900, %v1249
        %v1702 = vsel %vm798, %v901, %v1251
        %v1703 = vsel %vm798, %v902, %v1253
        %v1704 = vsel %vm798, %v903, %v1255
        %v1705 = vsel %vm798, %v904, %v1257
        %v1706 = vsel %vm798, %v937, %v1323
        %v1707 = vsel %vm798, %v938, %v1325
        %v1708 = vsel %vm798, %v939, %v1327
        %v1709 = vsel %vm798, %v940, %v1329
        %v1710 = vsel %vm798, %v941, %v1331
        %v1711 = vsel %vm798, %v942, %v1333
        %v1712 = vsel %vm798, %v943, %v1335
        %v1713 = vsel %vm798, %v944, %v1337
        %v1714 = vsel %vm798, %v945, %v1339
        %v1715 = vsel %vm798, %v946, %v1341
        %v1716 = vsel %vm798, %v947, %v1343
        %v1717 = vsel %vm798, %v948, %v1345
        %v1718 = vsel %vm798, %v949, %v1347
        %v1719 = vsel %vm798, %v950, %v1349
        %v1720 = vsel %vm798, %v951, %v1351
        %v1721 = vsel %vm798, %v952, %v1353
        %v1722 = vsel %vm798, %v953, %v1355
        %v1723 = vsel %vm798, %v954, %v1357
        %v1724 = vsel %vm798, %v955, %v1359
        %v1725 = vsel %vm798, %v956, %v1361
        %v1726 = vsel %vm798, %v957, %v1363
        %v1727 = vsel %vm798, %v958, %v1365
        %v1728 = vsel %vm798, %v959, %v1367
        %v1729 = vsel %vm798, %v960, %v1369
        %v1730 = vsel %vm798, %v961, %v1371
        %v1731 = vsel %vm798, %v962, %v1373
        %v1732 = vsel %vm798, %v963, %v1375
        %v1733 = vsel %vm798, %v964, %v1377
        %v1734 = vsel %vm798, %v965, %v1379
        %v1735 = vsel %vm798, %v966, %v1381
        %v1736 = vsel %vm798, %v967, %v1383
        %v1737 = vsel %vm798, %v968, %v1385
        %v1738 = vsel %vm798, %v1001, %v1451
        %v1739 = vsel %vm798, %v1002, %v1453
        %v1740 = vsel %vm798, %v1003, %v1455
        %v1741 = vsel %vm798, %v1004, %v1457
        %v1742 = vsel %vm798, %v1005, %v1459
        %v1743 = vsel %vm798, %v1006, %v1461
        %v1744 = vsel %vm798, %v1007, %v1463
        %v1745 = vsel %vm798, %v1008, %v1465
        %v1746 = vsel %vm798, %v1009, %v1467
        %v1747 = vsel %vm798, %v1010, %v1469
        %v1748 = vsel %vm798, %v1011, %v1471
        %v1749 = vsel %vm798, %v1012, %v1473
        %v1750 = vsel %vm798, %v1013, %v1475
        %v1751 = vsel %vm798, %v1014, %v1477
        %v1752 = vsel %vm798, %v1015, %v1479
        %v1753 = vsel %vm798, %v1016, %v1481
        %v1754 = vsel %vm798, %v1017, %v1483
        %v1755 = vsel %vm798, %v1018, %v1485
        %v1756 = vsel %vm798, %v1019, %v1487
        %v1757 = vsel %vm798, %v1020, %v1489
        %v1758 = vsel %vm798, %v1021, %v1491
        %v1759 = vsel %vm798, %v1022, %v1493
        %v1760 = vsel %vm798, %v1023, %v1495
        %v1761 = vsel %vm798, %v1024, %v1497
        %v1762 = vsel %vm798, %v1025, %v1499
        %v1763 = vsel %vm798, %v1026, %v1501
        %v1764 = vsel %vm798, %v1027, %v1503
        %v1765 = vsel %vm798, %v1028, %v1505
        %v1766 = vsel %vm798, %v1029, %v1507
        %v1767 = vsel %vm798, %v1030, %v1509
        %v1768 = vsel %vm798, %v1031, %v1511
        %v1769 = vsel %vm798, %v1032, %v1513
        %v1770 = vsel %vm798, %v1066, %v1579
        %v1771 = vsel %vm798, %v1067, %v1581
        %v1772 = vsel %vm798, %v1068, %v1583
        %v1773 = vsel %vm798, %v1069, %v1585
        %v1774 = vsel %vm798, %v1070, %v1587
        %v1775 = vsel %vm798, %v1071, %v1589
        %v1776 = vsel %vm798, %v1072, %v1591
        %v1777 = vsel %vm798, %v1073, %v1593
        %v1778 = vsel %vm798, %v1074, %v1595
        %v1779 = vsel %vm798, %v1075, %v1597
        %v1780 = vsel %vm798, %v1076, %v1599
        %v1781 = vsel %vm798, %v1077, %v1601
        %v1782 = vsel %vm798, %v1078, %v1603
        %v1783 = vsel %vm798, %v1079, %v1605
        %v1784 = vsel %vm798, %v1080, %v1607
        %v1785 = vsel %vm798, %v1081, %v1609
        %v1786 = vsel %vm798, %v1082, %v1611
        %v1787 = vsel %vm798, %v1083, %v1613
        %v1788 = vsel %vm798, %v1084, %v1615
        %v1789 = vsel %vm798, %v1085, %v1617
        %v1790 = vsel %vm798, %v1086, %v1619
        %v1791 = vsel %vm798, %v1087, %v1621
        %v1792 = vsel %vm798, %v1088, %v1623
        %v1793 = vsel %vm798, %v1089, %v1625
        %v1794 = vsel %vm798, %v1090, %v1627
        %v1795 = vsel %vm798, %v1091, %v1629
        %v1796 = vsel %vm798, %v1092, %v1631
        %v1797 = vsel %vm798, %v1093, %v1633
        %v1798 = vsel %vm798, %v1094, %v1635
        %v1799 = vsel %vm798, %v1095, %v1637
        %v1800 = vsel %vm798, %v1096, %v1639
        %v1801 = vsel %vm798, %v1097, %v1641
        %v1802 = vpack.c.bf16 %v1675, %v1674
        %v1803 = vpack.c.bf16 %v1707, %v1706
        %v1804 = vpack.c.bf16 %v1739, %v1738
        %v1805 = vpack.c.bf16 %v1771, %v1770
        %v1806 = vpack.c.bf16 %v1131, %v1130
        %v1807 = vpack.c.bf16 %v1677, %v1676
        %v1808 = vpack.c.bf16 %v1709, %v1708
        %v1809 = vpack.c.bf16 %v1741, %v1740
        %v1810 = vpack.c.bf16 %v1773, %v1772
        %v1811 = vpack.c.bf16 %v1133, %v1132
        %v1812 = vpack.c.bf16 %v1679, %v1678
        %v1813 = vpack.c.bf16 %v1711, %v1710
        %v1814 = vpack.c.bf16 %v1743, %v1742
        %v1815 = vpack.c.bf16 %v1775, %v1774
        %v1816 = vpack.c.bf16 %v1135, %v1134
        %v1817 = vpack.c.bf16 %v1681, %v1680
        %v1818 = vpack.c.bf16 %v1713, %v1712
        %v1819 = vpack.c.bf16 %v1745, %v1744
        %v1820 = vpack.c.bf16 %v1777, %v1776
        %v1821 = vpack.c.bf16 %v1137, %v1136
        %v1822 = vpack.c.bf16 %v1683, %v1682
        %v1823 = vpack.c.bf16 %v1715, %v1714
        %v1824 = vpack.c.bf16 %v1747, %v1746
        %v1825 = vpack.c.bf16 %v1779, %v1778
        %v1826 = vpack.c.bf16 %v1139, %v1138
        %v1827 = vpack.c.bf16 %v1685, %v1684
        %v1828 = vpack.c.bf16 %v1717, %v1716
        %v1829 = vpack.c.bf16 %v1749, %v1748
        %v1830 = vpack.c.bf16 %v1781, %v1780
        %v1831 = vpack.c.bf16 %v1141, %v1140
        %v1832 = vpack.c.bf16 %v1687, %v1686
        %v1833 = vpack.c.bf16 %v1719, %v1718
        %v1834 = vpack.c.bf16 %v1751, %v1750
        %v1835 = vpack.c.bf16 %v1783, %v1782
        %v1836 = vpack.c.bf16 %v1143, %v1142
        %v1837 = vpack.c.bf16 %v1689, %v1688
        %v1838 = vpack.c.bf16 %v1721, %v1720
        %v1839 = vpack.c.bf16 %v1753, %v1752
        %v1840 = vpack.c.bf16 %v1785, %v1784
        %v1841 = vpack.c.bf16 %v1145, %v1144
        %v1842 = vpack.c.bf16 %v1691, %v1690
        %v1843 = vpack.c.bf16 %v1723, %v1722
        %v1844 = vpack.c.bf16 %v1755, %v1754
        %v1845 = vpack.c.bf16 %v1787, %v1786
        %v1846 = vpack.c.bf16 %v1147, %v1146
        %v1847 = vpack.c.bf16 %v1693, %v1692
        %v1848 = vpack.c.bf16 %v1725, %v1724
        %v1849 = vpack.c.bf16 %v1757, %v1756
        %v1850 = vpack.c.bf16 %v1789, %v1788
        %v1851 = vpack.c.bf16 %v1149, %v1148
        %v1852 = vpack.c.bf16 %v1695, %v1694
        %v1853 = vpack.c.bf16 %v1727, %v1726
        %v1854 = vpack.c.bf16 %v1759, %v1758
        %v1855 = vpack.c.bf16 %v1791, %v1790
        %v1856 = vpack.c.bf16 %v1151, %v1150
        %v1857 = vpack.c.bf16 %v1697, %v1696
        %v1858 = vpack.c.bf16 %v1729, %v1728
        %v1859 = vpack.c.bf16 %v1761, %v1760
        %v1860 = vpack.c.bf16 %v1793, %v1792
        %v1861 = vpack.c.bf16 %v1153, %v1152
        %v1862 = vpack.c.bf16 %v1699, %v1698
        %v1863 = vpack.c.bf16 %v1731, %v1730
        %v1864 = vpack.c.bf16 %v1763, %v1762
        %v1865 = vpack.c.bf16 %v1795, %v1794
        %v1866 = vpack.c.bf16 %v1155, %v1154
        %v1867 = vpack.c.bf16 %v1701, %v1700
        %v1868 = vpack.c.bf16 %v1733, %v1732
        %v1869 = vpack.c.bf16 %v1765, %v1764
        %v1870 = vpack.c.bf16 %v1797, %v1796
        %v1871 = vpack.c.bf16 %v1157, %v1156
        %v1872 = vpack.c.bf16 %v1703, %v1702
        %v1873 = vpack.c.bf16 %v1735, %v1734
        %v1874 = vpack.c.bf16 %v1767, %v1766
        %v1875 = vpack.c.bf16 %v1799, %v1798
        %v1876 = vpack.c.bf16 %v1159, %v1158
        %v1877 = vpack.c.bf16 %v1705, %v1704
        %v1878 = vpack.c.bf16 %v1737, %v1736
        %v1879 = vpack.c.bf16 %v1769, %v1768
        %v1880 = vpack.c.bf16 %v1801, %v1800
        %v1881 = vpack.c.bf16 %v1161, %v1160
        %v1882 = vld [vmem:[%s3] sm:$0xf]
        %v1883 = vld [vmem:[%s3 + $0x4] sm:$0xf]
        %v1884 = vld [vmem:[%s3 + $0x8] sm:$0xf]
        %v1885 = vld [vmem:[%s3 + $0xc] sm:$0xf]
        %v1886 = vld [vmem:[%s3 + $0x10] sm:$0xf]
        %v1887 = vld [vmem:[%s3 + $0x14] sm:$0xf]
        %v1888 = vld [vmem:[%s3 + $0x18] sm:$0xf]
        %v1889 = vld [vmem:[%s3 + $0x1c] sm:$0xf]
        %v1890 = vld [vmem:[%s3 + $0x20] sm:$0xf]
        %v1891 = vld [vmem:[%s3 + $0x24] sm:$0xf]
        %v1892 = vld [vmem:[%s3 + $0x28] sm:$0xf]
        %v1893 = vld [vmem:[%s3 + $0x2c] sm:$0xf]
        %v1894 = vld [vmem:[%s3 + $0x30] sm:$0xf]
        %v1895 = vld [vmem:[%s3 + $0x34] sm:$0xf]
        %v1896 = vld [vmem:[%s3 + $0x38] sm:$0xf]
        %v1897 = vld [vmem:[%s3 + $0x3c] sm:$0xf]
        %v1898 = vld [vmem:[%s3 + $0x40] sm:$0xf]
        %v1899 = vld [vmem:[%s3 + $0x44] sm:$0xf]
        %v1900 = vld [vmem:[%s3 + $0x48] sm:$0xf]
        %v1901 = vld [vmem:[%s3 + $0x4c] sm:$0xf]
        %v1902 = vld [vmem:[%s3 + $0x50] sm:$0xf]
        %v1903 = vld [vmem:[%s3 + $0x54] sm:$0xf]
        %v1904 = vld [vmem:[%s3 + $0x58] sm:$0xf]
        %v1905 = vld [vmem:[%s3 + $0x5c] sm:$0xf]
        %v1906 = vld [vmem:[%s3 + $0x60] sm:$0xf]
        %v1907 = vld [vmem:[%s3 + $0x64] sm:$0xf]
        %v1908 = vld [vmem:[%s3 + $0x68] sm:$0xf]
        %v1909 = vld [vmem:[%s3 + $0x6c] sm:$0xf]
        %v1910 = vld [vmem:[%s3 + $0x70] sm:$0xf]
        %v1911 = vld [vmem:[%s3 + $0x74] sm:$0xf]
        %v1912 = vld [vmem:[%s3 + $0x78] sm:$0xf]
        %v1913 = vld [vmem:[%s3 + $0x7c] sm:$0xf]
        %v1914 = vld [vmem:[%s3 + $0x80] sm:$0xf]
        %v1915 = vld [vmem:[%s3 + $0x84] sm:$0xf]
        %v1916 = vld [vmem:[%s3 + $0x88] sm:$0xf]
        %v1917 = vld [vmem:[%s3 + $0x8c] sm:$0xf]
        %v1918 = vld [vmem:[%s3 + $0x90] sm:$0xf]
        %v1919 = vld [vmem:[%s3 + $0x94] sm:$0xf]
        %v1920 = vld [vmem:[%s3 + $0x98] sm:$0xf]
        %v1921 = vld [vmem:[%s3 + $0x9c] sm:$0xf]
        %v1922 = vld [vmem:[%s3 + $0xa0] sm:$0xf]
        %v1923 = vld [vmem:[%s3 + $0xa4] sm:$0xf]
        %v1924 = vld [vmem:[%s3 + $0xa8] sm:$0xf]
        %v1925 = vld [vmem:[%s3 + $0xac] sm:$0xf]
        %v1926 = vld [vmem:[%s3 + $0xb0] sm:$0xf]
        %v1927 = vld [vmem:[%s3 + $0xb4] sm:$0xf]
        %v1928 = vld [vmem:[%s3 + $0xb8] sm:$0xf]
        %v1929 = vld [vmem:[%s3 + $0xbc] sm:$0xf]
        %v1930 = vld [vmem:[%s3 + $0xc0] sm:$0xf]
        %v1931 = vld [vmem:[%s3 + $0xc4] sm:$0xf]
        %v1932 = vld [vmem:[%s3 + $0xc8] sm:$0xf]
        %v1933 = vld [vmem:[%s3 + $0xcc] sm:$0xf]
        %v1934 = vld [vmem:[%s3 + $0xd0] sm:$0xf]
        %v1935 = vld [vmem:[%s3 + $0xd4] sm:$0xf]
        %v1936 = vld [vmem:[%s3 + $0xd8] sm:$0xf]
        %v1937 = vld [vmem:[%s3 + $0xdc] sm:$0xf]
        %v1938 = vld [vmem:[%s3 + $0xe0] sm:$0xf]
        %v1939 = vld [vmem:[%s3 + $0xe4] sm:$0xf]
        %v1940 = vld [vmem:[%s3 + $0xe8] sm:$0xf]
        %v1941 = vld [vmem:[%s3 + $0xec] sm:$0xf]
        %v1942 = vld [vmem:[%s3 + $0xf0] sm:$0xf]
        %v1943 = vld [vmem:[%s3 + $0xf4] sm:$0xf]
        %v1944 = vld [vmem:[%s3 + $0xf8] sm:$0xf]
        %v1945 = vld [vmem:[%s3 + $0xfc] sm:$0xf]
        %v1946 = vld [vmem:[%s3 + $0x100] sm:$0xf]
        %v1947 = vld [vmem:[%s3 + $0x104] sm:$0xf]
        %v1948 = vld [vmem:[%s3 + $0x108] sm:$0xf]
        %v1949 = vld [vmem:[%s3 + $0x10c] sm:$0xf]
        %v1950 = vld [vmem:[%s3 + $0x110] sm:$0xf]
        %v1951 = vld [vmem:[%s3 + $0x114] sm:$0xf]
        %v1952 = vld [vmem:[%s3 + $0x118] sm:$0xf]
        %v1953 = vld [vmem:[%s3 + $0x11c] sm:$0xf]
        %v1954 = vld [vmem:[%s4] sm:$0x1]
        %v1956 = vlaneseq
        %v1957 = vshrl.u32 %v1956, 7
        %v1958 = vsub.s32 0, %v1957
        %v1959 = vrot.slane %v1954, %v1958
        %v2033 = vunpack.c.l.b16 %v1882
        %v2034 = vunpack.c.l.b16 %v1883
        %v2035 = vunpack.c.l.b16 %v1884
        %v2036 = vunpack.c.l.b16 %v1885
        %v2037 = vunpack.c.l.b16 %v1886
        %v2038 = vunpack.c.l.b16 %v1887
        %v2039 = vunpack.c.l.b16 %v1888
        %v2040 = vunpack.c.l.b16 %v1889
        %v2041 = vunpack.c.l.b16 %v1890
        %v2042 = vunpack.c.l.b16 %v1891
        %v2043 = vunpack.c.l.b16 %v1892
        %v2044 = vunpack.c.l.b16 %v1893
        %v2045 = vunpack.c.l.b16 %v1894
        %v2046 = vunpack.c.l.b16 %v1895
        %v2047 = vunpack.c.l.b16 %v1896
        %v2048 = vunpack.c.l.b16 %v1897
        %v2049 = vunpack.c.l.b16 %v1898
        %v2050 = vunpack.c.l.b16 %v1899
        %v2051 = vunpack.c.l.b16 %v1900
        %v2052 = vunpack.c.l.b16 %v1901
        %v2053 = vunpack.c.l.b16 %v1902
        %v2054 = vunpack.c.l.b16 %v1903
        %v2055 = vunpack.c.l.b16 %v1904
        %v2056 = vunpack.c.l.b16 %v1905
        %v2057 = vunpack.c.l.b16 %v1906
        %v2058 = vunpack.c.l.b16 %v1907
        %v2059 = vunpack.c.l.b16 %v1908
        %v2060 = vunpack.c.l.b16 %v1909
        %v2061 = vunpack.c.l.b16 %v1910
        %v2062 = vunpack.c.l.b16 %v1911
        %v2063 = vunpack.c.l.b16 %v1912
        %v2064 = vunpack.c.l.b16 %v1913
        %v2065 = vunpack.c.l.b16 %v1914
        %v2066 = vunpack.c.l.b16 %v1915
        %v2067 = vunpack.c.l.b16 %v1916
        %v2068 = vunpack.c.l.b16 %v1917
        %v2069 = vunpack.c.l.b16 %v1918
        %v2070 = vunpack.c.l.b16 %v1919
        %v2071 = vunpack.c.l.b16 %v1920
        %v2072 = vunpack.c.l.b16 %v1921
        %v2073 = vunpack.c.l.b16 %v1922
        %v2074 = vunpack.c.l.b16 %v1923
        %v2075 = vunpack.c.l.b16 %v1924
        %v2076 = vunpack.c.l.b16 %v1925
        %v2077 = vunpack.c.l.b16 %v1926
        %v2078 = vunpack.c.l.b16 %v1927
        %v2079 = vunpack.c.l.b16 %v1928
        %v2080 = vunpack.c.l.b16 %v1929
        %v2081 = vunpack.c.l.b16 %v1930
        %v2082 = vunpack.c.l.b16 %v1931
        %v2083 = vunpack.c.l.b16 %v1932
        %v2084 = vunpack.c.l.b16 %v1933
        %v2085 = vunpack.c.l.b16 %v1934
        %v2086 = vunpack.c.l.b16 %v1935
        %v2087 = vunpack.c.l.b16 %v1936
        %v2088 = vunpack.c.l.b16 %v1937
        %v2089 = vunpack.c.l.b16 %v1938
        %v2090 = vunpack.c.l.b16 %v1939
        %v2091 = vunpack.c.l.b16 %v1940
        %v2092 = vunpack.c.l.b16 %v1941
        %v2093 = vunpack.c.l.b16 %v1942
        %v2094 = vunpack.c.l.b16 %v1943
        %v2095 = vunpack.c.l.b16 %v1944
        %v2096 = vunpack.c.l.b16 %v1945
        %v2097 = vunpack.c.l.b16 %v1946
        %v2098 = vunpack.c.l.b16 %v1947
        %v2099 = vunpack.c.l.b16 %v1948
        %v2100 = vunpack.c.l.b16 %v1949
        %v2101 = vunpack.c.l.b16 %v1950
        %v2102 = vunpack.c.l.b16 %v1951
        %v2103 = vunpack.c.l.b16 %v1952
        %v2104 = vunpack.c.l.b16 %v1953
        %v2105 = vpack.c.b16 %v2034, %v2033
        %v2106 = vpack.c.b16 %v2036, %v2035
        %v2107 = vpack.c.b16 %v2038, %v2037
        %v2108 = vpack.c.b16 %v2040, %v2039
        %v2109 = vpack.c.b16 %v2042, %v2041
        %v2110 = vpack.c.b16 %v2044, %v2043
        %v2111 = vpack.c.b16 %v2046, %v2045
        %v2112 = vpack.c.b16 %v2048, %v2047
        %v2113 = vpack.c.b16 %v2050, %v2049
        %v2114 = vpack.c.b16 %v2052, %v2051
        %v2115 = vpack.c.b16 %v2054, %v2053
        %v2116 = vpack.c.b16 %v2056, %v2055
        %v2117 = vpack.c.b16 %v2058, %v2057
        %v2118 = vpack.c.b16 %v2060, %v2059
        %v2119 = vpack.c.b16 %v2062, %v2061
        %v2120 = vpack.c.b16 %v2064, %v2063
        %v2121 = vpack.c.b16 %v2066, %v2065
        %v2122 = vpack.c.b16 %v2068, %v2067
        %v2123 = vpack.c.b16 %v2070, %v2069
        %v2124 = vpack.c.b16 %v2072, %v2071
        %v2125 = vpack.c.b16 %v2074, %v2073
        %v2126 = vpack.c.b16 %v2076, %v2075
        %v2127 = vpack.c.b16 %v2078, %v2077
        %v2128 = vpack.c.b16 %v2080, %v2079
        %v2129 = vpack.c.b16 %v2082, %v2081
        %v2130 = vpack.c.b16 %v2084, %v2083
        %v2131 = vpack.c.b16 %v2086, %v2085
        %v2132 = vpack.c.b16 %v2088, %v2087
        %v2133 = vpack.c.b16 %v2090, %v2089
        %v2134 = vpack.c.b16 %v2092, %v2091
        %v2135 = vpack.c.b16 %v2094, %v2093
        %v2136 = vpack.c.b16 %v2096, %v2095
        %v2137 = vpack.c.b16 %v2098, %v2097
        %v2138 = vpack.c.b16 %v2100, %v2099
        %v2139 = vpack.c.b16 %v2102, %v2101
        %v2140 = vpack.c.b16 %v2104, %v2103
        %v2178 = vsel %vm798, %v1806, 0
        %v2181 = vsel %vm798, %v1811, 0
        %v2184 = vsel %vm798, %v1816, 0
        %v2187 = vsel %vm798, %v1821, 0
        %v2190 = vsel %vm798, %v1826, 0
        %v2193 = vsel %vm798, %v1831, 0
        %v2196 = vsel %vm798, %v1836, 0
        %v2199 = vsel %vm798, %v1841, 0
        %v2202 = vsel %vm798, %v1846, 0
        %v2205 = vsel %vm798, %v1851, 0
        %v2208 = vsel %vm798, %v1856, 0
        %v2211 = vsel %vm798, %v1861, 0
        %v2214 = vsel %vm798, %v1866, 0
        %v2217 = vsel %vm798, %v1871, 0
        %v2220 = vsel %vm798, %v1876, 0
        %v2223 = vsel %vm798, %v1881, 0
        %2225 = vmatprep.subr.bf16.mxu0 0
        %2226 = vmatpush1.bf16.msra.mxu0 %v2105
        %2227 = vmatprep.subr.bf16.mxu0 0
        %2228 = vmatpush1.bf16.msra.mxu0 %v2106
        %2229 = vmatprep.subr.bf16.mxu0 0
        %2230 = vmatpush1.bf16.msra.mxu0 %v2107
        %2231 = vmatprep.subr.bf16.mxu0 0
        %2232 = vmatpush1.bf16.msra.mxu0 %v2108
        %2233 = vmatprep.subr.bf16.mxu0 0
        %2234 = vmatpush1.bf16.msra.mxu0 %v2109
        %2235 = vmatprep.subr.bf16.mxu0 0
        %2236 = vmatpush1.bf16.msra.mxu0 %v2110
        %2237 = vmatprep.subr.bf16.mxu0 0
        %2238 = vmatpush1.bf16.msra.mxu0 %v2111
        %2239 = vmatprep.subr.bf16.mxu0 0
        %2240 = vmatpush1.bf16.msra.mxu0 %v2112
        %2241 = vmatprep.subr.bf16.mxu0 0
        %2242 = vmatpush1.bf16.msra.mxu0 %v2113
        %2243 = vmatprep.subr.bf16.mxu0 0
        %2244 = vmatpush1.bf16.msra.mxu0 %v2114
        %2245 = vmatprep.subr.bf16.mxu0 0
        %2246 = vmatpush1.bf16.msra.mxu0 %v2115
        %2247 = vmatprep.subr.bf16.mxu0 0
        %2248 = vmatpush1.bf16.msra.mxu0 %v2116
        %2249 = vmatprep.subr.bf16.mxu0 0
        %2250 = vmatpush1.bf16.msra.mxu0 %v2117
        %2251 = vmatprep.subr.bf16.mxu0 0
        %2252 = vmatpush1.bf16.msra.mxu0 %v2118
        %2253 = vmatprep.subr.bf16.mxu0 0
        %2254 = vmatpush1.bf16.msra.mxu0 %v2119
        %2255 = vmatprep.subr.bf16.mxu0 0
        %2256 = vmatpush1.bf16.msra.mxu0 %v2120
        %2257 = vmatprep.mubr.bf16.mxu0 %v1803
        %2258 = vmatmul.mubr.bf16.gmra.mrb[0].mxu0 %v1802
        %v2259 = vpop.f32.mrb[0].mxu0
        %v2260 = vadd.f32 %v1959, %v2259
        %v2261 = vpop.f32.mrb[0].mxu0
        %v2262 = vpop.f32.mrb[0].mxu0
        %v2263 = vadd.f32 %v1959, %v2262
        %v2264 = vpop.f32.mrb[0].mxu0
        %2265 = vmatprep.mubr.bf16.mxu0 %v1808
        %2266 = vmatmul.mubr.bf16.gmra.mrb[0].mxu0 %v1807
        %v2267 = vpop.f32.mrb[0].mxu0
        %v2268 = vadd.f32 %v1959, %v2267
        %v2269 = vpop.f32.mrb[0].mxu0
        %v2270 = vpop.f32.mrb[0].mxu0
        %v2271 = vadd.f32 %v1959, %v2270
        %v2272 = vpop.f32.mrb[0].mxu0
        %2273 = vmatprep.mubr.bf16.mxu0 %v1813
        %2274 = vmatmul.mubr.bf16.gmra.mrb[0].mxu0 %v1812
        %v2275 = vpop.f32.mrb[0].mxu0
        %v2276 = vadd.f32 %v1959, %v2275
        %v2277 = vpop.f32.mrb[0].mxu0
        %v2278 = vpop.f32.mrb[0].mxu0
        %v2279 = vadd.f32 %v1959, %v2278
        %v2280 = vpop.f32.mrb[0].mxu0
        %2281 = vmatprep.mubr.bf16.mxu0 %v1818
        %2282 = vmatmul.mubr.bf16.gmra.mrb[0].mxu0 %v1817
        %v2283 = vpop.f32.mrb[0].mxu0
        %v2284 = vadd.f32 %v1959, %v2283
        %v2285 = vpop.f32.mrb[0].mxu0
        %v2286 = vpop.f32.mrb[0].mxu0
        %v2287 = vadd.f32 %v1959, %v2286
        %v2288 = vpop.f32.mrb[0].mxu0
        %2289 = vmatprep.mubr.bf16.mxu0 %v1823
        %2290 = vmatmul.mubr.bf16.gmra.mrb[0].mxu0 %v1822
        %v2291 = vpop.f32.mrb[0].mxu0
        %v2292 = vadd.f32 %v1959, %v2291
        %v2293 = vpop.f32.mrb[0].mxu0
        %v2294 = vpop.f32.mrb[0].mxu0
        %v2295 = vadd.f32 %v1959, %v2294
        %v2296 = vpop.f32.mrb[0].mxu0
        %2297 = vmatprep.mubr.bf16.mxu0 %v1828
        %2298 = vmatmul.mubr.bf16.gmra.mrb[0].mxu0 %v1827
        %v2299 = vpop.f32.mrb[0].mxu0
        %v2300 = vadd.f32 %v1959, %v2299
        %v2301 = vpop.f32.mrb[0].mxu0
        %v2302 = vpop.f32.mrb[0].mxu0
        %v2303 = vadd.f32 %v1959, %v2302
        %v2304 = vpop.f32.mrb[0].mxu0
        %2305 = vmatprep.mubr.bf16.mxu0 %v1833
        %2306 = vmatmul.mubr.bf16.gmra.mrb[0].mxu0 %v1832
        %v2307 = vpop.f32.mrb[0].mxu0
        %v2308 = vadd.f32 %v1959, %v2307
        %v2309 = vpop.f32.mrb[0].mxu0
        %v2310 = vpop.f32.mrb[0].mxu0
        %v2311 = vadd.f32 %v1959, %v2310
        %v2312 = vpop.f32.mrb[0].mxu0
        %2313 = vmatprep.mubr.bf16.mxu0 %v1838
        %2314 = vmatmul.mubr.bf16.gmra.mrb[0].mxu0 %v1837
        %v2315 = vpop.f32.mrb[0].mxu0
        %v2316 = vadd.f32 %v1959, %v2315
        %v2317 = vpop.f32.mrb[0].mxu0
        %v2318 = vpop.f32.mrb[0].mxu0
        %v2319 = vadd.f32 %v1959, %v2318
        %v2320 = vpop.f32.mrb[0].mxu0
        %2321 = vmatprep.mubr.bf16.mxu0 %v1843
        %2322 = vmatmul.mubr.bf16.gmra.mrb[0].mxu0 %v1842
        %v2323 = vpop.f32.mrb[0].mxu0
        %v2324 = vadd.f32 %v1959, %v2323
        %v2325 = vpop.f32.mrb[0].mxu0
        %v2326 = vpop.f32.mrb[0].mxu0
        %v2327 = vadd.f32 %v1959, %v2326
        %v2328 = vpop.f32.mrb[0].mxu0
        %2329 = vmatprep.mubr.bf16.mxu0 %v1848
        %2330 = vmatmul.mubr.bf16.gmra.mrb[0].mxu0 %v1847
        %v2331 = vpop.f32.mrb[0].mxu0
        %v2332 = vadd.f32 %v1959, %v2331
        %v2333 = vpop.f32.mrb[0].mxu0
        %v2334 = vpop.f32.mrb[0].mxu0
        %v2335 = vadd.f32 %v1959, %v2334
        %v2336 = vpop.f32.mrb[0].mxu0
        %2337 = vmatprep.mubr.bf16.mxu0 %v1853
        %2338 = vmatmul.mubr.bf16.gmra.mrb[0].mxu0 %v1852
        %v2339 = vpop.f32.mrb[0].mxu0
        %v2340 = vadd.f32 %v1959, %v2339
        %v2341 = vpop.f32.mrb[0].mxu0
        %v2342 = vpop.f32.mrb[0].mxu0
        %v2343 = vadd.f32 %v1959, %v2342
        %v2344 = vpop.f32.mrb[0].mxu0
        %2345 = vmatprep.mubr.bf16.mxu0 %v1858
        %2346 = vmatmul.mubr.bf16.gmra.mrb[0].mxu0 %v1857
        %v2347 = vpop.f32.mrb[0].mxu0
        %v2348 = vadd.f32 %v1959, %v2347
        %v2349 = vpop.f32.mrb[0].mxu0
        %v2350 = vpop.f32.mrb[0].mxu0
        %v2351 = vadd.f32 %v1959, %v2350
        %v2352 = vpop.f32.mrb[0].mxu0
        %2353 = vmatprep.mubr.bf16.mxu0 %v1863
        %2354 = vmatmul.mubr.bf16.gmra.mrb[0].mxu0 %v1862
        %v2355 = vpop.f32.mrb[0].mxu0
        %v2356 = vadd.f32 %v1959, %v2355
        %v2357 = vpop.f32.mrb[0].mxu0
        %v2358 = vpop.f32.mrb[0].mxu0
        %v2359 = vadd.f32 %v1959, %v2358
        %v2360 = vpop.f32.mrb[0].mxu0
        %2361 = vmatprep.mubr.bf16.mxu0 %v1868
        %2362 = vmatmul.mubr.bf16.gmra.mrb[0].mxu0 %v1867
        %v2363 = vpop.f32.mrb[0].mxu0
        %v2364 = vadd.f32 %v1959, %v2363
        %v2365 = vpop.f32.mrb[0].mxu0
        %v2366 = vpop.f32.mrb[0].mxu0
        %v2367 = vadd.f32 %v1959, %v2366
        %v2368 = vpop.f32.mrb[0].mxu0
        %2369 = vmatprep.mubr.bf16.mxu0 %v1873
        %2370 = vmatmul.mubr.bf16.gmra.mrb[0].mxu0 %v1872
        %v2371 = vpop.f32.mrb[0].mxu0
        %v2372 = vadd.f32 %v1959, %v2371
        %v2373 = vpop.f32.mrb[0].mxu0
        %v2374 = vpop.f32.mrb[0].mxu0
        %v2375 = vadd.f32 %v1959, %v2374
        %v2376 = vpop.f32.mrb[0].mxu0
        %2377 = vmatprep.mubr.bf16.mxu0 %v1878
        %2378 = vmatmul.mubr.bf16.gmra.mrb[0].mxu0 %v1877
        %v2379 = vpop.f32.mrb[0].mxu0
        %v2380 = vadd.f32 %v1959, %v2379
        %v2381 = vpop.f32.mrb[0].mxu0
        %v2382 = vpop.f32.mrb[0].mxu0
        %v2383 = vadd.f32 %v1959, %v2382
        %v2384 = vpop.f32.mrb[0].mxu0
        %2385 = vdwg.mxu0
        %2386 = vmatprep.subr.bf16.mxu0 0
        %2387 = vmatpush1.bf16.msra.mxu0 %v2121
        %2388 = vmatprep.subr.bf16.mxu0 0
        %2389 = vmatpush1.bf16.msra.mxu0 %v2122
        %2390 = vmatprep.subr.bf16.mxu0 0
        %2391 = vmatpush1.bf16.msra.mxu0 %v2123
        %2392 = vmatprep.subr.bf16.mxu0 0
        %2393 = vmatpush1.bf16.msra.mxu0 %v2124
        %2394 = vmatprep.subr.bf16.mxu0 0
        %2395 = vmatpush1.bf16.msra.mxu0 %v2125
        %2396 = vmatprep.subr.bf16.mxu0 0
        %2397 = vmatpush1.bf16.msra.mxu0 %v2126
        %2398 = vmatprep.subr.bf16.mxu0 0
        %2399 = vmatpush1.bf16.msra.mxu0 %v2127
        %2400 = vmatprep.subr.bf16.mxu0 0
        %2401 = vmatpush1.bf16.msra.mxu0 %v2128
        %2402 = vmatprep.subr.bf16.mxu0 0
        %2403 = vmatpush1.bf16.msra.mxu0 %v2129
        %2404 = vmatprep.subr.bf16.mxu0 0
        %2405 = vmatpush1.bf16.msra.mxu0 %v2130
        %2406 = vmatprep.subr.bf16.mxu0 0
        %2407 = vmatpush1.bf16.msra.mxu0 %v2131
        %2408 = vmatprep.subr.bf16.mxu0 0
        %2409 = vmatpush1.bf16.msra.mxu0 %v2132
        %2410 = vmatprep.subr.bf16.mxu0 0
        %2411 = vmatpush1.bf16.msra.mxu0 %v2133
        %2412 = vmatprep.subr.bf16.mxu0 0
        %2413 = vmatpush1.bf16.msra.mxu0 %v2134
        %2414 = vmatprep.subr.bf16.mxu0 0
        %2415 = vmatpush1.bf16.msra.mxu0 %v2135
        %2416 = vmatprep.subr.bf16.mxu0 0
        %2417 = vmatpush1.bf16.msra.mxu0 %v2136
        %2418 = vmatprep.mubr.bf16.mxu0 %v1805
        %2419 = vmatmul.mubr.bf16.gmra.mrb[0].mxu0 %v1804
        %v2420 = vpop.f32.mrb[0].mxu0
        %v2421 = vadd.f32 %v2260, %v2420
        %v2422 = vpop.f32.mrb[0].mxu0
        %v2423 = vpop.f32.mrb[0].mxu0
        %v2424 = vadd.f32 %v2263, %v2423
        %v2425 = vpop.f32.mrb[0].mxu0
        %2426 = vmatprep.mubr.bf16.mxu0 %v1810
        %2427 = vmatmul.mubr.bf16.gmra.mrb[0].mxu0 %v1809
        %v2428 = vpop.f32.mrb[0].mxu0
        %v2429 = vadd.f32 %v2268, %v2428
        %v2430 = vpop.f32.mrb[0].mxu0
        %v2431 = vpop.f32.mrb[0].mxu0
        %v2432 = vadd.f32 %v2271, %v2431
        %v2433 = vpop.f32.mrb[0].mxu0
        %2434 = vmatprep.mubr.bf16.mxu0 %v1815
        %2435 = vmatmul.mubr.bf16.gmra.mrb[0].mxu0 %v1814
        %v2436 = vpop.f32.mrb[0].mxu0
        %v2437 = vadd.f32 %v2276, %v2436
        %v2438 = vpop.f32.mrb[0].mxu0
        %v2439 = vpop.f32.mrb[0].mxu0
        %v2440 = vadd.f32 %v2279, %v2439
        %v2441 = vpop.f32.mrb[0].mxu0
        %2442 = vmatprep.mubr.bf16.mxu0 %v1820
        %2443 = vmatmul.mubr.bf16.gmra.mrb[0].mxu0 %v1819
        %v2444 = vpop.f32.mrb[0].mxu0
        %v2445 = vadd.f32 %v2284, %v2444
        %v2446 = vpop.f32.mrb[0].mxu0
        %v2447 = vpop.f32.mrb[0].mxu0
        %v2448 = vadd.f32 %v2287, %v2447
        %v2449 = vpop.f32.mrb[0].mxu0
        %2450 = vmatprep.mubr.bf16.mxu0 %v1825
        %2451 = vmatmul.mubr.bf16.gmra.mrb[0].mxu0 %v1824
        %v2452 = vpop.f32.mrb[0].mxu0
        %v2453 = vadd.f32 %v2292, %v2452
        %v2454 = vpop.f32.mrb[0].mxu0
        %v2455 = vpop.f32.mrb[0].mxu0
        %v2456 = vadd.f32 %v2295, %v2455
        %v2457 = vpop.f32.mrb[0].mxu0
        %2458 = vmatprep.mubr.bf16.mxu0 %v1830
        %2459 = vmatmul.mubr.bf16.gmra.mrb[0].mxu0 %v1829
        %v2460 = vpop.f32.mrb[0].mxu0
        %v2461 = vadd.f32 %v2300, %v2460
        %v2462 = vpop.f32.mrb[0].mxu0
        %v2463 = vpop.f32.mrb[0].mxu0
        %v2464 = vadd.f32 %v2303, %v2463
        %v2465 = vpop.f32.mrb[0].mxu0
        %2466 = vmatprep.mubr.bf16.mxu0 %v1835
        %2467 = vmatmul.mubr.bf16.gmra.mrb[0].mxu0 %v1834
        %v2468 = vpop.f32.mrb[0].mxu0
        %v2469 = vadd.f32 %v2308, %v2468
        %v2470 = vpop.f32.mrb[0].mxu0
        %v2471 = vpop.f32.mrb[0].mxu0
        %v2472 = vadd.f32 %v2311, %v2471
        %v2473 = vpop.f32.mrb[0].mxu0
        %2474 = vmatprep.mubr.bf16.mxu0 %v1840
        %2475 = vmatmul.mubr.bf16.gmra.mrb[0].mxu0 %v1839
        %v2476 = vpop.f32.mrb[0].mxu0
        %v2477 = vadd.f32 %v2316, %v2476
        %v2478 = vpop.f32.mrb[0].mxu0
        %v2479 = vpop.f32.mrb[0].mxu0
        %v2480 = vadd.f32 %v2319, %v2479
        %v2481 = vpop.f32.mrb[0].mxu0
        %2482 = vmatprep.mubr.bf16.mxu0 %v1845
        %2483 = vmatmul.mubr.bf16.gmra.mrb[0].mxu0 %v1844
        %v2484 = vpop.f32.mrb[0].mxu0
        %v2485 = vadd.f32 %v2324, %v2484
        %v2486 = vpop.f32.mrb[0].mxu0
        %v2487 = vpop.f32.mrb[0].mxu0
        %v2488 = vadd.f32 %v2327, %v2487
        %v2489 = vpop.f32.mrb[0].mxu0
        %2490 = vmatprep.mubr.bf16.mxu0 %v1850
        %2491 = vmatmul.mubr.bf16.gmra.mrb[0].mxu0 %v1849
        %v2492 = vpop.f32.mrb[0].mxu0
        %v2493 = vadd.f32 %v2332, %v2492
        %v2494 = vpop.f32.mrb[0].mxu0
        %v2495 = vpop.f32.mrb[0].mxu0
        %v2496 = vadd.f32 %v2335, %v2495
        %v2497 = vpop.f32.mrb[0].mxu0
        %2498 = vmatprep.mubr.bf16.mxu0 %v1855
        %2499 = vmatmul.mubr.bf16.gmra.mrb[0].mxu0 %v1854
        %v2500 = vpop.f32.mrb[0].mxu0
        %v2501 = vadd.f32 %v2340, %v2500
        %v2502 = vpop.f32.mrb[0].mxu0
        %v2503 = vpop.f32.mrb[0].mxu0
        %v2504 = vadd.f32 %v2343, %v2503
        %v2505 = vpop.f32.mrb[0].mxu0
        %2506 = vmatprep.mubr.bf16.mxu0 %v1860
        %2507 = vmatmul.mubr.bf16.gmra.mrb[0].mxu0 %v1859
        %v2508 = vpop.f32.mrb[0].mxu0
        %v2509 = vadd.f32 %v2348, %v2508
        %v2510 = vpop.f32.mrb[0].mxu0
        %v2511 = vpop.f32.mrb[0].mxu0
        %v2512 = vadd.f32 %v2351, %v2511
        %v2513 = vpop.f32.mrb[0].mxu0
        %2514 = vmatprep.mubr.bf16.mxu0 %v1865
        %2515 = vmatmul.mubr.bf16.gmra.mrb[0].mxu0 %v1864
        %v2516 = vpop.f32.mrb[0].mxu0
        %v2517 = vadd.f32 %v2356, %v2516
        %v2518 = vpop.f32.mrb[0].mxu0
        %v2519 = vpop.f32.mrb[0].mxu0
        %v2520 = vadd.f32 %v2359, %v2519
        %v2521 = vpop.f32.mrb[0].mxu0
        %2522 = vmatprep.mubr.bf16.mxu0 %v1870
        %2523 = vmatmul.mubr.bf16.gmra.mrb[0].mxu0 %v1869
        %v2524 = vpop.f32.mrb[0].mxu0
        %v2525 = vadd.f32 %v2364, %v2524
        %v2526 = vpop.f32.mrb[0].mxu0
        %v2527 = vpop.f32.mrb[0].mxu0
        %v2528 = vadd.f32 %v2367, %v2527
        %v2529 = vpop.f32.mrb[0].mxu0
        %2530 = vmatprep.mubr.bf16.mxu0 %v1875
        %2531 = vmatmul.mubr.bf16.gmra.mrb[0].mxu0 %v1874
        %v2532 = vpop.f32.mrb[0].mxu0
        %v2533 = vadd.f32 %v2372, %v2532
        %v2534 = vpop.f32.mrb[0].mxu0
        %v2535 = vpop.f32.mrb[0].mxu0
        %v2536 = vadd.f32 %v2375, %v2535
        %v2537 = vpop.f32.mrb[0].mxu0
        %2538 = vmatprep.mubr.bf16.mxu0 %v1880
        %2539 = vmatmul.mubr.bf16.gmra.mrb[0].mxu0 %v1879
        %v2540 = vpop.f32.mrb[0].mxu0
        %v2541 = vadd.f32 %v2380, %v2540
        %v2542 = vpop.f32.mrb[0].mxu0
        %v2543 = vpop.f32.mrb[0].mxu0
        %v2544 = vadd.f32 %v2383, %v2543
        %v2545 = vpop.f32.mrb[0].mxu0
        %2546 = vdwg.mxu0
        %2547 = vmatprep.subr.bf16.mxu0 0
        %2548 = vmatpush1.bf16.msra.mxu0 %v2137
        %2549 = vmatprep.subr.bf16.mxu0 0
        %2550 = vmatpush1.bf16.msra.mxu0 %v2138
        %2551 = vmatprep.subr.bf16.mxu0 0
        %2552 = vmatpush1.bf16.msra.mxu0 %v2139
        %2553 = vmatprep.subr.bf16.mxu0 0
        %2554 = vmatpush1.bf16.msra.mxu0 %v2140
        %2555 = vmatprep.subr.bf16.mxu0 0
        %2556 = vmatpush1.bf16.msra.mxu0 0
        %2557 = vmatprep.subr.bf16.mxu0 0
        %2558 = vmatpush1.bf16.msra.mxu0 0
        %2559 = vmatprep.subr.bf16.mxu0 0
        %2560 = vmatpush1.bf16.msra.mxu0 0
        %2561 = vmatprep.subr.bf16.mxu0 0
        %2562 = vmatpush1.bf16.msra.mxu0 0
        %2563 = vmatprep.subr.bf16.mxu0 0
        %2564 = vmatpush1.bf16.msra.mxu0 0
        %2565 = vmatprep.subr.bf16.mxu0 0
        %2566 = vmatpush1.bf16.msra.mxu0 0
        %2567 = vmatprep.subr.bf16.mxu0 0
        %2568 = vmatpush1.bf16.msra.mxu0 0
        %2569 = vmatprep.subr.bf16.mxu0 0
        %2570 = vmatpush1.bf16.msra.mxu0 0
        %2571 = vmatprep.subr.bf16.mxu0 0
        %2572 = vmatpush1.bf16.msra.mxu0 0
        %2573 = vmatprep.subr.bf16.mxu0 0
        %2574 = vmatpush1.bf16.msra.mxu0 0
        %2575 = vmatprep.subr.bf16.mxu0 0
        %2576 = vmatpush1.bf16.msra.mxu0 0
        %2577 = vmatprep.subr.bf16.mxu0 0
        %2578 = vmatpush1.bf16.msra.mxu0 0
        %2579 = vmatprep.mubr.bf16.mxu0 0
        %2580 = vmatmul.mubr.bf16.gmra.mrb[0].mxu0 %v2178
        %v2581 = vpop.f32.mrb[0].mxu0
        %v2582 = vadd.f32 %v2421, %v2581
        %v2583 = vpop.f32.mrb[0].mxu0
        %v2584 = vpop.f32.mrb[0].mxu0
        %v2585 = vadd.f32 %v2424, %v2584
        %v2586 = vpop.f32.mrb[0].mxu0
        %2587 = vmatprep.mubr.bf16.mxu0 0
        %2588 = vmatmul.mubr.bf16.gmra.mrb[0].mxu0 %v2181
        %v2589 = vpop.f32.mrb[0].mxu0
        %v2590 = vadd.f32 %v2429, %v2589
        %v2591 = vpop.f32.mrb[0].mxu0
        %v2592 = vpop.f32.mrb[0].mxu0
        %v2593 = vadd.f32 %v2432, %v2592
        %v2594 = vpop.f32.mrb[0].mxu0
        %2595 = vmatprep.mubr.bf16.mxu0 0
        %2596 = vmatmul.mubr.bf16.gmra.mrb[0].mxu0 %v2184
        %v2597 = vpop.f32.mrb[0].mxu0
        %v2598 = vadd.f32 %v2437, %v2597
        %v2599 = vpop.f32.mrb[0].mxu0
        %v2600 = vpop.f32.mrb[0].mxu0
        %v2601 = vadd.f32 %v2440, %v2600
        %v2602 = vpop.f32.mrb[0].mxu0
        %2603 = vmatprep.mubr.bf16.mxu0 0
        %2604 = vmatmul.mubr.bf16.gmra.mrb[0].mxu0 %v2187
        %v2605 = vpop.f32.mrb[0].mxu0
        %v2606 = vadd.f32 %v2445, %v2605
        %v2607 = vpop.f32.mrb[0].mxu0
        %v2608 = vpop.f32.mrb[0].mxu0
        %v2609 = vadd.f32 %v2448, %v2608
        %v2610 = vpop.f32.mrb[0].mxu0
        %2611 = vmatprep.mubr.bf16.mxu0 0
        %2612 = vmatmul.mubr.bf16.gmra.mrb[0].mxu0 %v2190
        %v2613 = vpop.f32.mrb[0].mxu0
        %v2614 = vadd.f32 %v2453, %v2613
        %v2615 = vpop.f32.mrb[0].mxu0
        %v2616 = vpop.f32.mrb[0].mxu0
        %v2617 = vadd.f32 %v2456, %v2616
        %v2618 = vpop.f32.mrb[0].mxu0
        %2619 = vmatprep.mubr.bf16.mxu0 0
        %2620 = vmatmul.mubr.bf16.gmra.mrb[0].mxu0 %v2193
        %v2621 = vpop.f32.mrb[0].mxu0
        %v2622 = vadd.f32 %v2461, %v2621
        %v2623 = vpop.f32.mrb[0].mxu0
        %v2624 = vpop.f32.mrb[0].mxu0
        %v2625 = vadd.f32 %v2464, %v2624
        %v2626 = vpop.f32.mrb[0].mxu0
        %2627 = vmatprep.mubr.bf16.mxu0 0
        %2628 = vmatmul.mubr.bf16.gmra.mrb[0].mxu0 %v2196
        %v2629 = vpop.f32.mrb[0].mxu0
        %v2630 = vadd.f32 %v2469, %v2629
        %v2631 = vpop.f32.mrb[0].mxu0
        %v2632 = vpop.f32.mrb[0].mxu0
        %v2633 = vadd.f32 %v2472, %v2632
        %v2634 = vpop.f32.mrb[0].mxu0
        %2635 = vmatprep.mubr.bf16.mxu0 0
        %2636 = vmatmul.mubr.bf16.gmra.mrb[0].mxu0 %v2199
        %v2637 = vpop.f32.mrb[0].mxu0
        %v2638 = vadd.f32 %v2477, %v2637
        %v2639 = vpop.f32.mrb[0].mxu0
        %v2640 = vpop.f32.mrb[0].mxu0
        %v2641 = vadd.f32 %v2480, %v2640
        %v2642 = vpop.f32.mrb[0].mxu0
        %2643 = vmatprep.mubr.bf16.mxu0 0
        %2644 = vmatmul.mubr.bf16.gmra.mrb[0].mxu0 %v2202
        %v2645 = vpop.f32.mrb[0].mxu0
        %v2646 = vadd.f32 %v2485, %v2645
        %v2647 = vpop.f32.mrb[0].mxu0
        %v2648 = vpop.f32.mrb[0].mxu0
        %v2649 = vadd.f32 %v2488, %v2648
        %v2650 = vpop.f32.mrb[0].mxu0
        %2651 = vmatprep.mubr.bf16.mxu0 0
        %2652 = vmatmul.mubr.bf16.gmra.mrb[0].mxu0 %v2205
        %v2653 = vpop.f32.mrb[0].mxu0
        %v2654 = vadd.f32 %v2493, %v2653
        %v2655 = vpop.f32.mrb[0].mxu0
        %v2656 = vpop.f32.mrb[0].mxu0
        %v2657 = vadd.f32 %v2496, %v2656
        %v2658 = vpop.f32.mrb[0].mxu0
        %2659 = vmatprep.mubr.bf16.mxu0 0
        %2660 = vmatmul.mubr.bf16.gmra.mrb[0].mxu0 %v2208
        %v2661 = vpop.f32.mrb[0].mxu0
        %v2662 = vadd.f32 %v2501, %v2661
        %v2663 = vpop.f32.mrb[0].mxu0
        %v2664 = vpop.f32.mrb[0].mxu0
        %v2665 = vadd.f32 %v2504, %v2664
        %v2666 = vpop.f32.mrb[0].mxu0
        %2667 = vmatprep.mubr.bf16.mxu0 0
        %2668 = vmatmul.mubr.bf16.gmra.mrb[0].mxu0 %v2211
        %v2669 = vpop.f32.mrb[0].mxu0
        %v2670 = vadd.f32 %v2509, %v2669
        %v2671 = vpop.f32.mrb[0].mxu0
        %v2672 = vpop.f32.mrb[0].mxu0
        %v2673 = vadd.f32 %v2512, %v2672
        %v2674 = vpop.f32.mrb[0].mxu0
        %2675 = vmatprep.mubr.bf16.mxu0 0
        %2676 = vmatmul.mubr.bf16.gmra.mrb[0].mxu0 %v2214
        %v2677 = vpop.f32.mrb[0].mxu0
        %v2678 = vadd.f32 %v2517, %v2677
        %v2679 = vpop.f32.mrb[0].mxu0
        %v2680 = vpop.f32.mrb[0].mxu0
        %v2681 = vadd.f32 %v2520, %v2680
        %v2682 = vpop.f32.mrb[0].mxu0
        %2683 = vmatprep.mubr.bf16.mxu0 0
        %2684 = vmatmul.mubr.bf16.gmra.mrb[0].mxu0 %v2217
        %v2685 = vpop.f32.mrb[0].mxu0
        %v2686 = vadd.f32 %v2525, %v2685
        %v2687 = vpop.f32.mrb[0].mxu0
        %v2688 = vpop.f32.mrb[0].mxu0
        %v2689 = vadd.f32 %v2528, %v2688
        %v2690 = vpop.f32.mrb[0].mxu0
        %2691 = vmatprep.mubr.bf16.mxu0 0
        %2692 = vmatmul.mubr.bf16.gmra.mrb[0].mxu0 %v2220
        %v2693 = vpop.f32.mrb[0].mxu0
        %v2694 = vadd.f32 %v2533, %v2693
        %v2695 = vpop.f32.mrb[0].mxu0
        %v2696 = vpop.f32.mrb[0].mxu0
        %v2697 = vadd.f32 %v2536, %v2696
        %v2698 = vpop.f32.mrb[0].mxu0
        %2699 = vmatprep.mubr.bf16.mxu0 0
        %2700 = vmatmul.mubr.bf16.gmra.mrb[0].mxu0 %v2223
        %v2701 = vpop.f32.mrb[0].mxu0
        %v2702 = vadd.f32 %v2541, %v2701
        %v2703 = vpop.f32.mrb[0].mxu0
        %v2704 = vpop.f32.mrb[0].mxu0
        %v2705 = vadd.f32 %v2544, %v2704
        %v2706 = vpop.f32.mrb[0].mxu0
        %2707 = vdwg.mxu0
        %v2708 = vmax.f32 %v2582, 0.0
        %v2709 = vmax.f32 %v2585, 0.0
        %v2710 = vmax.f32 %v2590, 0.0
        %v2711 = vmax.f32 %v2593, 0.0
        %v2712 = vmax.f32 %v2598, 0.0
        %v2713 = vmax.f32 %v2601, 0.0
        %v2714 = vmax.f32 %v2606, 0.0
        %v2715 = vmax.f32 %v2609, 0.0
        %v2716 = vmax.f32 %v2614, 0.0
        %v2717 = vmax.f32 %v2617, 0.0
        %v2718 = vmax.f32 %v2622, 0.0
        %v2719 = vmax.f32 %v2625, 0.0
        %v2720 = vmax.f32 %v2630, 0.0
        %v2721 = vmax.f32 %v2633, 0.0
        %v2722 = vmax.f32 %v2638, 0.0
        %v2723 = vmax.f32 %v2641, 0.0
        %v2724 = vmax.f32 %v2646, 0.0
        %v2725 = vmax.f32 %v2649, 0.0
        %v2726 = vmax.f32 %v2654, 0.0
        %v2727 = vmax.f32 %v2657, 0.0
        %v2728 = vmax.f32 %v2662, 0.0
        %v2729 = vmax.f32 %v2665, 0.0
        %v2730 = vmax.f32 %v2670, 0.0
        %v2731 = vmax.f32 %v2673, 0.0
        %v2732 = vmax.f32 %v2678, 0.0
        %v2733 = vmax.f32 %v2681, 0.0
        %v2734 = vmax.f32 %v2686, 0.0
        %v2735 = vmax.f32 %v2689, 0.0
        %v2736 = vmax.f32 %v2694, 0.0
        %v2737 = vmax.f32 %v2697, 0.0
        %v2738 = vmax.f32 %v2702, 0.0
        %v2739 = vmax.f32 %v2705, 0.0
        %v2740 = vpack.c.bf16 %v2709, %v2708
        %v2741 = vpack.c.bf16 %v2711, %v2710
        %v2742 = vpack.c.bf16 %v2713, %v2712
        %v2743 = vpack.c.bf16 %v2715, %v2714
        %v2744 = vpack.c.bf16 %v2717, %v2716
        %v2745 = vpack.c.bf16 %v2719, %v2718
        %v2746 = vpack.c.bf16 %v2721, %v2720
        %v2747 = vpack.c.bf16 %v2723, %v2722
        %v2748 = vpack.c.bf16 %v2725, %v2724
        %v2749 = vpack.c.bf16 %v2727, %v2726
        %v2750 = vpack.c.bf16 %v2729, %v2728
        %v2751 = vpack.c.bf16 %v2731, %v2730
        %v2752 = vpack.c.bf16 %v2733, %v2732
        %v2753 = vpack.c.bf16 %v2735, %v2734
        %v2754 = vpack.c.bf16 %v2737, %v2736
        %v2755 = vpack.c.bf16 %v2739, %v2738
        %v2756 = vld [vmem:[%s5] sm:$0xff]
        %v2757 = vld [vmem:[%s5 + $0x8] sm:$0xff]
        %v2758 = vld [vmem:[%s5 + $0x10] sm:$0xff]
        %v2759 = vld [vmem:[%s5 + $0x18] sm:$0xff]
        %v2760 = vld [vmem:[%s5 + $0x20] sm:$0xff]
        %v2761 = vld [vmem:[%s5 + $0x28] sm:$0xff]
        %v2762 = vld [vmem:[%s5 + $0x30] sm:$0xff]
        %v2763 = vld [vmem:[%s5 + $0x38] sm:$0xff]
        %v2764 = vld [vmem:[%s6] sm:$0x3]
        %v2766 = vlaneseq
        %v2767 = vshrl.u32 %v2766, 7
        %v2768 = vsub.s32 0, %v2767
        %v2769 = vrot.slane %v2764, %v2768
        %v2770 = vlaneseq
        %v2771 = vshrl.u32 %v2770, 7
        %v2772 = vsub.s32 1, %v2771
        %v2773 = vrot.slane %v2764, %v2772
        %v2784 = vunpack.c.l.b16 %v2756
        %v2785 = vunpack.c.h.b16 %v2756
        %v2786 = vunpack.c.l.b16 %v2757
        %v2787 = vunpack.c.h.b16 %v2757
        %v2788 = vunpack.c.l.b16 %v2758
        %v2789 = vunpack.c.h.b16 %v2758
        %v2790 = vunpack.c.l.b16 %v2759
        %v2791 = vunpack.c.h.b16 %v2759
        %v2792 = vunpack.c.l.b16 %v2760
        %v2793 = vunpack.c.h.b16 %v2760
        %v2794 = vunpack.c.l.b16 %v2761
        %v2795 = vunpack.c.h.b16 %v2761
        %v2796 = vunpack.c.l.b16 %v2762
        %v2797 = vunpack.c.h.b16 %v2762
        %v2798 = vunpack.c.l.b16 %v2763
        %v2799 = vunpack.c.h.b16 %v2763
        %v2800 = vpack.c.b16 %v2786, %v2784
        %v2801 = vpack.c.b16 %v2787, %v2785
        %v2802 = vpack.c.b16 %v2790, %v2788
        %v2803 = vpack.c.b16 %v2791, %v2789
        %v2804 = vpack.c.b16 %v2794, %v2792
        %v2805 = vpack.c.b16 %v2795, %v2793
        %v2806 = vpack.c.b16 %v2798, %v2796
        %v2807 = vpack.c.b16 %v2799, %v2797
        %v2817 = vsel %vm798, %v2740, 0
        %v2820 = vsel %vm798, %v2741, 0
        %v2823 = vsel %vm798, %v2742, 0
        %v2826 = vsel %vm798, %v2743, 0
        %v2829 = vsel %vm798, %v2744, 0
        %v2832 = vsel %vm798, %v2745, 0
        %v2835 = vsel %vm798, %v2746, 0
        %v2838 = vsel %vm798, %v2747, 0
        %v2841 = vsel %vm798, %v2748, 0
        %v2844 = vsel %vm798, %v2749, 0
        %v2847 = vsel %vm798, %v2750, 0
        %v2850 = vsel %vm798, %v2751, 0
        %v2853 = vsel %vm798, %v2752, 0
        %v2856 = vsel %vm798, %v2753, 0
        %v2859 = vsel %vm798, %v2754, 0
        %v2862 = vsel %vm798, %v2755, 0
        %2864 = vmatprep.subr.bf16.mxu0 %v2801
        %2865 = vmatpush1.bf16.msra.mxu0 %v2800
        %2866 = vmatprep.subr.bf16.mxu0 %v2803
        %2867 = vmatpush1.bf16.msra.mxu0 %v2802
        %2868 = vmatprep.subr.bf16.mxu0 %v2805
        %2869 = vmatpush1.bf16.msra.mxu0 %v2804
        %2870 = vmatprep.subr.bf16.mxu0 %v2807
        %2871 = vmatpush1.bf16.msra.mxu0 %v2806
        %2872 = vmatprep.subr.bf16.mxu0 0
        %2873 = vmatpush1.bf16.msra.mxu0 0
        %2874 = vmatprep.subr.bf16.mxu0 0
        %2875 = vmatpush1.bf16.msra.mxu0 0
        %2876 = vmatprep.subr.bf16.mxu0 0
        %2877 = vmatpush1.bf16.msra.mxu0 0
        %2878 = vmatprep.subr.bf16.mxu0 0
        %2879 = vmatpush1.bf16.msra.mxu0 0
        %2880 = vmatprep.subr.bf16.mxu0 0
        %2881 = vmatpush1.bf16.msra.mxu0 0
        %2882 = vmatprep.subr.bf16.mxu0 0
        %2883 = vmatpush1.bf16.msra.mxu0 0
        %2884 = vmatprep.subr.bf16.mxu0 0
        %2885 = vmatpush1.bf16.msra.mxu0 0
        %2886 = vmatprep.subr.bf16.mxu0 0
        %2887 = vmatpush1.bf16.msra.mxu0 0
        %2888 = vmatprep.subr.bf16.mxu0 0
        %2889 = vmatpush1.bf16.msra.mxu0 0
        %2890 = vmatprep.subr.bf16.mxu0 0
        %2891 = vmatpush1.bf16.msra.mxu0 0
        %2892 = vmatprep.subr.bf16.mxu0 0
        %2893 = vmatpush1.bf16.msra.mxu0 0
        %2894 = vmatprep.subr.bf16.mxu0 0
        %2895 = vmatpush1.bf16.msra.mxu0 0
        %2896 = vmatprep.mubr.bf16.mxu0 0
        %2897 = vmatmul.mubr.bf16.gmra.mrb[0].mxu0 %v2817
        %v2898 = vpop.f32.mrb[0].mxu0
        %v2899 = vadd.f32 %v2769, %v2898
        %v2900 = vpop.f32.mrb[0].mxu0
        %v2901 = vadd.f32 %v2773, %v2900
        %v2902 = vpop.f32.mrb[0].mxu0
        %v2903 = vadd.f32 %v2769, %v2902
        %v2904 = vpop.f32.mrb[0].mxu0
        %v2905 = vadd.f32 %v2773, %v2904
        %2906 = vmatprep.mubr.bf16.mxu0 0
        %2907 = vmatmul.mubr.bf16.gmra.mrb[0].mxu0 %v2820
        %v2908 = vpop.f32.mrb[0].mxu0
        %v2909 = vadd.f32 %v2769, %v2908
        %v2910 = vpop.f32.mrb[0].mxu0
        %v2911 = vadd.f32 %v2773, %v2910
        %v2912 = vpop.f32.mrb[0].mxu0
        %v2913 = vadd.f32 %v2769, %v2912
        %v2914 = vpop.f32.mrb[0].mxu0
        %v2915 = vadd.f32 %v2773, %v2914
        %2916 = vmatprep.mubr.bf16.mxu0 0
        %2917 = vmatmul.mubr.bf16.gmra.mrb[0].mxu0 %v2823
        %v2918 = vpop.f32.mrb[0].mxu0
        %v2919 = vadd.f32 %v2769, %v2918
        %v2920 = vpop.f32.mrb[0].mxu0
        %v2921 = vadd.f32 %v2773, %v2920
        %v2922 = vpop.f32.mrb[0].mxu0
        %v2923 = vadd.f32 %v2769, %v2922
        %v2924 = vpop.f32.mrb[0].mxu0
        %v2925 = vadd.f32 %v2773, %v2924
        %2926 = vmatprep.mubr.bf16.mxu0 0
        %2927 = vmatmul.mubr.bf16.gmra.mrb[0].mxu0 %v2826
        %v2928 = vpop.f32.mrb[0].mxu0
        %v2929 = vadd.f32 %v2769, %v2928
        %v2930 = vpop.f32.mrb[0].mxu0
        %v2931 = vadd.f32 %v2773, %v2930
        %v2932 = vpop.f32.mrb[0].mxu0
        %v2933 = vadd.f32 %v2769, %v2932
        %v2934 = vpop.f32.mrb[0].mxu0
        %v2935 = vadd.f32 %v2773, %v2934
        %2936 = vmatprep.mubr.bf16.mxu0 0
        %2937 = vmatmul.mubr.bf16.gmra.mrb[0].mxu0 %v2829
        %v2938 = vpop.f32.mrb[0].mxu0
        %v2939 = vadd.f32 %v2769, %v2938
        %v2940 = vpop.f32.mrb[0].mxu0
        %v2941 = vadd.f32 %v2773, %v2940
        %v2942 = vpop.f32.mrb[0].mxu0
        %v2943 = vadd.f32 %v2769, %v2942
        %v2944 = vpop.f32.mrb[0].mxu0
        %v2945 = vadd.f32 %v2773, %v2944
        %2946 = vmatprep.mubr.bf16.mxu0 0
        %2947 = vmatmul.mubr.bf16.gmra.mrb[0].mxu0 %v2832
        %v2948 = vpop.f32.mrb[0].mxu0
        %v2949 = vadd.f32 %v2769, %v2948
        %v2950 = vpop.f32.mrb[0].mxu0
        %v2951 = vadd.f32 %v2773, %v2950
        %v2952 = vpop.f32.mrb[0].mxu0
        %v2953 = vadd.f32 %v2769, %v2952
        %v2954 = vpop.f32.mrb[0].mxu0
        %v2955 = vadd.f32 %v2773, %v2954
        %2956 = vmatprep.mubr.bf16.mxu0 0
        %2957 = vmatmul.mubr.bf16.gmra.mrb[0].mxu0 %v2835
        %v2958 = vpop.f32.mrb[0].mxu0
        %v2959 = vadd.f32 %v2769, %v2958
        %v2960 = vpop.f32.mrb[0].mxu0
        %v2961 = vadd.f32 %v2773, %v2960
        %v2962 = vpop.f32.mrb[0].mxu0
        %v2963 = vadd.f32 %v2769, %v2962
        %v2964 = vpop.f32.mrb[0].mxu0
        %v2965 = vadd.f32 %v2773, %v2964
        %2966 = vmatprep.mubr.bf16.mxu0 0
        %2967 = vmatmul.mubr.bf16.gmra.mrb[0].mxu0 %v2838
        %v2968 = vpop.f32.mrb[0].mxu0
        %v2969 = vadd.f32 %v2769, %v2968
        %v2970 = vpop.f32.mrb[0].mxu0
        %v2971 = vadd.f32 %v2773, %v2970
        %v2972 = vpop.f32.mrb[0].mxu0
        %v2973 = vadd.f32 %v2769, %v2972
        %v2974 = vpop.f32.mrb[0].mxu0
        %v2975 = vadd.f32 %v2773, %v2974
        %2976 = vmatprep.mubr.bf16.mxu0 0
        %2977 = vmatmul.mubr.bf16.gmra.mrb[0].mxu0 %v2841
        %v2978 = vpop.f32.mrb[0].mxu0
        %v2979 = vadd.f32 %v2769, %v2978
        %v2980 = vpop.f32.mrb[0].mxu0
        %v2981 = vadd.f32 %v2773, %v2980
        %v2982 = vpop.f32.mrb[0].mxu0
        %v2983 = vadd.f32 %v2769, %v2982
        %v2984 = vpop.f32.mrb[0].mxu0
        %v2985 = vadd.f32 %v2773, %v2984
        %2986 = vmatprep.mubr.bf16.mxu0 0
        %2987 = vmatmul.mubr.bf16.gmra.mrb[0].mxu0 %v2844
        %v2988 = vpop.f32.mrb[0].mxu0
        %v2989 = vadd.f32 %v2769, %v2988
        %v2990 = vpop.f32.mrb[0].mxu0
        %v2991 = vadd.f32 %v2773, %v2990
        %v2992 = vpop.f32.mrb[0].mxu0
        %v2993 = vadd.f32 %v2769, %v2992
        %v2994 = vpop.f32.mrb[0].mxu0
        %v2995 = vadd.f32 %v2773, %v2994
        %2996 = vmatprep.mubr.bf16.mxu0 0
        %2997 = vmatmul.mubr.bf16.gmra.mrb[0].mxu0 %v2847
        %v2998 = vpop.f32.mrb[0].mxu0
        %v2999 = vadd.f32 %v2769, %v2998
        %v3000 = vpop.f32.mrb[0].mxu0
        %v3001 = vadd.f32 %v2773, %v3000
        %v3002 = vpop.f32.mrb[0].mxu0
        %v3003 = vadd.f32 %v2769, %v3002
        %v3004 = vpop.f32.mrb[0].mxu0
        %v3005 = vadd.f32 %v2773, %v3004
        %3006 = vmatprep.mubr.bf16.mxu0 0
        %3007 = vmatmul.mubr.bf16.gmra.mrb[0].mxu0 %v2850
        %v3008 = vpop.f32.mrb[0].mxu0
        %v3009 = vadd.f32 %v2769, %v3008
        %v3010 = vpop.f32.mrb[0].mxu0
        %v3011 = vadd.f32 %v2773, %v3010
        %v3012 = vpop.f32.mrb[0].mxu0
        %v3013 = vadd.f32 %v2769, %v3012
        %v3014 = vpop.f32.mrb[0].mxu0
        %v3015 = vadd.f32 %v2773, %v3014
        %3016 = vmatprep.mubr.bf16.mxu0 0
        %3017 = vmatmul.mubr.bf16.gmra.mrb[0].mxu0 %v2853
        %v3018 = vpop.f32.mrb[0].mxu0
        %v3019 = vadd.f32 %v2769, %v3018
        %v3020 = vpop.f32.mrb[0].mxu0
        %v3021 = vadd.f32 %v2773, %v3020
        %v3022 = vpop.f32.mrb[0].mxu0
        %v3023 = vadd.f32 %v2769, %v3022
        %v3024 = vpop.f32.mrb[0].mxu0
        %v3025 = vadd.f32 %v2773, %v3024
        %3026 = vmatprep.mubr.bf16.mxu0 0
        %3027 = vmatmul.mubr.bf16.gmra.mrb[0].mxu0 %v2856
        %v3028 = vpop.f32.mrb[0].mxu0
        %v3029 = vadd.f32 %v2769, %v3028
        %v3030 = vpop.f32.mrb[0].mxu0
        %v3031 = vadd.f32 %v2773, %v3030
        %v3032 = vpop.f32.mrb[0].mxu0
        %v3033 = vadd.f32 %v2769, %v3032
        %v3034 = vpop.f32.mrb[0].mxu0
        %v3035 = vadd.f32 %v2773, %v3034
        %3036 = vmatprep.mubr.bf16.mxu0 0
        %3037 = vmatmul.mubr.bf16.gmra.mrb[0].mxu0 %v2859
        %v3038 = vpop.f32.mrb[0].mxu0
        %v3039 = vadd.f32 %v2769, %v3038
        %v3040 = vpop.f32.mrb[0].mxu0
        %v3041 = vadd.f32 %v2773, %v3040
        %v3042 = vpop.f32.mrb[0].mxu0
        %v3043 = vadd.f32 %v2769, %v3042
        %v3044 = vpop.f32.mrb[0].mxu0
        %v3045 = vadd.f32 %v2773, %v3044
        %3046 = vmatprep.mubr.bf16.mxu0 0
        %3047 = vmatmul.mubr.bf16.gmra.mrb[0].mxu0 %v2862
        %v3048 = vpop.f32.mrb[0].mxu0
        %v3049 = vadd.f32 %v2769, %v3048
        %v3050 = vpop.f32.mrb[0].mxu0
        %v3051 = vadd.f32 %v2773, %v3050
        %v3052 = vpop.f32.mrb[0].mxu0
        %v3053 = vadd.f32 %v2769, %v3052
        %v3054 = vpop.f32.mrb[0].mxu0
        %v3055 = vadd.f32 %v2773, %v3054
        %3056 = vdwg.mxu0
        %v3057 = vld [vmem:[%s276] sm:$0xff]
        %v3058 = vld [vmem:[%s276 + $0x8] sm:$0xff]
        %v3059 = vld [vmem:[%s276 + $0x10] sm:$0xff]
        %v3060 = vld [vmem:[%s276 + $0x18] sm:$0xff]
        %v3061 = vld [vmem:[%s276 + $0x20] sm:$0xff]
        %v3062 = vld [vmem:[%s276 + $0x28] sm:$0xff]
        %v3063 = vld [vmem:[%s276 + $0x30] sm:$0xff]
        %v3064 = vld [vmem:[%s276 + $0x38] sm:$0xff]
        %v3065 = vld [vmem:[%s276 + $0x40] sm:$0xff]
        %v3066 = vld [vmem:[%s276 + $0x48] sm:$0xff]
        %v3067 = vld [vmem:[%s276 + $0x50] sm:$0xff]
        %v3068 = vld [vmem:[%s276 + $0x58] sm:$0xff]
        %v3069 = vld [vmem:[%s276 + $0x60] sm:$0xff]
        %v3070 = vld [vmem:[%s276 + $0x68] sm:$0xff]
        %v3071 = vld [vmem:[%s276 + $0x70] sm:$0xff]
        %v3072 = vld [vmem:[%s276 + $0x78] sm:$0xff]
        %v3073 = vld [vmem:[%s276 + $0x80] sm:$0xff]
        %v3074 = vld [vmem:[%s276 + $0x88] sm:$0xff]
        %v3075 = vld [vmem:[%s276 + $0x90] sm:$0xff]
        %v3076 = vld [vmem:[%s276 + $0x98] sm:$0xff]
        %v3077 = vld [vmem:[%s276 + $0xa0] sm:$0xff]
        %v3078 = vld [vmem:[%s276 + $0xa8] sm:$0xff]
        %v3079 = vld [vmem:[%s276 + $0xb0] sm:$0xff]
        %v3080 = vld [vmem:[%s276 + $0xb8] sm:$0xff]
        %v3081 = vld [vmem:[%s276 + $0xc0] sm:$0xff]
        %v3082 = vld [vmem:[%s276 + $0xc8] sm:$0xff]
        %v3083 = vld [vmem:[%s276 + $0xd0] sm:$0xff]
        %v3084 = vld [vmem:[%s276 + $0xd8] sm:$0xff]
        %v3085 = vld [vmem:[%s276 + $0xe0] sm:$0xff]
        %v3086 = vld [vmem:[%s276 + $0xe8] sm:$0xff]
        %v3087 = vld [vmem:[%s276 + $0xf0] sm:$0xff]
        %v3088 = vld [vmem:[%s276 + $0xf8] sm:$0xff]
        %v3089 = vunpack.c.l.bf16 %v3057
        %v3090 = vunpack.c.h.bf16 %v3057
        %v3091 = vunpack.c.l.bf16 %v3058
        %v3092 = vunpack.c.h.bf16 %v3058
        %v3093 = vunpack.c.l.bf16 %v3059
        %v3094 = vunpack.c.h.bf16 %v3059
        %v3095 = vunpack.c.l.bf16 %v3060
        %v3096 = vunpack.c.h.bf16 %v3060
        %v3097 = vunpack.c.l.bf16 %v3061
        %v3098 = vunpack.c.h.bf16 %v3061
        %v3099 = vunpack.c.l.bf16 %v3062
        %v3100 = vunpack.c.h.bf16 %v3062
        %v3101 = vunpack.c.l.bf16 %v3063
        %v3102 = vunpack.c.h.bf16 %v3063
        %v3103 = vunpack.c.l.bf16 %v3064
        %v3104 = vunpack.c.h.bf16 %v3064
        %v3105 = vunpack.c.l.bf16 %v3065
        %v3106 = vunpack.c.h.bf16 %v3065
        %v3107 = vunpack.c.l.bf16 %v3066
        %v3108 = vunpack.c.h.bf16 %v3066
        %v3109 = vunpack.c.l.bf16 %v3067
        %v3110 = vunpack.c.h.bf16 %v3067
        %v3111 = vunpack.c.l.bf16 %v3068
        %v3112 = vunpack.c.h.bf16 %v3068
        %v3113 = vunpack.c.l.bf16 %v3069
        %v3114 = vunpack.c.h.bf16 %v3069
        %v3115 = vunpack.c.l.bf16 %v3070
        %v3116 = vunpack.c.h.bf16 %v3070
        %v3117 = vunpack.c.l.bf16 %v3071
        %v3118 = vunpack.c.h.bf16 %v3071
        %v3119 = vunpack.c.l.bf16 %v3072
        %v3120 = vunpack.c.h.bf16 %v3072
        %v3121 = vunpack.c.l.bf16 %v3073
        %v3122 = vunpack.c.h.bf16 %v3073
        %v3123 = vunpack.c.l.bf16 %v3074
        %v3124 = vunpack.c.h.bf16 %v3074
        %v3125 = vunpack.c.l.bf16 %v3075
        %v3126 = vunpack.c.h.bf16 %v3075
        %v3127 = vunpack.c.l.bf16 %v3076
        %v3128 = vunpack.c.h.bf16 %v3076
        %v3129 = vunpack.c.l.bf16 %v3077
        %v3130 = vunpack.c.h.bf16 %v3077
        %v3131 = vunpack.c.l.bf16 %v3078
        %v3132 = vunpack.c.h.bf16 %v3078
        %v3133 = vunpack.c.l.bf16 %v3079
        %v3134 = vunpack.c.h.bf16 %v3079
        %v3135 = vunpack.c.l.bf16 %v3080
        %v3136 = vunpack.c.h.bf16 %v3080
        %v3137 = vunpack.c.l.bf16 %v3081
        %v3138 = vunpack.c.h.bf16 %v3081
        %v3139 = vunpack.c.l.bf16 %v3082
        %v3140 = vunpack.c.h.bf16 %v3082
        %v3141 = vunpack.c.l.bf16 %v3083
        %v3142 = vunpack.c.h.bf16 %v3083
        %v3143 = vunpack.c.l.bf16 %v3084
        %v3144 = vunpack.c.h.bf16 %v3084
        %v3145 = vunpack.c.l.bf16 %v3085
        %v3146 = vunpack.c.h.bf16 %v3085
        %v3147 = vunpack.c.l.bf16 %v3086
        %v3148 = vunpack.c.h.bf16 %v3086
        %v3149 = vunpack.c.l.bf16 %v3087
        %v3150 = vunpack.c.h.bf16 %v3087
        %v3151 = vunpack.c.l.bf16 %v3088
        %v3152 = vunpack.c.h.bf16 %v3088
        %v3153 = vadd.f32 %v2899, %v3089
        %v3154 = vadd.f32 %v2901, %v3090
        %v3155 = vadd.f32 %v2903, %v3091
        %v3156 = vadd.f32 %v2905, %v3092
        %v3157 = vadd.f32 %v2909, %v3093
        %v3158 = vadd.f32 %v2911, %v3094
        %v3159 = vadd.f32 %v2913, %v3095
        %v3160 = vadd.f32 %v2915, %v3096
        %v3161 = vadd.f32 %v2919, %v3097
        %v3162 = vadd.f32 %v2921, %v3098
        %v3163 = vadd.f32 %v2923, %v3099
        %v3164 = vadd.f32 %v2925, %v3100
        %v3165 = vadd.f32 %v2929, %v3101
        %v3166 = vadd.f32 %v2931, %v3102
        %v3167 = vadd.f32 %v2933, %v3103
        %v3168 = vadd.f32 %v2935, %v3104
        %v3169 = vadd.f32 %v2939, %v3105
        %v3170 = vadd.f32 %v2941, %v3106
        %v3171 = vadd.f32 %v2943, %v3107
        %v3172 = vadd.f32 %v2945, %v3108
        %v3173 = vadd.f32 %v2949, %v3109
        %v3174 = vadd.f32 %v2951, %v3110
        %v3175 = vadd.f32 %v2953, %v3111
        %v3176 = vadd.f32 %v2955, %v3112
        %v3177 = vadd.f32 %v2959, %v3113
        %v3178 = vadd.f32 %v2961, %v3114
        %v3179 = vadd.f32 %v2963, %v3115
        %v3180 = vadd.f32 %v2965, %v3116
        %v3181 = vadd.f32 %v2969, %v3117
        %v3182 = vadd.f32 %v2971, %v3118
        %v3183 = vadd.f32 %v2973, %v3119
        %v3184 = vadd.f32 %v2975, %v3120
        %v3185 = vadd.f32 %v2979, %v3121
        %v3186 = vadd.f32 %v2981, %v3122
        %v3187 = vadd.f32 %v2983, %v3123
        %v3188 = vadd.f32 %v2985, %v3124
        %v3189 = vadd.f32 %v2989, %v3125
        %v3190 = vadd.f32 %v2991, %v3126
        %v3191 = vadd.f32 %v2993, %v3127
        %v3192 = vadd.f32 %v2995, %v3128
        %v3193 = vadd.f32 %v2999, %v3129
        %v3194 = vadd.f32 %v3001, %v3130
        %v3195 = vadd.f32 %v3003, %v3131
        %v3196 = vadd.f32 %v3005, %v3132
        %v3197 = vadd.f32 %v3009, %v3133
        %v3198 = vadd.f32 %v3011, %v3134
        %v3199 = vadd.f32 %v3013, %v3135
        %v3200 = vadd.f32 %v3015, %v3136
        %v3201 = vadd.f32 %v3019, %v3137
        %v3202 = vadd.f32 %v3021, %v3138
        %v3203 = vadd.f32 %v3023, %v3139
        %v3204 = vadd.f32 %v3025, %v3140
        %v3205 = vadd.f32 %v3029, %v3141
        %v3206 = vadd.f32 %v3031, %v3142
        %v3207 = vadd.f32 %v3033, %v3143
        %v3208 = vadd.f32 %v3035, %v3144
        %v3209 = vadd.f32 %v3039, %v3145
        %v3210 = vadd.f32 %v3041, %v3146
        %v3211 = vadd.f32 %v3043, %v3147
        %v3212 = vadd.f32 %v3045, %v3148
        %v3213 = vadd.f32 %v3049, %v3149
        %v3214 = vadd.f32 %v3051, %v3150
        %v3215 = vadd.f32 %v3053, %v3151
        %v3216 = vadd.f32 %v3055, %v3152
        %v3217 = vmax.f32 %v3153, 0.0
        %v3218 = vmax.f32 %v3154, 0.0
        %v3219 = vmax.f32 %v3155, 0.0
        %v3220 = vmax.f32 %v3156, 0.0
        %v3221 = vmax.f32 %v3157, 0.0
        %v3222 = vmax.f32 %v3158, 0.0
        %v3223 = vmax.f32 %v3159, 0.0
        %v3224 = vmax.f32 %v3160, 0.0
        %v3225 = vmax.f32 %v3161, 0.0
        %v3226 = vmax.f32 %v3162, 0.0
        %v3227 = vmax.f32 %v3163, 0.0
        %v3228 = vmax.f32 %v3164, 0.0
        %v3229 = vmax.f32 %v3165, 0.0
        %v3230 = vmax.f32 %v3166, 0.0
        %v3231 = vmax.f32 %v3167, 0.0
        %v3232 = vmax.f32 %v3168, 0.0
        %v3233 = vmax.f32 %v3169, 0.0
        %v3234 = vmax.f32 %v3170, 0.0
        %v3235 = vmax.f32 %v3171, 0.0
        %v3236 = vmax.f32 %v3172, 0.0
        %v3237 = vmax.f32 %v3173, 0.0
        %v3238 = vmax.f32 %v3174, 0.0
        %v3239 = vmax.f32 %v3175, 0.0
        %v3240 = vmax.f32 %v3176, 0.0
        %v3241 = vmax.f32 %v3177, 0.0
        %v3242 = vmax.f32 %v3178, 0.0
        %v3243 = vmax.f32 %v3179, 0.0
        %v3244 = vmax.f32 %v3180, 0.0
        %v3245 = vmax.f32 %v3181, 0.0
        %v3246 = vmax.f32 %v3182, 0.0
        %v3247 = vmax.f32 %v3183, 0.0
        %v3248 = vmax.f32 %v3184, 0.0
        %v3249 = vmax.f32 %v3185, 0.0
        %v3250 = vmax.f32 %v3186, 0.0
        %v3251 = vmax.f32 %v3187, 0.0
        %v3252 = vmax.f32 %v3188, 0.0
        %v3253 = vmax.f32 %v3189, 0.0
        %v3254 = vmax.f32 %v3190, 0.0
        %v3255 = vmax.f32 %v3191, 0.0
        %v3256 = vmax.f32 %v3192, 0.0
        %v3257 = vmax.f32 %v3193, 0.0
        %v3258 = vmax.f32 %v3194, 0.0
        %v3259 = vmax.f32 %v3195, 0.0
        %v3260 = vmax.f32 %v3196, 0.0
        %v3261 = vmax.f32 %v3197, 0.0
        %v3262 = vmax.f32 %v3198, 0.0
        %v3263 = vmax.f32 %v3199, 0.0
        %v3264 = vmax.f32 %v3200, 0.0
        %v3265 = vmax.f32 %v3201, 0.0
        %v3266 = vmax.f32 %v3202, 0.0
        %v3267 = vmax.f32 %v3203, 0.0
        %v3268 = vmax.f32 %v3204, 0.0
        %v3269 = vmax.f32 %v3205, 0.0
        %v3270 = vmax.f32 %v3206, 0.0
        %v3271 = vmax.f32 %v3207, 0.0
        %v3272 = vmax.f32 %v3208, 0.0
        %v3273 = vmax.f32 %v3209, 0.0
        %v3274 = vmax.f32 %v3210, 0.0
        %v3275 = vmax.f32 %v3211, 0.0
        %v3276 = vmax.f32 %v3212, 0.0
        %v3277 = vmax.f32 %v3213, 0.0
        %v3278 = vmax.f32 %v3214, 0.0
        %v3279 = vmax.f32 %v3215, 0.0
        %v3280 = vmax.f32 %v3216, 0.0
        %3281 = vst [vmem:[%s271] sm:$0xff] %v3217
        %3282 = vst [vmem:[%s271 + $0x8] sm:$0xff] %v3218
        %3283 = vst [vmem:[%s271 + $0x10] sm:$0xff] %v3219
        %3284 = vst [vmem:[%s271 + $0x18] sm:$0xff] %v3220
        %3285 = vst [vmem:[%s271 + $0x20] sm:$0xff] %v3221
        %3286 = vst [vmem:[%s271 + $0x28] sm:$0xff] %v3222
        %3287 = vst [vmem:[%s271 + $0x30] sm:$0xff] %v3223
        %3288 = vst [vmem:[%s271 + $0x38] sm:$0xff] %v3224
        %3289 = vst [vmem:[%s271 + $0x40] sm:$0xff] %v3225
        %3290 = vst [vmem:[%s271 + $0x48] sm:$0xff] %v3226
        %3291 = vst [vmem:[%s271 + $0x50] sm:$0xff] %v3227
        %3292 = vst [vmem:[%s271 + $0x58] sm:$0xff] %v3228
        %3293 = vst [vmem:[%s271 + $0x60] sm:$0xff] %v3229
        %3294 = vst [vmem:[%s271 + $0x68] sm:$0xff] %v3230
        %3295 = vst [vmem:[%s271 + $0x70] sm:$0xff] %v3231
        %3296 = vst [vmem:[%s271 + $0x78] sm:$0xff] %v3232
        %3297 = vst [vmem:[%s271 + $0x80] sm:$0xff] %v3233
        %3298 = vst [vmem:[%s271 + $0x88] sm:$0xff] %v3234
        %3299 = vst [vmem:[%s271 + $0x90] sm:$0xff] %v3235
        %3300 = vst [vmem:[%s271 + $0x98] sm:$0xff] %v3236
        %3301 = vst [vmem:[%s271 + $0xa0] sm:$0xff] %v3237
        %3302 = vst [vmem:[%s271 + $0xa8] sm:$0xff] %v3238
        %3303 = vst [vmem:[%s271 + $0xb0] sm:$0xff] %v3239
        %3304 = vst [vmem:[%s271 + $0xb8] sm:$0xff] %v3240
        %3305 = vst [vmem:[%s271 + $0xc0] sm:$0xff] %v3241
        %3306 = vst [vmem:[%s271 + $0xc8] sm:$0xff] %v3242
        %3307 = vst [vmem:[%s271 + $0xd0] sm:$0xff] %v3243
        %3308 = vst [vmem:[%s271 + $0xd8] sm:$0xff] %v3244
        %3309 = vst [vmem:[%s271 + $0xe0] sm:$0xff] %v3245
        %3310 = vst [vmem:[%s271 + $0xe8] sm:$0xff] %v3246
        %3311 = vst [vmem:[%s271 + $0xf0] sm:$0xff] %v3247
        %3312 = vst [vmem:[%s271 + $0xf8] sm:$0xff] %v3248
        %3313 = vst [vmem:[%s271 + $0x100] sm:$0xff] %v3249
        %3314 = vst [vmem:[%s271 + $0x108] sm:$0xff] %v3250
        %3315 = vst [vmem:[%s271 + $0x110] sm:$0xff] %v3251
        %3316 = vst [vmem:[%s271 + $0x118] sm:$0xff] %v3252
        %3317 = vst [vmem:[%s271 + $0x120] sm:$0xff] %v3253
        %3318 = vst [vmem:[%s271 + $0x128] sm:$0xff] %v3254
        %3319 = vst [vmem:[%s271 + $0x130] sm:$0xff] %v3255
        %3320 = vst [vmem:[%s271 + $0x138] sm:$0xff] %v3256
        %3321 = vst [vmem:[%s271 + $0x140] sm:$0xff] %v3257
        %3322 = vst [vmem:[%s271 + $0x148] sm:$0xff] %v3258
        %3323 = vst [vmem:[%s271 + $0x150] sm:$0xff] %v3259
        %3324 = vst [vmem:[%s271 + $0x158] sm:$0xff] %v3260
        %3325 = vst [vmem:[%s271 + $0x160] sm:$0xff] %v3261
        %3326 = vst [vmem:[%s271 + $0x168] sm:$0xff] %v3262
        %3327 = vst [vmem:[%s271 + $0x170] sm:$0xff] %v3263
        %3328 = vst [vmem:[%s271 + $0x178] sm:$0xff] %v3264
        %3329 = vst [vmem:[%s271 + $0x180] sm:$0xff] %v3265
        %3330 = vst [vmem:[%s271 + $0x188] sm:$0xff] %v3266
        %3331 = vst [vmem:[%s271 + $0x190] sm:$0xff] %v3267
        %3332 = vst [vmem:[%s271 + $0x198] sm:$0xff] %v3268
        %3333 = vst [vmem:[%s271 + $0x1a0] sm:$0xff] %v3269
        %3334 = vst [vmem:[%s271 + $0x1a8] sm:$0xff] %v3270
        %3335 = vst [vmem:[%s271 + $0x1b0] sm:$0xff] %v3271
        %3336 = vst [vmem:[%s271 + $0x1b8] sm:$0xff] %v3272
        %3337 = vst [vmem:[%s271 + $0x1c0] sm:$0xff] %v3273
        %3338 = vst [vmem:[%s271 + $0x1c8] sm:$0xff] %v3274
        %3339 = vst [vmem:[%s271 + $0x1d0] sm:$0xff] %v3275
        %3340 = vst [vmem:[%s271 + $0x1d8] sm:$0xff] %v3276
        %3341 = vst [vmem:[%s271 + $0x1e0] sm:$0xff] %v3277
        %3342 = vst [vmem:[%s271 + $0x1e8] sm:$0xff] %v3278
        %3343 = vst [vmem:[%s271 + $0x1f0] sm:$0xff] %v3279
        %3344 = vst [vmem:[%s271 + $0x1f8] sm:$0xff] %v3280
        %s3345 = sand.u32 %s181, 1
        %s3346 = scalar_lea.sflag [#allocation4], %s3345
        %s3347 = sand.u32 %s181, 1
        %s3348 = smul.addr %s3347, 512
        %s3349 = scalar_lea.vmem [#allocation3], %s3348
        // Predicated region
        $region49: #{tpu_custom_call.1} parent=47 // pred_check
          %p3350 = pneg %p191
        $region50: #{tpu_custom_call.1} parent=47 // pred_check_branch
          %3352 = sbr.rel (%p3350) target = $region52
        $region51: #{tpu_custom_call.1} parent=47 // pred_region
          %s3354 = ssub.s32 8192, 8192
          %3355 = vsyncadd %s3346, %s3354
          %s3356 = smul.addr %s21, 64
          %s3357 = smul.addr %s3356, 128
          %s3358 = scalar_lea.hbm %s7, %s3357
          %s3359 = sshll.u32 %s3349, 4
          %s3360 = int_to_ptr.vmem [resolvable:$true] %s3359
          %3365 = dma.vmem_to_hbm [thread:$0]  %s3360, 8192, %s3358, %s3346, 256, 256, 16
        $region52: #{tpu_custom_call.1} parent=47 // pred_fallthru
          _
      $region48: #{tpu_custom_call.1} parent=5 // pred_fallthru
        _
      %p3366 = scmp.le.s32.totalorder 2, %s16
      // Predicated region
      $region53: #{tpu_custom_call.1} parent=5 // pred_check
        %p3367 = pneg %p3366
      $region54: #{tpu_custom_call.1} parent=5 // pred_check_branch
        %3369 = sbr.rel (%p3367) target = $region56
      $region55: #{tpu_custom_call.1} parent=5 // pred_region
        %s3370 = ssub.s32 %s16, 2
        // Predicated region
        $region57: #{tpu_custom_call.1} parent=55 // pred_check
          %p3371 = pneg %p197
        $region58: #{tpu_custom_call.1} parent=55 // pred_check_branch
          %3373 = sbr.rel (%p3371) target = $region60
        $region59: #{tpu_custom_call.1} parent=55 // pred_region
          %s3374 = sand.u32 %s182, 1
          %s3375 = scalar_lea.sflag [#allocation4], %s3374
          %s3376 = sand.u32 %s182, 1
          %s3377 = smul.addr %s3376, 512
          %s3378 = scalar_lea.vmem [#allocation3], %s3377
          %3379 = dma.done %s3375, 8192
        $region60: #{tpu_custom_call.1} parent=55 // pred_fallthru
          _
      $region56: #{tpu_custom_call.1} parent=5 // pred_fallthru
        _
    $region6: #{tpu_custom_call.1} parent=1 // loop_footer
      %s20 = sadd.s32 1, %s16
    $region7: #{tpu_custom_call.1} parent=1 // loop_footer_branch
      %15 = sbr.rel target = $region3
    $region8: #{tpu_custom_call.1} parent=1 // loop_exit
      _
    %3380 = vsyncpa [#allocation4], 1
    %s3381 = scalar_lea.sflag [#allocation4], 1
    %3382 = vsyncpa %s3381, 1

</llo_original>
